<compile_context>
chip_gen: v5e
topology: v5e:2x2
jax: 0.10.0
libtpu: 0.0.40
codegen_flags: <defaults>
</compile_context>

<pallas_src>
import functools

import jax
import jax.numpy as jnp
from jax import lax
from jax.experimental import pallas as pl
from jax.experimental.pallas import tpu as pltpu

EPS = 1e-5          # torch.nn.LayerNorm default
TILE_C = 1024       # candidate-dim tile (multiple of 256 for v6e/v7x MXU)


def _round_up(x, m):
    return (x + m - 1) // m * m


def _nbytes(a):
    return int(a.size) * a.dtype.itemsize


def _vmem_limit(block_bytes):
    # Explicit scoped-VMEM budget: above v5e's 16 MiB default, capped at the
    # 128 MiB v5e/v6e physical size.
    # TODO(synk): on v7x (64 MiB physical) re-derive tile sizes so this stays
    #             below 64 MiB for large configurations.
    return int(min(128 << 20, max(32 << 20, 2 * block_bytes + (4 << 20))))


def _pick_batch_block(B, S, target_rows=256):
    """Largest divisor of B with roughly Bb*S <= target_rows (fills MXU M)."""
    bb = max(1, min(B, max(1, target_rows // max(S, 1))))
    while B % bb:
        bb -= 1
    return bb


def _layernorm(x, gamma, beta):
    mu = jnp.mean(x, axis=-1, keepdims=True)
    var = jnp.mean((x - mu) ** 2, axis=-1, keepdims=True)
    return (x - mu) * lax.rsqrt(var + EPS) * gamma + beta


# ----------------------------- Pallas kernels ------------------------------

def encoder_stack_kernel(ea_ref, eb_ref, pos_ref, lne_ref,
                         wqkv_ref, bqkv_ref, wo_ref, bo_ref, ln1_ref,
                         w1_ref, b1_ref, w2_ref, b2_ref, ln2_ref,
                         out_ref, *, alpha, nhead):
    """grid = (B // Bb, L).  A block of Bb sequences per outer step, one
    encoder layer per inner ("arbitrary") step.  The activation lives in the
    resident output block (same block index for every l) so layers chain with
    no HBM round trip; the embedding mix + LayerNorm is fused into l == 0.
    All L layers' (bf16) weights are VMEM-resident (constant block index)."""
    l = pl.program_id(1)
    Bb, S, E = out_ref.shape
    M = Bb * S
    hd = E // nhead
    scale = 1.0 / (hd ** 0.5)

    @pl.when(l == 0)
    def _():
        e = (alpha * ea_ref[...].astype(jnp.float32)
             + (1.0 - alpha) * eb_ref[...].astype(jnp.float32)
             + pos_ref[...])
        out_ref[...] = _layernorm(e, lne_ref[0], lne_ref[1])

    x = out_ref[...]                               # [Bb, S, E] f32 (resident)
    x2 = x.reshape(M, E)

    # ---- self attention (post-LN encoder layer) ---------------------------
    qkv = (jnp.dot(x2.astype(jnp.bfloat16), wqkv_ref[l],
                   preferred_element_type=jnp.float32) + bqkv_ref[l])  # [M,3E]
    q = qkv[:, :E].reshape(Bb, S, E)
    k = qkv[:, E:2 * E].reshape(Bb, S, E)
    v = qkv[:, 2 * E:].reshape(Bb, S, E)

    row = lax.broadcasted_iota(jnp.int32, (S, S), 0)
    col = lax.broadcasted_iota(jnp.int32, (S, S), 1)
    causal = row >= col                            # True = may attend

    heads = []
    for h in range(nhead):                         # static unroll (nhead = 2)
        sl = slice(h * hd, (h + 1) * hd)
        s = jnp.einsum('bqd,bkd->bqk', q[..., sl], k[..., sl],
                       preferred_element_type=jnp.float32) * scale
        s = jnp.where(causal, s, -1e30)
        m = jnp.max(s, axis=-1, keepdims=True)
        p = jnp.exp(s - m)
        p = p * pl.reciprocal(jnp.sum(p, axis=-1, keepdims=True), approx=True)
        heads.append(jnp.einsum('bqk,bkd->bqd', p, v[..., sl],
                                preferred_element_type=jnp.float32))
    attn = jnp.concatenate(heads, axis=-1).reshape(M, E)
    attn = (jnp.dot(attn.astype(jnp.bfloat16), wo_ref[l],
                    preferred_element_type=jnp.float32) + bo_ref[l])

    ln1 = ln1_ref[l]
    h1 = _layernorm(x2 + attn, ln1[0], ln1[1])

    # ---- feed forward ------------------------------------------------------
    ff = (jnp.dot(h1.astype(jnp.bfloat16), w1_ref[l],
                  preferred_element_type=jnp.float32) + b1_ref[l])
    ff = jnp.maximum(ff, 0.0)
    ff = (jnp.dot(ff.astype(jnp.bfloat16), w2_ref[l],
                  preferred_element_type=jnp.float32) + b2_ref[l])
    ln2 = ln2_ref[l]
    out_ref[...] = _layernorm(h1 + ff, ln2[0], ln2[1]).reshape(Bb, S, E)


def item_scoring_kernel(yr_ref, ye_ref, w1_ref, b1_ref, tab_ref, bias_ref,
                        rec_out_ref, mi1_out_ref):
    """One candidate tile of the item table; produces rec_output and
    mi_output1 tiles so the table tile is read from HBM once for both."""
    N, S, E = yr_ref.shape
    M = N * S
    tc = tab_ref.shape[1]
    tab = tab_ref[...]                              # [E, tc] bf16
    bias = bias_ref[...]                            # [1, tc] f32

    rec = yr_ref[...].reshape(M, E).astype(jnp.bfloat16)
    rec_out_ref[...] = (jnp.dot(rec, tab, preferred_element_type=jnp.float32)
                        + bias).reshape(N, S, tc)

    expl = ye_ref[...].reshape(M, E)
    mi1_x = (jnp.dot(expl.astype(jnp.bfloat16), w1_ref[...],
                     preferred_element_type=jnp.float32) + b1_ref[...])
    mi1_out_ref[...] = (jnp.dot(mi1_x.astype(jnp.bfloat16), tab,
                                preferred_element_type=jnp.float32)
                        + bias).reshape(N, S, tc)


def expl_scoring_kernel(ye_ref, tab_ref, bias_ref, out_ref):
    N, S, E = ye_ref.shape
    tc = tab_ref.shape[1]
    x = ye_ref[...].reshape(N * S, E).astype(jnp.bfloat16)
    out_ref[...] = (jnp.dot(x, tab_ref[...], preferred_element_type=jnp.float32)
                    + bias_ref[...]).reshape(N, S, tc)


def attr_scoring_kernel(ye_ref, w2_ref, b2_ref, pwT_ref, pb_ref,
                        tab_ref, bias_ref, out_ref):
    """mi_output2: score(W2(expl), proj(attr_embed)) + attr_bias, re-associated
    so the 768-dim projection is applied to the (small) M side:
        score = (W2(expl) @ projW^T) @ attr_tab + W2(expl)·projB + attr_bias
    which is mathematically identical to projecting the attr table."""
    N, S, E = ye_ref.shape
    tc = tab_ref.shape[1]
    expl = ye_ref[...].reshape(N * S, E)
    mi2_x = (jnp.dot(expl.astype(jnp.bfloat16), w2_ref[...],
                     preferred_element_type=jnp.float32) + b2_ref[...])   # [M,E]
    z = jnp.dot(mi2_x.astype(jnp.bfloat16), pwT_ref[...],
                preferred_element_type=jnp.float32)                       # [M,768]
    pb_term = jnp.sum(mi2_x * pb_ref[...], axis=-1, keepdims=True)        # [M,1]
    out_ref[...] = ((jnp.dot(z.astype(jnp.bfloat16), tab_ref[...],
                             preferred_element_type=jnp.float32)
                     + pb_term + bias_ref[...])
                    .reshape(N, S, tc))


# ------------------------------- wrappers ----------------------------------

def encoder_stack(ea, eb, pos, ln_emb, enc, *, alpha, nhead):
    B, S, E = ea.shape
    L, _, F = enc["w1"].shape
    Bb = _pick_batch_block(B, S)
    nb = B // Bb

    w_names = ("wqkv", "bqkv", "wo", "bo", "ln1", "w1", "b1", "w2", "b2", "ln2")
    w_arrays = [enc[n] for n in w_names]
    w_bytes = sum(_nbytes(a) for a in w_arrays)

    block_bytes = (2 * Bb * S * E * ea.dtype.itemsize      # ea + eb blocks
                   + Bb * S * E * 4                        # resident activation
                   + _nbytes(pos) + _nbytes(ln_emb) + w_bytes)

    cost = pl.CostEstimate(
        flops=int(2 * B * L * S * (3 * E * E + E * E + 2 * E * F + 2 * S * E)),
        transcendentals=int(B * L * nhead * S * S),
        bytes_accessed=int(_nbytes(ea) + _nbytes(eb) + _nbytes(pos)
                           + _nbytes(ln_emb) + w_bytes + B * S * E * 4))

    xmap = lambda b, l: (b, 0, 0)
    wmap3 = lambda b, l: (0, 0, 0)       # constant index -> weights resident
    wmap2 = lambda b, l: (0, 0)

    kern = functools.partial(encoder_stack_kernel, alpha=alpha, nhead=nhead)
    return pl.pallas_call(
        kern,
        out_shape=jax.ShapeDtypeStruct((B, S, E), jnp.float32),
        grid=(nb, L),
        in_specs=[
            pl.BlockSpec((Bb, S, E), xmap),              # ea
            pl.BlockSpec((Bb, S, E), xmap),              # eb
            pl.BlockSpec((S, E), wmap2),                 # pos
            pl.BlockSpec((2, E), wmap2),                 # embedding LN
            pl.BlockSpec((L, E, 3 * E), wmap3),          # wqkv (all layers)
            pl.BlockSpec((L, 1, 3 * E), wmap3),          # bqkv
            pl.BlockSpec((L, E, E), wmap3),              # wo
            pl.BlockSpec((L, 1, E), wmap3),              # bo
            pl.BlockSpec((L, 2, E), wmap3),              # ln1
            pl.BlockSpec((L, E, F), wmap3),              # ffn w1
            pl.BlockSpec((L, 1, F), wmap3),              # ffn b1
            pl.BlockSpec((L, F, E), wmap3),              # ffn w2
            pl.BlockSpec((L, 1, E), wmap3),              # ffn b2
            pl.BlockSpec((L, 2, E), wmap3),              # ln2
        ],
        out_specs=pl.BlockSpec((Bb, S, E), xmap),        # resident across l
        compiler_params=pltpu.CompilerParams(
            dimension_semantics=("parallel", "arbitrary"),
            vmem_limit_bytes=_vmem_limit(block_bytes)),
        cost_estimate=cost,
    )(ea, eb, pos, ln_emb, *w_arrays)


def _tile_counts(tab):
    Cp = tab.shape[1]
    tc = min(TILE_C, Cp)
    return Cp, tc, Cp // tc


def item_scoring(y, w1, b1, tab, bias, *, n_rec):
    B, S, E = y.shape
    N = n_rec
    M = N * S
    Cp, tc, nt = _tile_counts(tab)

    block_bytes = (2 * M * E * 4 + _nbytes(w1) + _nbytes(b1)
                   + 2 * E * tc * 2 + 2 * tc * 4 + 2 * 2 * M * tc * 4)
    cost = pl.CostEstimate(
        flops=int(2 * M * E * E + 4 * M * E * Cp), transcendentals=0,
        bytes_accessed=int(2 * M * E * 4 + _nbytes(w1) + _nbytes(tab)
                           + _nbytes(bias) + 2 * M * Cp * 4))

    return pl.pallas_call(
        item_scoring_kernel,
        out_shape=(jax.ShapeDtypeStruct((N, S, Cp), jnp.float32),
                   jax.ShapeDtypeStruct((N, S, Cp), jnp.float32)),
        grid=(nt,),
        in_specs=[
            pl.BlockSpec((N, S, E), lambda i: (0, 0, 0)),   # rec half of y
            pl.BlockSpec((N, S, E), lambda i: (1, 0, 0)),   # expl half of y
            pl.BlockSpec((E, E), lambda i: (0, 0)),         # W1
            pl.BlockSpec((1, E), lambda i: (0, 0)),         # b1
            pl.BlockSpec((E, tc), lambda i: (0, i)),        # item table tile
            pl.BlockSpec((1, tc), lambda i: (0, i)),        # item bias tile
        ],
        out_specs=(pl.BlockSpec((N, S, tc), lambda i: (0, 0, i)),
                   pl.BlockSpec((N, S, tc), lambda i: (0, 0, i))),
        compiler_params=pltpu.CompilerParams(
            dimension_semantics=("parallel",),
            vmem_limit_bytes=_vmem_limit(block_bytes)),
        cost_estimate=cost,
    )(y, y, w1, b1, tab, bias)


def expl_scoring(y, tab, bias, *, n_rec):
    B, S, E = y.shape
    N = n_rec
    M = N * S
    Cp, tc, nt = _tile_counts(tab)

    block_bytes = M * E * 4 + 2 * E * tc * 2 + 2 * tc * 4 + 2 * M * tc * 4
    cost = pl.CostEstimate(
        flops=int(2 * M * E * Cp), transcendentals=0,
        bytes_accessed=int(M * E * 4 + _nbytes(tab) + _nbytes(bias) + M * Cp * 4))

    return pl.pallas_call(
        expl_scoring_kernel,
        out_shape=jax.ShapeDtypeStruct((N, S, Cp), jnp.float32),
        grid=(nt,),
        in_specs=[pl.BlockSpec((N, S, E), lambda i: (1, 0, 0)),
                  pl.BlockSpec((E, tc), lambda i: (0, i)),
                  pl.BlockSpec((1, tc), lambda i: (0, i))],
        out_specs=pl.BlockSpec((N, S, tc), lambda i: (0, 0, i)),
        compiler_params=pltpu.CompilerParams(
            dimension_semantics=("parallel",),
            vmem_limit_bytes=_vmem_limit(block_bytes)),
        cost_estimate=cost,
    )(y, tab, bias)


def attr_scoring(y, w2, b2, pwT, pb, tab, bias, *, n_rec):
    B, S, E = y.shape
    N = n_rec
    M = N * S
    D = pwT.shape[1]                                # 768
    Cp, tc, nt = _tile_counts(tab)

    block_bytes = (M * E * 4 + _nbytes(w2) + _nbytes(b2) + _nbytes(pwT)
                   + _nbytes(pb) + 2 * D * tc * 2 + 2 * tc * 4 + 2 * M * tc * 4)
    cost = pl.CostEstimate(
        flops=int(2 * M * E * E + 2 * M * E * D + 2 * M * D * Cp),
        transcendentals=0,
        bytes_accessed=int(M * E * 4 + _nbytes(w2) + _nbytes(pwT)
                           + _nbytes(tab) + _nbytes(bias) + M * Cp * 4))

    return pl.pallas_call(
        attr_scoring_kernel,
        out_shape=jax.ShapeDtypeStruct((N, S, Cp), jnp.float32),
        grid=(nt,),
        in_specs=[pl.BlockSpec((N, S, E), lambda i: (1, 0, 0)),
                  pl.BlockSpec((E, E), lambda i: (0, 0)),     # W2
                  pl.BlockSpec((1, E), lambda i: (0, 0)),     # b2
                  pl.BlockSpec((E, D), lambda i: (0, 0)),     # proj weight^T
                  pl.BlockSpec((1, E), lambda i: (0, 0)),     # proj bias
                  pl.BlockSpec((D, tc), lambda i: (0, i)),    # attr table tile
                  pl.BlockSpec((1, tc), lambda i: (0, i))],   # attr bias tile
        out_specs=pl.BlockSpec((N, S, tc), lambda i: (0, 0, i)),
        compiler_params=pltpu.CompilerParams(
            dimension_semantics=("parallel",),
            vmem_limit_bytes=_vmem_limit(block_bytes)),
        cost_estimate=cost,
    )(y, w2, b2, pwT, pb, tab, bias)


# --------------------------- parameter preparation --------------------------

def prepare_params(params):
    """One-time (outside jit) conversion: bf16 weights/tables, candidate
    tables padded to a 256/TILE_C multiple and pre-transposed to [E, C_pad]."""
    def prep_table(emb, bias):
        C, _ = emb.shape
        tc = min(TILE_C, _round_up(C, 256))
        Cp = _round_up(C, tc)
        tab = jnp.pad(emb, ((0, Cp - C), (0, 0))).T.astype(jnp.bfloat16)
        b = jnp.pad(bias[:, 0], (0, Cp - C)).reshape(1, Cp).astype(jnp.float32)
        return tab, b

    enc = params["encoder"]
    prep = dict(
        pos_embed=params["pos_embed"].astype(jnp.float32),
        layernorm=params["layernorm"].astype(jnp.float32),
        item_embed=params["item_embed"].astype(jnp.bfloat16),
        expl_embed=params["expl_embed"].astype(jnp.bfloat16),
        encoder=dict(
            wqkv=enc["wqkv"].astype(jnp.bfloat16), bqkv=enc["bqkv"].astype(jnp.float32),
            wo=enc["wo"].astype(jnp.bfloat16), bo=enc["bo"].astype(jnp.float32),
            ln1=enc["ln1"].astype(jnp.float32),
            w1=enc["w1"].astype(jnp.bfloat16), b1=enc["b1"].astype(jnp.float32),
            w2=enc["w2"].astype(jnp.bfloat16), b2=enc["b2"].astype(jnp.float32),
            ln2=enc["ln2"].astype(jnp.float32)),
        W1=(params["W1"][0].astype(jnp.bfloat16),
            params["W1"][1].reshape(1, -1).astype(jnp.float32)),
        W2=(params["W2"][0].astype(jnp.bfloat16),
            params["W2"][1].reshape(1, -1).astype(jnp.float32)),
        proj=(params["proj"][0].T.astype(jnp.bfloat16),            # [E, 768]
              params["proj"][1].reshape(1, -1).astype(jnp.float32)),
    )
    prep["item_tab"], prep["item_bias_row"] = prep_table(params["item_embed"],
                                                         params["item_bias"])
    prep["expl_tab"], prep["expl_bias_row"] = prep_table(params["expl_embed"],
                                                         params["expl_bias"])
    prep["attr_tab"], prep["attr_bias_row"] = prep_table(params["attr_embed"],
                                                         params["attr_bias"])
    return prep


# ------------------------------ model forward -------------------------------

def scemima_forward(prep, rec_input, expl_input, *, alpha, nhead,
                    n_item, n_expl, n_attr):
    N, S, _ = rec_input.shape
    item_emb = prep["item_embed"]
    expl_emb = prep["expl_embed"]
    pos = prep["pos_embed"][:S]

    # Both streams stacked into one batch [2N, S, E] so the shared encoder
    # runs once; `alpha` always weights ea, (1 - alpha) weights eb.
    ea = jnp.concatenate([item_emb[rec_input[:, :, 0]],
                          expl_emb[expl_input[:, :, 1]]], axis=0)
    eb = jnp.concatenate([expl_emb[rec_input[:, :, 1]],
                          item_emb[expl_input[:, :, 0]]], axis=0)

    y = encoder_stack(ea, eb, pos, prep["layernorm"], prep["encoder"],
                      alpha=alpha, nhead=nhead)               # [2N, S, E] f32

    w1, b1 = prep["W1"]
    w2, b2 = prep["W2"]
    pwT, pb = prep["proj"]

    rec_o, mi1_o = item_scoring(y, w1, b1, prep["item_tab"],
                                prep["item_bias_row"], n_rec=N)
    expl_o = expl_scoring(y, prep["expl_tab"], prep["expl_bias_row"], n_rec=N)
    mi2_o = attr_scoring(y, w2, b2, pwT, pb, prep["attr_tab"],
                         prep["attr_bias_row"], n_rec=N)

    # Slice off candidate padding right next to the kernels.
    return (rec_o[:, :, :n_item], expl_o[:, :, :n_expl],
            mi1_o[:, :, :n_item], mi2_o[:, :, :n_attr])


# ------------------------------ parameter init ------------------------------

def init_params(key, nitems, nexpls, nattrs, embed_size, nlayers, dim_ff=2048):
    initrange = 0.1
    keys = iter(jax.random.split(key, 256))

    def u(shape):
        return jax.random.uniform(next(keys), shape, jnp.float32,
                                  -initrange, initrange)

    def ln_init():
        return jnp.stack([jnp.ones((embed_size,), jnp.float32),
                          jnp.zeros((embed_size,), jnp.float32)], 0)   # [2, E]

    params = dict(
        item_embed=u((nitems + 1, embed_size)),
        item_bias=u((nitems + 1, 1)),
        expl_embed=u((nexpls + 1, embed_size)),
        expl_bias=u((nexpls + 1, 1)),
        attr_embed=u((nattrs + 1, 768)),      # attr_semantics (+pad), re-inited
        attr_bias=u((nattrs + 1, 1)),
        pos_embed=u((25, embed_size)),
        layernorm=ln_init(),
        W1=(u((embed_size, embed_size)), jnp.zeros((embed_size,), jnp.float32)),
        W2=(u((embed_size, embed_size)), jnp.zeros((embed_size,), jnp.float32)),
        proj=(u((768, embed_size)), jnp.zeros((embed_size,), jnp.float32)),
    )

    E, F = embed_size, dim_ff
    wqkv, bqkv, wo, bo, ln1, w1, b1, w2, b2, ln2 = ([] for _ in range(10))
    for _ in range(nlayers):
        wqkv.append(u((E, 3 * E)))
        bqkv.append(jnp.zeros((1, 3 * E), jnp.float32))
        wo.append(u((E, E)))
        bo.append(jnp.zeros((1, E), jnp.float32))
        ln1.append(ln_init())
        w1.append(u((E, F)))
        b1.append(jnp.zeros((1, F), jnp.float32))
        w2.append(u((F, E)))
        b2.append(jnp.zeros((1, E), jnp.float32))
        ln2.append(ln_init())
    params["encoder"] = dict(
        wqkv=jnp.stack(wqkv), bqkv=jnp.stack(bqkv), wo=jnp.stack(wo),
        bo=jnp.stack(bo), ln1=jnp.stack(ln1), w1=jnp.stack(w1),
        b1=jnp.stack(b1), w2=jnp.stack(w2), b2=jnp.stack(b2),
        ln2=jnp.stack(ln2))
    return params


# ----------------------------------- main ------------------------------------

if __name__ == "__main__":
    nitems, nexpls, nattrs = 10, 6, 5
    embed_size, nlayers, nhead = 32, 2, 2
    alpha = 0.6
    N, S = 2, 8

    key = jax.random.PRNGKey(0)
    kp, k1, k2, k3, k4 = jax.random.split(key, 5)
    params = init_params(kp, nitems, nexpls, nattrs, embed_size, nlayers)
    prep = prepare_params(params)          # one-time pad/transpose/bf16 cast

    rec_items = jax.random.randint(k1, (N, S, 1), 0, nitems + 1)
    rec_expls = jax.random.randint(k2, (N, S, 1), 0, nexpls + 1)
    rec_input = jnp.concatenate([rec_items, rec_expls], axis=-1).astype(jnp.int32)

    expl_items = jax.random.randint(k3, (N, S, 1), 0, nitems + 1)
    expl_expls = jax.random.randint(k4, (N, S, 1), 0, nexpls + 1)
    expl_input = jnp.concatenate([expl_items, expl_expls], axis=-1).astype(jnp.int32)

    fwd = jax.jit(functools.partial(
        scemima_forward, alpha=alpha, nhead=nhead,
        n_item=nitems + 1, n_expl=nexpls + 1, n_attr=nattrs + 1))
    outs = fwd(prep, rec_input, expl_input)
    outs = jax.block_until_ready(outs)

    assert outs[0].shape == (N, S, nitems + 1)
    assert outs[1].shape == (N, S, nexpls + 1)
    assert outs[2].shape == (N, S, nitems + 1)
    assert outs[3].shape == (N, S, nattrs + 1)
    assert all(bool(jnp.all(jnp.isfinite(o))) for o in outs)
    print("KERNEL_OK")
</pallas_src>

<mosaic_0001>
module attributes {stable_mosaic.version = 11 : i64} {
  func.func @encoder_stack_kernel(%arg0: i32, %arg1: i32, %arg2: memref<4x8x32xbf16, #tpu.memory_space<vmem>>, %arg3: memref<4x8x32xbf16, #tpu.memory_space<vmem>>, %arg4: memref<8x32xf32, #tpu.memory_space<vmem>>, %arg5: memref<2x32xf32, #tpu.memory_space<vmem>>, %arg6: memref<2x32x96xbf16, #tpu.memory_space<vmem>>, %arg7: memref<2x1x96xf32, #tpu.memory_space<vmem>>, %arg8: memref<2x32x32xbf16, #tpu.memory_space<vmem>>, %arg9: memref<2x1x32xf32, #tpu.memory_space<vmem>>, %arg10: memref<2x2x32xf32, #tpu.memory_space<vmem>>, %arg11: memref<2x32x2048xbf16, #tpu.memory_space<vmem>>, %arg12: memref<2x1x2048xf32, #tpu.memory_space<vmem>>, %arg13: memref<2x2048x32xbf16, #tpu.memory_space<vmem>>, %arg14: memref<2x1x32xf32, #tpu.memory_space<vmem>>, %arg15: memref<2x2x32xf32, #tpu.memory_space<vmem>>, %arg16: memref<4x8x32xf32, #tpu.memory_space<vmem>>) attributes {dimension_semantics = [#tpu.dimension_semantics<parallel>, #tpu.dimension_semantics<arbitrary>], iteration_bounds = array<i64: 1, 2>, scalar_prefetch = 0 : i64, scratch_operands = 0 : i64, tpu.core_type = #tpu.core_type<tc>, window_params = [{transform_indices = @transform_0, window_bounds = array<i64: 4, 8, 32>}, {transform_indices = @transform_1, window_bounds = array<i64: 4, 8, 32>}, {pipeline_mode = #tpu.pipeline_mode<synchronous>, transform_indices = @transform_2, window_bounds = array<i64: 8, 32>}, {pipeline_mode = #tpu.pipeline_mode<synchronous>, transform_indices = @transform_3, window_bounds = array<i64: 2, 32>}, {pipeline_mode = #tpu.pipeline_mode<synchronous>, transform_indices = @transform_4, window_bounds = array<i64: 2, 32, 96>}, {pipeline_mode = #tpu.pipeline_mode<synchronous>, transform_indices = @transform_5, window_bounds = array<i64: 2, 1, 96>}, {pipeline_mode = #tpu.pipeline_mode<synchronous>, transform_indices = @transform_6, window_bounds = array<i64: 2, 32, 32>}, {pipeline_mode = #tpu.pipeline_mode<synchronous>, transform_indices = @transform_7, window_bounds = array<i64: 2, 1, 32>}, {pipeline_mode = #tpu.pipeline_mode<synchronous>, transform_indices = @transform_8, window_bounds = array<i64: 2, 2, 32>}, {pipeline_mode = #tpu.pipeline_mode<synchronous>, transform_indices = @transform_9, window_bounds = array<i64: 2, 32, 2048>}, {pipeline_mode = #tpu.pipeline_mode<synchronous>, transform_indices = @transform_10, window_bounds = array<i64: 2, 1, 2048>}, {pipeline_mode = #tpu.pipeline_mode<synchronous>, transform_indices = @transform_11, window_bounds = array<i64: 2, 2048, 32>}, {pipeline_mode = #tpu.pipeline_mode<synchronous>, transform_indices = @transform_12, window_bounds = array<i64: 2, 1, 32>}, {pipeline_mode = #tpu.pipeline_mode<synchronous>, transform_indices = @transform_13, window_bounds = array<i64: 2, 2, 32>}, {transform_indices = @transform_14, window_bounds = array<i64: 4, 8, 32>}]} {
    %c0_i32 = arith.constant 0 : i32
    %0 = arith.cmpi eq, %arg1, %c0_i32 : i32
    %1 = arith.extui %0 : i1 to i32
    %c0_i32_0 = arith.constant 0 : i32
    %2 = arith.cmpi ne, %1, %c0_i32_0 : i32
    scf.if %2 {
      %c0_52 = arith.constant 0 : index
      %c0_53 = arith.constant 0 : index
      %c0_54 = arith.constant 0 : index
      %166 = vector.load %arg2[%c0_52, %c0_53, %c0_54] : memref<4x8x32xbf16, #tpu.memory_space<vmem>>, vector<4x8x32xbf16>
      %167 = arith.extf %166 : vector<4x8x32xbf16> to vector<4x8x32xf32>
      %cst_55 = arith.constant 6.000000e-01 : f32
      %168 = vector.broadcast %cst_55 : f32 to vector<4x8x32xf32>
      %169 = arith.mulf %168, %167 : vector<4x8x32xf32>
      %c0_56 = arith.constant 0 : index
      %c0_57 = arith.constant 0 : index
      %c0_58 = arith.constant 0 : index
      %170 = vector.load %arg3[%c0_56, %c0_57, %c0_58] : memref<4x8x32xbf16, #tpu.memory_space<vmem>>, vector<4x8x32xbf16>
      %171 = arith.extf %170 : vector<4x8x32xbf16> to vector<4x8x32xf32>
      %cst_59 = arith.constant 4.000000e-01 : f32
      %172 = vector.broadcast %cst_59 : f32 to vector<4x8x32xf32>
      %173 = arith.mulf %172, %171 : vector<4x8x32xf32>
      %174 = arith.addf %169, %173 : vector<4x8x32xf32>
      %c0_60 = arith.constant 0 : index
      %c0_61 = arith.constant 0 : index
      %175 = vector.load %arg4[%c0_60, %c0_61] : memref<8x32xf32, #tpu.memory_space<vmem>>, vector<8x32xf32>
      %176 = vector.shape_cast %175 : vector<8x32xf32> to vector<1x8x32xf32>
      %177 = vector.broadcast %176 : vector<1x8x32xf32> to vector<4x8x32xf32>
      %178 = arith.addf %174, %177 : vector<4x8x32xf32>
      %c0_62 = arith.constant 0 : index
      %c0_63 = arith.constant 0 : index
      %179 = vector.load %arg5[%c0_62, %c0_63] : memref<2x32xf32, #tpu.memory_space<vmem>>, vector<1x32xf32>
      %180 = vector.shape_cast %179 : vector<1x32xf32> to vector<32xf32>
      %c1 = arith.constant 1 : index
      %c0_64 = arith.constant 0 : index
      %181 = vector.load %arg5[%c1, %c0_64] : memref<2x32xf32, #tpu.memory_space<vmem>>, vector<1x32xf32>
      %182 = vector.shape_cast %181 : vector<1x32xf32> to vector<32xf32>
      %cst_65 = arith.constant dense<0.000000e+00> : vector<4x8xf32>
      %183 = vector.multi_reduction <add>, %178, %cst_65 [2] : vector<4x8x32xf32> to vector<4x8xf32>
      %184 = vector.shape_cast %183 : vector<4x8xf32> to vector<4x8x1xf32>
      %cst_66 = arith.constant 3.200000e+01 : f32
      %185 = vector.broadcast %cst_66 : f32 to vector<4x8x1xf32>
      %186 = arith.divf %184, %185 : vector<4x8x1xf32>
      %187 = vector.broadcast %186 : vector<4x8x1xf32> to vector<4x8x32xf32>
      %188 = arith.subf %178, %187 : vector<4x8x32xf32>
      %189 = arith.mulf %188, %188 : vector<4x8x32xf32>
      %cst_67 = arith.constant dense<0.000000e+00> : vector<4x8xf32>
      %190 = vector.multi_reduction <add>, %189, %cst_67 [2] : vector<4x8x32xf32> to vector<4x8xf32>
      %191 = vector.shape_cast %190 : vector<4x8xf32> to vector<4x8x1xf32>
      %cst_68 = arith.constant 3.200000e+01 : f32
      %192 = vector.broadcast %cst_68 : f32 to vector<4x8x1xf32>
      %193 = arith.divf %191, %192 : vector<4x8x1xf32>
      %194 = vector.broadcast %186 : vector<4x8x1xf32> to vector<4x8x32xf32>
      %195 = arith.subf %178, %194 : vector<4x8x32xf32>
      %cst_69 = arith.constant 9.99999974E-6 : f32
      %196 = vector.broadcast %cst_69 : f32 to vector<4x8x1xf32>
      %197 = arith.addf %193, %196 : vector<4x8x1xf32>
      %198 = math.rsqrt %197 : vector<4x8x1xf32>
      %199 = vector.broadcast %198 : vector<4x8x1xf32> to vector<4x8x32xf32>
      %200 = arith.mulf %195, %199 : vector<4x8x32xf32>
      %201 = vector.shape_cast %180 : vector<32xf32> to vector<1x1x32xf32>
      %202 = vector.broadcast %201 : vector<1x1x32xf32> to vector<4x8x32xf32>
      %203 = arith.mulf %200, %202 : vector<4x8x32xf32>
      %204 = vector.shape_cast %182 : vector<32xf32> to vector<1x1x32xf32>
      %205 = vector.broadcast %204 : vector<1x1x32xf32> to vector<4x8x32xf32>
      %206 = arith.addf %203, %205 : vector<4x8x32xf32>
      %c0_70 = arith.constant 0 : index
      %c0_71 = arith.constant 0 : index
      %c0_72 = arith.constant 0 : index
      %207 = vector.load %arg16[%c0_70, %c0_71, %c0_72] : memref<4x8x32xf32, #tpu.memory_space<vmem>>, vector<4x8x32xf32>
      tpu.vector_store %arg16[%c0_70, %c0_71, %c0_72], %206 {strides = array<i32>} : memref<4x8x32xf32, #tpu.memory_space<vmem>>, vector<4x8x32xf32>,
    } else {
    }
    %c0 = arith.constant 0 : index
    %c0_1 = arith.constant 0 : index
    %c0_2 = arith.constant 0 : index
    %3 = vector.load %arg16[%c0, %c0_1, %c0_2] : memref<4x8x32xf32, #tpu.memory_space<vmem>>, vector<4x8x32xf32>
    %4 = vector.shape_cast %3 : vector<4x8x32xf32> to vector<32x32xf32>
    %5 = arith.truncf %4 : vector<32x32xf32> to vector<32x32xbf16>
    %6 = arith.index_cast %arg1 : i32 to index
    %c0_3 = arith.constant 0 : index
    %c0_4 = arith.constant 0 : index
    %7 = vector.load %arg6[%6, %c0_3, %c0_4] : memref<2x32x96xbf16, #tpu.memory_space<vmem>>, vector<1x32x96xbf16>
    %8 = vector.shape_cast %7 : vector<1x32x96xbf16> to vector<32x96xbf16>
    %cst = arith.constant dense<0.000000e+00> : vector<32x96xf32>
    %9 = tpu.matmul %5, %8, %cst {dimension_numbers = #tpu.dot_dimension_numbers<[1], [0], [0], [1], [0, 0, 1, 1], [], []>} : vector<32x32xbf16>, vector<32x96xbf16>, vector<32x96xf32> -> vector<32x96xf32>
    %10 = arith.index_cast %arg1 : i32 to index
    %c0_5 = arith.constant 0 : index
    %c0_6 = arith.constant 0 : index
    %11 = vector.load %arg7[%10, %c0_5, %c0_6] : memref<2x1x96xf32, #tpu.memory_space<vmem>>, vector<1x1x96xf32>
    %12 = vector.shape_cast %11 : vector<1x1x96xf32> to vector<1x96xf32>
    %13 = vector.broadcast %12 : vector<1x96xf32> to vector<32x96xf32>
    %14 = arith.addf %9, %13 : vector<32x96xf32>
    %15 = vector.extract_strided_slice %14 {offsets = [0, 0], sizes = [32, 32], strides = [1, 1]} : vector<32x96xf32> to vector<32x32xf32>
    %16 = vector.shape_cast %15 : vector<32x32xf32> to vector<4x8x32xf32>
    %17 = vector.extract_strided_slice %14 {offsets = [0, 32], sizes = [32, 32], strides = [1, 1]} : vector<32x96xf32> to vector<32x32xf32>
    %18 = vector.shape_cast %17 : vector<32x32xf32> to vector<4x8x32xf32>
    %19 = vector.extract_strided_slice %14 {offsets = [0, 64], sizes = [32, 32], strides = [1, 1]} : vector<32x96xf32> to vector<32x32xf32>
    %20 = vector.shape_cast %19 : vector<32x32xf32> to vector<4x8x32xf32>
    %21 = tpu.iota {dimensions = array<i32: 0>} : vector<8x8xi32>
    %22 = tpu.iota {dimensions = array<i32: 1>} : vector<8x8xi32>
    %23 = arith.cmpi sge, %21, %22 : vector<8x8xi32>
    %24 = vector.extract_strided_slice %16 {offsets = [0, 0, 0], sizes = [4, 8, 16], strides = [1, 1, 1]} : vector<4x8x32xf32> to vector<4x8x16xf32>
    %25 = vector.extract_strided_slice %18 {offsets = [0, 0, 0], sizes = [4, 8, 16], strides = [1, 1, 1]} : vector<4x8x32xf32> to vector<4x8x16xf32>
    "tpu.trace_start"() <{level = 10 : i32, message = "bqd,bkd->bqk"}> : () -> ()
    %cst_7 = arith.constant dense<0.000000e+00> : vector<4x8x8xf32>
    %26 = tpu.matmul %24, %25, %cst_7 {dimension_numbers = #tpu.dot_dimension_numbers<[2], [2], [1], [1], [0, 0, 0, 1, 1, 1], [0], [0]>} : vector<4x8x16xf32>, vector<4x8x16xf32>, vector<4x8x8xf32> -> vector<4x8x8xf32>
    "tpu.trace_stop"() : () -> ()
    %cst_8 = arith.constant 2.500000e-01 : f32
    %27 = vector.broadcast %cst_8 : f32 to vector<4x8x8xf32>
    %28 = arith.mulf %26, %27 : vector<4x8x8xf32>
    %cst_9 = arith.constant -1.000000e+30 : f32
    %29 = vector.shape_cast %23 : vector<8x8xi1> to vector<1x8x8xi1>
    %30 = vector.broadcast %29 : vector<1x8x8xi1> to vector<4x8x8xi1>
    %31 = vector.broadcast %cst_9 : f32 to vector<4x8x8xf32>
    %32 = arith.select %30, %28, %31 : vector<4x8x8xi1>, vector<4x8x8xf32>
    %cst_10 = arith.constant dense<0xFF800000> : vector<4x8xf32>
    %33 = vector.multi_reduction <maximumf>, %32, %cst_10 [2] : vector<4x8x8xf32> to vector<4x8xf32>
    %34 = vector.shape_cast %33 : vector<4x8xf32> to vector<4x8x1xf32>
    %35 = vector.broadcast %34 : vector<4x8x1xf32> to vector<4x8x8xf32>
    %36 = arith.subf %32, %35 : vector<4x8x8xf32>
    %37 = math.exp %36 : vector<4x8x8xf32>
    %cst_11 = arith.constant dense<0.000000e+00> : vector<4x8xf32>
    %38 = vector.multi_reduction <add>, %37, %cst_11 [2] : vector<4x8x8xf32> to vector<4x8xf32>
    %39 = vector.shape_cast %38 : vector<4x8xf32> to vector<4x8x1xf32>
    %40 = tpu.reciprocal %39 {approx = true} : vector<4x8x1xf32> -> vector<4x8x1xf32>
    %41 = vector.broadcast %40 : vector<4x8x1xf32> to vector<4x8x8xf32>
    %42 = arith.mulf %37, %41 : vector<4x8x8xf32>
    %43 = vector.extract_strided_slice %20 {offsets = [0, 0, 0], sizes = [4, 8, 16], strides = [1, 1, 1]} : vector<4x8x32xf32> to vector<4x8x16xf32>
    "tpu.trace_start"() <{level = 10 : i32, message = "bqk,bkd->bqd"}> : () -> ()
    %cst_12 = arith.constant dense<0.000000e+00> : vector<4x8x16xf32>
    %44 = tpu.matmul %42, %43, %cst_12 {dimension_numbers = #tpu.dot_dimension_numbers<[2], [1], [1], [2], [0, 0, 0, 1, 1, 2], [0], [0]>} : vector<4x8x8xf32>, vector<4x8x16xf32>, vector<4x8x16xf32> -> vector<4x8x16xf32>
    "tpu.trace_stop"() : () -> ()
    %45 = vector.extract_strided_slice %16 {offsets = [0, 0, 16], sizes = [4, 8, 16], strides = [1, 1, 1]} : vector<4x8x32xf32> to vector<4x8x16xf32>
    %46 = vector.extract_strided_slice %18 {offsets = [0, 0, 16], sizes = [4, 8, 16], strides = [1, 1, 1]} : vector<4x8x32xf32> to vector<4x8x16xf32>
    "tpu.trace_start"() <{level = 10 : i32, message = "bqd,bkd->bqk"}> : () -> ()
    %cst_13 = arith.constant dense<0.000000e+00> : vector<4x8x8xf32>
    %47 = tpu.matmul %45, %46, %cst_13 {dimension_numbers = #tpu.dot_dimension_numbers<[2], [2], [1], [1], [0, 0, 0, 1, 1, 1], [0], [0]>} : vector<4x8x16xf32>, vector<4x8x16xf32>, vector<4x8x8xf32> -> vector<4x8x8xf32>
    "tpu.trace_stop"() : () -> ()
    %cst_14 = arith.constant 2.500000e-01 : f32
    %48 = vector.broadcast %cst_14 : f32 to vector<4x8x8xf32>
    %49 = arith.mulf %47, %48 : vector<4x8x8xf32>
    %cst_15 = arith.constant -1.000000e+30 : f32
    %50 = vector.shape_cast %23 : vector<8x8xi1> to vector<1x8x8xi1>
    %51 = vector.broadcast %50 : vector<1x8x8xi1> to vector<4x8x8xi1>
    %52 = vector.broadcast %cst_15 : f32 to vector<4x8x8xf32>
    %53 = arith.select %51, %49, %52 : vector<4x8x8xi1>, vector<4x8x8xf32>
    %cst_16 = arith.constant dense<0xFF800000> : vector<4x8xf32>
    %54 = vector.multi_reduction <maximumf>, %53, %cst_16 [2] : vector<4x8x8xf32> to vector<4x8xf32>
    %55 = vector.shape_cast %54 : vector<4x8xf32> to vector<4x8x1xf32>
    %56 = vector.broadcast %55 : vector<4x8x1xf32> to vector<4x8x8xf32>
    %57 = arith.subf %53, %56 : vector<4x8x8xf32>
    %58 = math.exp %57 : vector<4x8x8xf32>
    %cst_17 = arith.constant dense<0.000000e+00> : vector<4x8xf32>
    %59 = vector.multi_reduction <add>, %58, %cst_17 [2] : vector<4x8x8xf32> to vector<4x8xf32>
    %60 = vector.shape_cast %59 : vector<4x8xf32> to vector<4x8x1xf32>
    %61 = tpu.reciprocal %60 {approx = true} : vector<4x8x1xf32> -> vector<4x8x1xf32>
    %62 = vector.broadcast %61 : vector<4x8x1xf32> to vector<4x8x8xf32>
    %63 = arith.mulf %58, %62 : vector<4x8x8xf32>
    %64 = vector.extract_strided_slice %20 {offsets = [0, 0, 16], sizes = [4, 8, 16], strides = [1, 1, 1]} : vector<4x8x32xf32> to vector<4x8x16xf32>
    "tpu.trace_start"() <{level = 10 : i32, message = "bqk,bkd->bqd"}> : () -> ()
    %cst_18 = arith.constant dense<0.000000e+00> : vector<4x8x16xf32>
    %65 = tpu.matmul %63, %64, %cst_18 {dimension_numbers = #tpu.dot_dimension_numbers<[2], [1], [1], [2], [0, 0, 0, 1, 1, 2], [0], [0]>} : vector<4x8x8xf32>, vector<4x8x16xf32>, vector<4x8x16xf32> -> vector<4x8x16xf32>
    "tpu.trace_stop"() : () -> ()
    %66 = tpu.concatenate %44, %65 in 2 : vector<4x8x16xf32>, vector<4x8x16xf32> -> vector<4x8x32xf32>
    %67 = vector.shape_cast %66 : vector<4x8x32xf32> to vector<32x32xf32>
    %68 = arith.truncf %67 : vector<32x32xf32> to vector<32x32xbf16>
    %69 = arith.index_cast %arg1 : i32 to index
    %c0_19 = arith.constant 0 : index
    %c0_20 = arith.constant 0 : index
    %70 = vector.load %arg8[%69, %c0_19, %c0_20] : memref<2x32x32xbf16, #tpu.memory_space<vmem>>, vector<1x32x32xbf16>
    %71 = vector.shape_cast %70 : vector<1x32x32xbf16> to vector<32x32xbf16>
    %cst_21 = arith.constant dense<0.000000e+00> : vector<32x32xf32>
    %72 = tpu.matmul %68, %71, %cst_21 {dimension_numbers = #tpu.dot_dimension_numbers<[1], [0], [0], [1], [0, 0, 1, 1], [], []>} : vector<32x32xbf16>, vector<32x32xbf16>, vector<32x32xf32> -> vector<32x32xf32>
    %73 = arith.index_cast %arg1 : i32 to index
    %c0_22 = arith.constant 0 : index
    %c0_23 = arith.constant 0 : index
    %74 = vector.load %arg9[%73, %c0_22, %c0_23] : memref<2x1x32xf32, #tpu.memory_space<vmem>>, vector<1x1x32xf32>
    %75 = vector.shape_cast %74 : vector<1x1x32xf32> to vector<1x32xf32>
    %76 = vector.broadcast %75 : vector<1x32xf32> to vector<32x32xf32>
    %77 = arith.addf %72, %76 : vector<32x32xf32>
    %78 = arith.index_cast %arg1 : i32 to index
    %c0_24 = arith.constant 0 : index
    %c0_25 = arith.constant 0 : index
    %79 = vector.load %arg10[%78, %c0_24, %c0_25] : memref<2x2x32xf32, #tpu.memory_space<vmem>>, vector<1x2x32xf32>
    %80 = vector.shape_cast %79 : vector<1x2x32xf32> to vector<2x32xf32>
    %81 = arith.addf %4, %77 : vector<32x32xf32>
    %82 = vector.extract_strided_slice %80 {offsets = [0, 0], sizes = [1, 32], strides = [1, 1]} : vector<2x32xf32> to vector<1x32xf32>
    %83 = vector.shape_cast %82 : vector<1x32xf32> to vector<32xf32>
    %84 = vector.extract_strided_slice %80 {offsets = [1, 0], sizes = [1, 32], strides = [1, 1]} : vector<2x32xf32> to vector<1x32xf32>
    %85 = vector.shape_cast %84 : vector<1x32xf32> to vector<32xf32>
    %cst_26 = arith.constant dense<0.000000e+00> : vector<32xf32>
    %86 = vector.multi_reduction <add>, %81, %cst_26 [1] : vector<32x32xf32> to vector<32xf32>
    %87 = vector.shape_cast %86 : vector<32xf32> to vector<32x1xf32>
    %cst_27 = arith.constant 3.200000e+01 : f32
    %88 = vector.broadcast %cst_27 : f32 to vector<32x1xf32>
    %89 = arith.divf %87, %88 : vector<32x1xf32>
    %90 = vector.broadcast %89 : vector<32x1xf32> to vector<32x32xf32>
    %91 = arith.subf %81, %90 : vector<32x32xf32>
    %92 = arith.mulf %91, %91 : vector<32x32xf32>
    %cst_28 = arith.constant dense<0.000000e+00> : vector<32xf32>
    %93 = vector.multi_reduction <add>, %92, %cst_28 [1] : vector<32x32xf32> to vector<32xf32>
    %94 = vector.shape_cast %93 : vector<32xf32> to vector<32x1xf32>
    %cst_29 = arith.constant 3.200000e+01 : f32
    %95 = vector.broadcast %cst_29 : f32 to vector<32x1xf32>
    %96 = arith.divf %94, %95 : vector<32x1xf32>
    %97 = vector.broadcast %89 : vector<32x1xf32> to vector<32x32xf32>
    %98 = arith.subf %81, %97 : vector<32x32xf32>
    %cst_30 = arith.constant 9.99999974E-6 : f32
    %99 = vector.broadcast %cst_30 : f32 to vector<32x1xf32>
    %100 = arith.addf %96, %99 : vector<32x1xf32>
    %101 = math.rsqrt %100 : vector<32x1xf32>
    %102 = vector.broadcast %101 : vector<32x1xf32> to vector<32x32xf32>
    %103 = arith.mulf %98, %102 : vector<32x32xf32>
    %104 = vector.shape_cast %83 : vector<32xf32> to vector<1x32xf32>
    %105 = vector.broadcast %104 : vector<1x32xf32> to vector<32x32xf32>
    %106 = arith.mulf %103, %105 : vector<32x32xf32>
    %107 = vector.shape_cast %85 : vector<32xf32> to vector<1x32xf32>
    %108 = vector.broadcast %107 : vector<1x32xf32> to vector<32x32xf32>
    %109 = arith.addf %106, %108 : vector<32x32xf32>
    %110 = arith.truncf %109 : vector<32x32xf32> to vector<32x32xbf16>
    %111 = arith.index_cast %arg1 : i32 to index
    %c0_31 = arith.constant 0 : index
    %c0_32 = arith.constant 0 : index
    %112 = vector.load %arg11[%111, %c0_31, %c0_32] : memref<2x32x2048xbf16, #tpu.memory_space<vmem>>, vector<1x32x2048xbf16>
    %113 = vector.shape_cast %112 : vector<1x32x2048xbf16> to vector<32x2048xbf16>
    %cst_33 = arith.constant dense<0.000000e+00> : vector<32x2048xf32>
    %114 = tpu.matmul %110, %113, %cst_33 {dimension_numbers = #tpu.dot_dimension_numbers<[1], [0], [0], [1], [0, 0, 1, 1], [], []>} : vector<32x32xbf16>, vector<32x2048xbf16>, vector<32x2048xf32> -> vector<32x2048xf32>
    %115 = arith.index_cast %arg1 : i32 to index
    %c0_34 = arith.constant 0 : index
    %c0_35 = arith.constant 0 : index
    %116 = vector.load %arg12[%115, %c0_34, %c0_35] : memref<2x1x2048xf32, #tpu.memory_space<vmem>>, vector<1x1x2048xf32>
    %117 = vector.shape_cast %116 : vector<1x1x2048xf32> to vector<1x2048xf32>
    %118 = vector.broadcast %117 : vector<1x2048xf32> to vector<32x2048xf32>
    %119 = arith.addf %114, %118 : vector<32x2048xf32>
    %cst_36 = arith.constant 0.000000e+00 : f32
    %120 = vector.broadcast %cst_36 : f32 to vector<32x2048xf32>
    %121 = arith.maximumf %119, %120 : vector<32x2048xf32>
    %122 = arith.truncf %121 : vector<32x2048xf32> to vector<32x2048xbf16>
    %123 = arith.index_cast %arg1 : i32 to index
    %c0_37 = arith.constant 0 : index
    %c0_38 = arith.constant 0 : index
    %124 = vector.load %arg13[%123, %c0_37, %c0_38] : memref<2x2048x32xbf16, #tpu.memory_space<vmem>>, vector<1x2048x32xbf16>
    %125 = vector.shape_cast %124 : vector<1x2048x32xbf16> to vector<2048x32xbf16>
    %cst_39 = arith.constant dense<0.000000e+00> : vector<32x32xf32>
    %126 = tpu.matmul %122, %125, %cst_39 {dimension_numbers = #tpu.dot_dimension_numbers<[1], [0], [0], [1], [0, 0, 1, 1], [], []>} : vector<32x2048xbf16>, vector<2048x32xbf16>, vector<32x32xf32> -> vector<32x32xf32>
    %127 = arith.index_cast %arg1 : i32 to index
    %c0_40 = arith.constant 0 : index
    %c0_41 = arith.constant 0 : index
    %128 = vector.load %arg14[%127, %c0_40, %c0_41] : memref<2x1x32xf32, #tpu.memory_space<vmem>>, vector<1x1x32xf32>
    %129 = vector.shape_cast %128 : vector<1x1x32xf32> to vector<1x32xf32>
    %130 = vector.broadcast %129 : vector<1x32xf32> to vector<32x32xf32>
    %131 = arith.addf %126, %130 : vector<32x32xf32>
    %132 = arith.index_cast %arg1 : i32 to index
    %c0_42 = arith.constant 0 : index
    %c0_43 = arith.constant 0 : index
    %133 = vector.load %arg15[%132, %c0_42, %c0_43] : memref<2x2x32xf32, #tpu.memory_space<vmem>>, vector<1x2x32xf32>
    %134 = vector.shape_cast %133 : vector<1x2x32xf32> to vector<2x32xf32>
    %135 = arith.addf %109, %131 : vector<32x32xf32>
    %136 = vector.extract_strided_slice %134 {offsets = [0, 0], sizes = [1, 32], strides = [1, 1]} : vector<2x32xf32> to vector<1x32xf32>
    %137 = vector.shape_cast %136 : vector<1x32xf32> to vector<32xf32>
    %138 = vector.extract_strided_slice %134 {offsets = [1, 0], sizes = [1, 32], strides = [1, 1]} : vector<2x32xf32> to vector<1x32xf32>
    %139 = vector.shape_cast %138 : vector<1x32xf32> to vector<32xf32>
    %cst_44 = arith.constant dense<0.000000e+00> : vector<32xf32>
    %140 = vector.multi_reduction <add>, %135, %cst_44 [1] : vector<32x32xf32> to vector<32xf32>
    %141 = vector.shape_cast %140 : vector<32xf32> to vector<32x1xf32>
    %cst_45 = arith.constant 3.200000e+01 : f32
    %142 = vector.broadcast %cst_45 : f32 to vector<32x1xf32>
    %143 = arith.divf %141, %142 : vector<32x1xf32>
    %144 = vector.broadcast %143 : vector<32x1xf32> to vector<32x32xf32>
    %145 = arith.subf %135, %144 : vector<32x32xf32>
    %146 = arith.mulf %145, %145 : vector<32x32xf32>
    %cst_46 = arith.constant dense<0.000000e+00> : vector<32xf32>
    %147 = vector.multi_reduction <add>, %146, %cst_46 [1] : vector<32x32xf32> to vector<32xf32>
    %148 = vector.shape_cast %147 : vector<32xf32> to vector<32x1xf32>
    %cst_47 = arith.constant 3.200000e+01 : f32
    %149 = vector.broadcast %cst_47 : f32 to vector<32x1xf32>
    %150 = arith.divf %148, %149 : vector<32x1xf32>
    %151 = vector.broadcast %143 : vector<32x1xf32> to vector<32x32xf32>
    %152 = arith.subf %135, %151 : vector<32x32xf32>
    %cst_48 = arith.constant 9.99999974E-6 : f32
    %153 = vector.broadcast %cst_48 : f32 to vector<32x1xf32>
    %154 = arith.addf %150, %153 : vector<32x1xf32>
    %155 = math.rsqrt %154 : vector<32x1xf32>
    %156 = vector.broadcast %155 : vector<32x1xf32> to vector<32x32xf32>
    %157 = arith.mulf %152, %156 : vector<32x32xf32>
    %158 = vector.shape_cast %137 : vector<32xf32> to vector<1x32xf32>
    %159 = vector.broadcast %158 : vector<1x32xf32> to vector<32x32xf32>
    %160 = arith.mulf %157, %159 : vector<32x32xf32>
    %161 = vector.shape_cast %139 : vector<32xf32> to vector<1x32xf32>
    %162 = vector.broadcast %161 : vector<1x32xf32> to vector<32x32xf32>
    %163 = arith.addf %160, %162 : vector<32x32xf32>
    %164 = vector.shape_cast %163 : vector<32x32xf32> to vector<4x8x32xf32>
    %c0_49 = arith.constant 0 : index
    %c0_50 = arith.constant 0 : index
    %c0_51 = arith.constant 0 : index
    %165 = vector.load %arg16[%c0_49, %c0_50, %c0_51] : memref<4x8x32xf32, #tpu.memory_space<vmem>>, vector<4x8x32xf32>
    tpu.vector_store %arg16[%c0_49, %c0_50, %c0_51], %164 {strides = array<i32>} : memref<4x8x32xf32, #tpu.memory_space<vmem>>, vector<4x8x32xf32>,
    return
  }
  func.func @transform_0(%arg0: i32, %arg1: i32) -> (i32, i32, i32) {
    %c0_i32 = arith.constant 0 : i32
    %c0_i32_0 = arith.constant 0 : i32
    %c0_i32_1 = arith.constant 0 : i32
    return %arg0, %c0_i32, %c0_i32_0 : i32, i32, i32
  }
  func.func @transform_1(%arg0: i32, %arg1: i32) -> (i32, i32, i32) {
    %c0_i32 = arith.constant 0 : i32
    %c0_i32_0 = arith.constant 0 : i32
    %c0_i32_1 = arith.constant 0 : i32
    return %arg0, %c0_i32, %c0_i32_0 : i32, i32, i32
  }
  func.func @transform_2(%arg0: i32, %arg1: i32) -> (i32, i32) {
    %c0_i32 = arith.constant 0 : i32
    %c0_i32_0 = arith.constant 0 : i32
    %c0_i32_1 = arith.constant 0 : i32
    return %c0_i32, %c0_i32_0 : i32, i32
  }
  func.func @transform_3(%arg0: i32, %arg1: i32) -> (i32, i32) {
    %c0_i32 = arith.constant 0 : i32
    %c0_i32_0 = arith.constant 0 : i32
    %c0_i32_1 = arith.constant 0 : i32
    return %c0_i32, %c0_i32_0 : i32, i32
  }
  func.func @transform_4(%arg0: i32, %arg1: i32) -> (i32, i32, i32) {
    %c0_i32 = arith.constant 0 : i32
    %c0_i32_0 = arith.constant 0 : i32
    %c0_i32_1 = arith.constant 0 : i32
    %c0_i32_2 = arith.constant 0 : i32
    return %c0_i32, %c0_i32_0, %c0_i32_1 : i32, i32, i32
  }
  func.func @transform_5(%arg0: i32, %arg1: i32) -> (i32, i32, i32) {
    %c0_i32 = arith.constant 0 : i32
    %c0_i32_0 = arith.constant 0 : i32
    %c0_i32_1 = arith.constant 0 : i32
    %c0_i32_2 = arith.constant 0 : i32
    return %c0_i32, %c0_i32_0, %c0_i32_1 : i32, i32, i32
  }
  func.func @transform_6(%arg0: i32, %arg1: i32) -> (i32, i32, i32) {
    %c0_i32 = arith.constant 0 : i32
    %c0_i32_0 = arith.constant 0 : i32
    %c0_i32_1 = arith.constant 0 : i32
    %c0_i32_2 = arith.constant 0 : i32
    return %c0_i32, %c0_i32_0, %c0_i32_1 : i32, i32, i32
  }
  func.func @transform_7(%arg0: i32, %arg1: i32) -> (i32, i32, i32) {
    %c0_i32 = arith.constant 0 : i32
    %c0_i32_0 = arith.constant 0 : i32
    %c0_i32_1 = arith.constant 0 : i32
    %c0_i32_2 = arith.constant 0 : i32
    return %c0_i32, %c0_i32_0, %c0_i32_1 : i32, i32, i32
  }
  func.func @transform_8(%arg0: i32, %arg1: i32) -> (i32, i32, i32) {
    %c0_i32 = arith.constant 0 : i32
    %c0_i32_0 = arith.constant 0 : i32
    %c0_i32_1 = arith.constant 0 : i32
    %c0_i32_2 = arith.constant 0 : i32
    return %c0_i32, %c0_i32_0, %c0_i32_1 : i32, i32, i32
  }
  func.func @transform_9(%arg0: i32, %arg1: i32) -> (i32, i32, i32) {
    %c0_i32 = arith.constant 0 : i32
    %c0_i32_0 = arith.constant 0 : i32
    %c0_i32_1 = arith.constant 0 : i32
    %c0_i32_2 = arith.constant 0 : i32
    return %c0_i32, %c0_i32_0, %c0_i32_1 : i32, i32, i32
  }
  func.func @transform_10(%arg0: i32, %arg1: i32) -> (i32, i32, i32) {
    %c0_i32 = arith.constant 0 : i32
    %c0_i32_0 = arith.constant 0 : i32
    %c0_i32_1 = arith.constant 0 : i32
    %c0_i32_2 = arith.constant 0 : i32
    return %c0_i32, %c0_i32_0, %c0_i32_1 : i32, i32, i32
  }
  func.func @transform_11(%arg0: i32, %arg1: i32) -> (i32, i32, i32) {
    %c0_i32 = arith.constant 0 : i32
    %c0_i32_0 = arith.constant 0 : i32
    %c0_i32_1 = arith.constant 0 : i32
    %c0_i32_2 = arith.constant 0 : i32
    return %c0_i32, %c0_i32_0, %c0_i32_1 : i32, i32, i32
  }
  func.func @transform_12(%arg0: i32, %arg1: i32) -> (i32, i32, i32) {
    %c0_i32 = arith.constant 0 : i32
    %c0_i32_0 = arith.constant 0 : i32
    %c0_i32_1 = arith.constant 0 : i32
    %c0_i32_2 = arith.constant 0 : i32
    return %c0_i32, %c0_i32_0, %c0_i32_1 : i32, i32, i32
  }
  func.func @transform_13(%arg0: i32, %arg1: i32) -> (i32, i32, i32) {
    %c0_i32 = arith.constant 0 : i32
    %c0_i32_0 = arith.constant 0 : i32
    %c0_i32_1 = arith.constant 0 : i32
    %c0_i32_2 = arith.constant 0 : i32
    return %c0_i32, %c0_i32_0, %c0_i32_1 : i32, i32, i32
  }
  func.func @transform_14(%arg0: i32, %arg1: i32) -> (i32, i32, i32) {
    %c0_i32 = arith.constant 0 : i32
    %c0_i32_0 = arith.constant 0 : i32
    %c0_i32_1 = arith.constant 0 : i32
    return %arg0, %c0_i32, %c0_i32_0 : i32, i32, i32
  }
}

module attributes {stable_mosaic.version = 11 : i64} {
  func.func @attr_scoring_kernel(%arg0: i32, %arg1: memref<2x8x32xf32, #tpu.memory_space<vmem>>, %arg2: memref<32x32xbf16, #tpu.memory_space<vmem>>, %arg3: memref<1x32xf32, #tpu.memory_space<vmem>>, %arg4: memref<32x768xbf16, #tpu.memory_space<vmem>>, %arg5: memref<1x32xf32, #tpu.memory_space<vmem>>, %arg6: memref<768x256xbf16, #tpu.memory_space<vmem>>, %arg7: memref<1x256xf32, #tpu.memory_space<vmem>>, %arg8: memref<2x8x256xf32, #tpu.memory_space<vmem>>) attributes {dimension_semantics = [#tpu.dimension_semantics<parallel>], iteration_bounds = array<i64: 1>, scalar_prefetch = 0 : i64, scratch_operands = 0 : i64, tpu.core_type = #tpu.core_type<tc>, window_params = [{transform_indices = @transform_0, window_bounds = array<i64: 2, 8, 32>}, {pipeline_mode = #tpu.pipeline_mode<synchronous>, transform_indices = @transform_1, window_bounds = array<i64: 32, 32>}, {pipeline_mode = #tpu.pipeline_mode<synchronous>, transform_indices = @transform_2, window_bounds = array<i64: 1, 32>}, {pipeline_mode = #tpu.pipeline_mode<synchronous>, transform_indices = @transform_3, window_bounds = array<i64: 32, 768>}, {pipeline_mode = #tpu.pipeline_mode<synchronous>, transform_indices = @transform_4, window_bounds = array<i64: 1, 32>}, {transform_indices = @transform_5, window_bounds = array<i64: 768, 256>}, {transform_indices = @transform_6, window_bounds = array<i64: 1, 256>}, {transform_indices = @transform_7, window_bounds = array<i64: 2, 8, 256>}]} {
    %c0 = arith.constant 0 : index
    %c0_0 = arith.constant 0 : index
    %c0_1 = arith.constant 0 : index
    %0 = vector.load %arg1[%c0, %c0_0, %c0_1] : memref<2x8x32xf32, #tpu.memory_space<vmem>>, vector<2x8x32xf32>
    %1 = vector.shape_cast %0 : vector<2x8x32xf32> to vector<16x32xf32>
    %2 = arith.truncf %1 : vector<16x32xf32> to vector<16x32xbf16>
    %c0_2 = arith.constant 0 : index
    %c0_3 = arith.constant 0 : index
    %3 = vector.load %arg2[%c0_2, %c0_3] : memref<32x32xbf16, #tpu.memory_space<vmem>>, vector<32x32xbf16>
    %cst = arith.constant dense<0.000000e+00> : vector<16x32xf32>
    %4 = tpu.matmul %2, %3, %cst {dimension_numbers = #tpu.dot_dimension_numbers<[1], [0], [0], [1], [0, 0, 1, 1], [], []>} : vector<16x32xbf16>, vector<32x32xbf16>, vector<16x32xf32> -> vector<16x32xf32>
    %c0_4 = arith.constant 0 : index
    %c0_5 = arith.constant 0 : index
    %5 = vector.load %arg3[%c0_4, %c0_5] : memref<1x32xf32, #tpu.memory_space<vmem>>, vector<1x32xf32>
    %6 = vector.broadcast %5 : vector<1x32xf32> to vector<16x32xf32>
    %7 = arith.addf %4, %6 : vector<16x32xf32>
    %8 = arith.truncf %7 : vector<16x32xf32> to vector<16x32xbf16>
    %c0_6 = arith.constant 0 : index
    %c0_7 = arith.constant 0 : index
    %9 = vector.load %arg4[%c0_6, %c0_7] : memref<32x768xbf16, #tpu.memory_space<vmem>>, vector<32x768xbf16>
    %cst_8 = arith.constant dense<0.000000e+00> : vector<16x768xf32>
    %10 = tpu.matmul %8, %9, %cst_8 {dimension_numbers = #tpu.dot_dimension_numbers<[1], [0], [0], [1], [0, 0, 1, 1], [], []>} : vector<16x32xbf16>, vector<32x768xbf16>, vector<16x768xf32> -> vector<16x768xf32>
    %c0_9 = arith.constant 0 : index
    %c0_10 = arith.constant 0 : index
    %11 = vector.load %arg5[%c0_9, %c0_10] : memref<1x32xf32, #tpu.memory_space<vmem>>, vector<1x32xf32>
    %12 = vector.broadcast %11 : vector<1x32xf32> to vector<16x32xf32>
    %13 = arith.mulf %7, %12 : vector<16x32xf32>
    %cst_11 = arith.constant dense<0.000000e+00> : vector<16xf32>
    %14 = vector.multi_reduction <add>, %13, %cst_11 [1] : vector<16x32xf32> to vector<16xf32>
    %15 = vector.shape_cast %14 : vector<16xf32> to vector<16x1xf32>
    %16 = arith.truncf %10 : vector<16x768xf32> to vector<16x768xbf16>
    %c0_12 = arith.constant 0 : index
    %c0_13 = arith.constant 0 : index
    %17 = vector.load %arg6[%c0_12, %c0_13] : memref<768x256xbf16, #tpu.memory_space<vmem>>, vector<768x256xbf16>
    %cst_14 = arith.constant dense<0.000000e+00> : vector<16x256xf32>
    %18 = tpu.matmul %16, %17, %cst_14 {dimension_numbers = #tpu.dot_dimension_numbers<[1], [0], [0], [1], [0, 0, 1, 1], [], []>} : vector<16x768xbf16>, vector<768x256xbf16>, vector<16x256xf32> -> vector<16x256xf32>
    %19 = vector.broadcast %15 : vector<16x1xf32> to vector<16x256xf32>
    %20 = arith.addf %18, %19 : vector<16x256xf32>
    %c0_15 = arith.constant 0 : index
    %c0_16 = arith.constant 0 : index
    %21 = vector.load %arg7[%c0_15, %c0_16] : memref<1x256xf32, #tpu.memory_space<vmem>>, vector<1x256xf32>
    %22 = vector.broadcast %21 : vector<1x256xf32> to vector<16x256xf32>
    %23 = arith.addf %20, %22 : vector<16x256xf32>
    %24 = vector.shape_cast %23 : vector<16x256xf32> to vector<2x8x256xf32>
    %c0_17 = arith.constant 0 : index
    %c0_18 = arith.constant 0 : index
    %c0_19 = arith.constant 0 : index
    %25 = vector.load %arg8[%c0_17, %c0_18, %c0_19] : memref<2x8x256xf32, #tpu.memory_space<vmem>>, vector<2x8x256xf32>
    tpu.vector_store %arg8[%c0_17, %c0_18, %c0_19], %24 {strides = array<i32>} : memref<2x8x256xf32, #tpu.memory_space<vmem>>, vector<2x8x256xf32>,
    return
  }
  func.func @transform_0(%arg0: i32) -> (i32, i32, i32) {
    %c1_i32 = arith.constant 1 : i32
    %c0_i32 = arith.constant 0 : i32
    %c0_i32_0 = arith.constant 0 : i32
    %c0_i32_1 = arith.constant 0 : i32
    return %c1_i32, %c0_i32, %c0_i32_0 : i32, i32, i32
  }
  func.func @transform_1(%arg0: i32) -> (i32, i32) {
    %c0_i32 = arith.constant 0 : i32
    %c0_i32_0 = arith.constant 0 : i32
    %c0_i32_1 = arith.constant 0 : i32
    return %c0_i32, %c0_i32_0 : i32, i32
  }
  func.func @transform_2(%arg0: i32) -> (i32, i32) {
    %c0_i32 = arith.constant 0 : i32
    %c0_i32_0 = arith.constant 0 : i32
    %c0_i32_1 = arith.constant 0 : i32
    return %c0_i32, %c0_i32_0 : i32, i32
  }
  func.func @transform_3(%arg0: i32) -> (i32, i32) {
    %c0_i32 = arith.constant 0 : i32
    %c0_i32_0 = arith.constant 0 : i32
    %c0_i32_1 = arith.constant 0 : i32
    return %c0_i32, %c0_i32_0 : i32, i32
  }
  func.func @transform_4(%arg0: i32) -> (i32, i32) {
    %c0_i32 = arith.constant 0 : i32
    %c0_i32_0 = arith.constant 0 : i32
    %c0_i32_1 = arith.constant 0 : i32
    return %c0_i32, %c0_i32_0 : i32, i32
  }
  func.func @transform_5(%arg0: i32) -> (i32, i32) {
    %c0_i32 = arith.constant 0 : i32
    %c0_i32_0 = arith.constant 0 : i32
    return %c0_i32, %arg0 : i32, i32
  }
  func.func @transform_6(%arg0: i32) -> (i32, i32) {
    %c0_i32 = arith.constant 0 : i32
    %c0_i32_0 = arith.constant 0 : i32
    return %c0_i32, %arg0 : i32, i32
  }
  func.func @transform_7(%arg0: i32) -> (i32, i32, i32) {
    %c0_i32 = arith.constant 0 : i32
    %c0_i32_0 = arith.constant 0 : i32
    %c0_i32_1 = arith.constant 0 : i32
    return %c0_i32, %c0_i32_0, %arg0 : i32, i32, i32
  }
}

module attributes {stable_mosaic.version = 11 : i64} {
  func.func @expl_scoring_kernel(%arg0: i32, %arg1: memref<2x8x32xf32, #tpu.memory_space<vmem>>, %arg2: memref<32x256xbf16, #tpu.memory_space<vmem>>, %arg3: memref<1x256xf32, #tpu.memory_space<vmem>>, %arg4: memref<2x8x256xf32, #tpu.memory_space<vmem>>) attributes {dimension_semantics = [#tpu.dimension_semantics<parallel>], iteration_bounds = array<i64: 1>, scalar_prefetch = 0 : i64, scratch_operands = 0 : i64, tpu.core_type = #tpu.core_type<tc>, window_params = [{transform_indices = @transform_0, window_bounds = array<i64: 2, 8, 32>}, {transform_indices = @transform_1, window_bounds = array<i64: 32, 256>}, {transform_indices = @transform_2, window_bounds = array<i64: 1, 256>}, {transform_indices = @transform_3, window_bounds = array<i64: 2, 8, 256>}]} {
    %c0 = arith.constant 0 : index
    %c0_0 = arith.constant 0 : index
    %c0_1 = arith.constant 0 : index
    %0 = vector.load %arg1[%c0, %c0_0, %c0_1] : memref<2x8x32xf32, #tpu.memory_space<vmem>>, vector<2x8x32xf32>
    %1 = vector.shape_cast %0 : vector<2x8x32xf32> to vector<16x32xf32>
    %2 = arith.truncf %1 : vector<16x32xf32> to vector<16x32xbf16>
    %c0_2 = arith.constant 0 : index
    %c0_3 = arith.constant 0 : index
    %3 = vector.load %arg2[%c0_2, %c0_3] : memref<32x256xbf16, #tpu.memory_space<vmem>>, vector<32x256xbf16>
    %cst = arith.constant dense<0.000000e+00> : vector<16x256xf32>
    %4 = tpu.matmul %2, %3, %cst {dimension_numbers = #tpu.dot_dimension_numbers<[1], [0], [0], [1], [0, 0, 1, 1], [], []>} : vector<16x32xbf16>, vector<32x256xbf16>, vector<16x256xf32> -> vector<16x256xf32>
    %c0_4 = arith.constant 0 : index
    %c0_5 = arith.constant 0 : index
    %5 = vector.load %arg3[%c0_4, %c0_5] : memref<1x256xf32, #tpu.memory_space<vmem>>, vector<1x256xf32>
    %6 = vector.broadcast %5 : vector<1x256xf32> to vector<16x256xf32>
    %7 = arith.addf %4, %6 : vector<16x256xf32>
    %8 = vector.shape_cast %7 : vector<16x256xf32> to vector<2x8x256xf32>
    %c0_6 = arith.constant 0 : index
    %c0_7 = arith.constant 0 : index
    %c0_8 = arith.constant 0 : index
    %9 = vector.load %arg4[%c0_6, %c0_7, %c0_8] : memref<2x8x256xf32, #tpu.memory_space<vmem>>, vector<2x8x256xf32>
    tpu.vector_store %arg4[%c0_6, %c0_7, %c0_8], %8 {strides = array<i32>} : memref<2x8x256xf32, #tpu.memory_space<vmem>>, vector<2x8x256xf32>,
    return
  }
  func.func @transform_0(%arg0: i32) -> (i32, i32, i32) {
    %c1_i32 = arith.constant 1 : i32
    %c0_i32 = arith.constant 0 : i32
    %c0_i32_0 = arith.constant 0 : i32
    %c0_i32_1 = arith.constant 0 : i32
    return %c1_i32, %c0_i32, %c0_i32_0 : i32, i32, i32
  }
  func.func @transform_1(%arg0: i32) -> (i32, i32) {
    %c0_i32 = arith.constant 0 : i32
    %c0_i32_0 = arith.constant 0 : i32
    return %c0_i32, %arg0 : i32, i32
  }
  func.func @transform_2(%arg0: i32) -> (i32, i32) {
    %c0_i32 = arith.constant 0 : i32
    %c0_i32_0 = arith.constant 0 : i32
    return %c0_i32, %arg0 : i32, i32
  }
  func.func @transform_3(%arg0: i32) -> (i32, i32, i32) {
    %c0_i32 = arith.constant 0 : i32
    %c0_i32_0 = arith.constant 0 : i32
    %c0_i32_1 = arith.constant 0 : i32
    return %c0_i32, %c0_i32_0, %arg0 : i32, i32, i32
  }
}

module attributes {stable_mosaic.version = 11 : i64} {
  func.func @item_scoring_kernel(%arg0: i32, %arg1: memref<2x8x32xf32, #tpu.memory_space<vmem>>, %arg2: memref<2x8x32xf32, #tpu.memory_space<vmem>>, %arg3: memref<32x32xbf16, #tpu.memory_space<vmem>>, %arg4: memref<1x32xf32, #tpu.memory_space<vmem>>, %arg5: memref<32x256xbf16, #tpu.memory_space<vmem>>, %arg6: memref<1x256xf32, #tpu.memory_space<vmem>>, %arg7: memref<2x8x256xf32, #tpu.memory_space<vmem>>, %arg8: memref<2x8x256xf32, #tpu.memory_space<vmem>>) attributes {dimension_semantics = [#tpu.dimension_semantics<parallel>], iteration_bounds = array<i64: 1>, scalar_prefetch = 0 : i64, scratch_operands = 0 : i64, tpu.core_type = #tpu.core_type<tc>, window_params = [{transform_indices = @transform_0, window_bounds = array<i64: 2, 8, 32>}, {transform_indices = @transform_1, window_bounds = array<i64: 2, 8, 32>}, {pipeline_mode = #tpu.pipeline_mode<synchronous>, transform_indices = @transform_2, window_bounds = array<i64: 32, 32>}, {pipeline_mode = #tpu.pipeline_mode<synchronous>, transform_indices = @transform_3, window_bounds = array<i64: 1, 32>}, {transform_indices = @transform_4, window_bounds = array<i64: 32, 256>}, {transform_indices = @transform_5, window_bounds = array<i64: 1, 256>}, {transform_indices = @transform_6, window_bounds = array<i64: 2, 8, 256>}, {transform_indices = @transform_7, window_bounds = array<i64: 2, 8, 256>}]} {
    %c0 = arith.constant 0 : index
    %c0_0 = arith.constant 0 : index
    %0 = vector.load %arg5[%c0, %c0_0] : memref<32x256xbf16, #tpu.memory_space<vmem>>, vector<32x256xbf16>
    %c0_1 = arith.constant 0 : index
    %c0_2 = arith.constant 0 : index
    %1 = vector.load %arg6[%c0_1, %c0_2] : memref<1x256xf32, #tpu.memory_space<vmem>>, vector<1x256xf32>
    %c0_3 = arith.constant 0 : index
    %c0_4 = arith.constant 0 : index
    %c0_5 = arith.constant 0 : index
    %2 = vector.load %arg1[%c0_3, %c0_4, %c0_5] : memref<2x8x32xf32, #tpu.memory_space<vmem>>, vector<2x8x32xf32>
    %3 = vector.shape_cast %2 : vector<2x8x32xf32> to vector<16x32xf32>
    %4 = arith.truncf %3 : vector<16x32xf32> to vector<16x32xbf16>
    %cst = arith.constant dense<0.000000e+00> : vector<16x256xf32>
    %5 = tpu.matmul %4, %0, %cst {dimension_numbers = #tpu.dot_dimension_numbers<[1], [0], [0], [1], [0, 0, 1, 1], [], []>} : vector<16x32xbf16>, vector<32x256xbf16>, vector<16x256xf32> -> vector<16x256xf32>
    %6 = vector.broadcast %1 : vector<1x256xf32> to vector<16x256xf32>
    %7 = arith.addf %5, %6 : vector<16x256xf32>
    %8 = vector.shape_cast %7 : vector<16x256xf32> to vector<2x8x256xf32>
    %c0_6 = arith.constant 0 : index
    %c0_7 = arith.constant 0 : index
    %c0_8 = arith.constant 0 : index
    %9 = vector.load %arg7[%c0_6, %c0_7, %c0_8] : memref<2x8x256xf32, #tpu.memory_space<vmem>>, vector<2x8x256xf32>
    tpu.vector_store %arg7[%c0_6, %c0_7, %c0_8], %8 {strides = array<i32>} : memref<2x8x256xf32, #tpu.memory_space<vmem>>, vector<2x8x256xf32>,
    %c0_9 = arith.constant 0 : index
    %c0_10 = arith.constant 0 : index
    %c0_11 = arith.constant 0 : index
    %10 = vector.load %arg2[%c0_9, %c0_10, %c0_11] : memref<2x8x32xf32, #tpu.memory_space<vmem>>, vector<2x8x32xf32>
    %11 = vector.shape_cast %10 : vector<2x8x32xf32> to vector<16x32xf32>
    %12 = arith.truncf %11 : vector<16x32xf32> to vector<16x32xbf16>
    %c0_12 = arith.constant 0 : index
    %c0_13 = arith.constant 0 : index
    %13 = vector.load %arg3[%c0_12, %c0_13] : memref<32x32xbf16, #tpu.memory_space<vmem>>, vector<32x32xbf16>
    %cst_14 = arith.constant dense<0.000000e+00> : vector<16x32xf32>
    %14 = tpu.matmul %12, %13, %cst_14 {dimension_numbers = #tpu.dot_dimension_numbers<[1], [0], [0], [1], [0, 0, 1, 1], [], []>} : vector<16x32xbf16>, vector<32x32xbf16>, vector<16x32xf32> -> vector<16x32xf32>
    %c0_15 = arith.constant 0 : index
    %c0_16 = arith.constant 0 : index
    %15 = vector.load %arg4[%c0_15, %c0_16] : memref<1x32xf32, #tpu.memory_space<vmem>>, vector<1x32xf32>
    %16 = vector.broadcast %15 : vector<1x32xf32> to vector<16x32xf32>
    %17 = arith.addf %14, %16 : vector<16x32xf32>
    %18 = arith.truncf %17 : vector<16x32xf32> to vector<16x32xbf16>
    %cst_17 = arith.constant dense<0.000000e+00> : vector<16x256xf32>
    %19 = tpu.matmul %18, %0, %cst_17 {dimension_numbers = #tpu.dot_dimension_numbers<[1], [0], [0], [1], [0, 0, 1, 1], [], []>} : vector<16x32xbf16>, vector<32x256xbf16>, vector<16x256xf32> -> vector<16x256xf32>
    %20 = vector.broadcast %1 : vector<1x256xf32> to vector<16x256xf32>
    %21 = arith.addf %19, %20 : vector<16x256xf32>
    %22 = vector.shape_cast %21 : vector<16x256xf32> to vector<2x8x256xf32>
    %c0_18 = arith.constant 0 : index
    %c0_19 = arith.constant 0 : index
    %c0_20 = arith.constant 0 : index
    %23 = vector.load %arg8[%c0_18, %c0_19, %c0_20] : memref<2x8x256xf32, #tpu.memory_space<vmem>>, vector<2x8x256xf32>
    tpu.vector_store %arg8[%c0_18, %c0_19, %c0_20], %22 {strides = array<i32>} : memref<2x8x256xf32, #tpu.memory_space<vmem>>, vector<2x8x256xf32>,
    return
  }
  func.func @transform_0(%arg0: i32) -> (i32, i32, i32) {
    %c0_i32 = arith.constant 0 : i32
    %c0_i32_0 = arith.constant 0 : i32
    %c0_i32_1 = arith.constant 0 : i32
    %c0_i32_2 = arith.constant 0 : i32
    return %c0_i32, %c0_i32_0, %c0_i32_1 : i32, i32, i32
  }
  func.func @transform_1(%arg0: i32) -> (i32, i32, i32) {
    %c1_i32 = arith.constant 1 : i32
    %c0_i32 = arith.constant 0 : i32
    %c0_i32_0 = arith.constant 0 : i32
    %c0_i32_1 = arith.constant 0 : i32
    return %c1_i32, %c0_i32, %c0_i32_0 : i32, i32, i32
  }
  func.func @transform_2(%arg0: i32) -> (i32, i32) {
    %c0_i32 = arith.constant 0 : i32
    %c0_i32_0 = arith.constant 0 : i32
    %c0_i32_1 = arith.constant 0 : i32
    return %c0_i32, %c0_i32_0 : i32, i32
  }
  func.func @transform_3(%arg0: i32) -> (i32, i32) {
    %c0_i32 = arith.constant 0 : i32
    %c0_i32_0 = arith.constant 0 : i32
    %c0_i32_1 = arith.constant 0 : i32
    return %c0_i32, %c0_i32_0 : i32, i32
  }
  func.func @transform_4(%arg0: i32) -> (i32, i32) {
    %c0_i32 = arith.constant 0 : i32
    %c0_i32_0 = arith.constant 0 : i32
    return %c0_i32, %arg0 : i32, i32
  }
  func.func @transform_5(%arg0: i32) -> (i32, i32) {
    %c0_i32 = arith.constant 0 : i32
    %c0_i32_0 = arith.constant 0 : i32
    return %c0_i32, %arg0 : i32, i32
  }
  func.func @transform_6(%arg0: i32) -> (i32, i32, i32) {
    %c0_i32 = arith.constant 0 : i32
    %c0_i32_0 = arith.constant 0 : i32
    %c0_i32_1 = arith.constant 0 : i32
    return %c0_i32, %c0_i32_0, %arg0 : i32, i32, i32
  }
  func.func @transform_7(%arg0: i32) -> (i32, i32, i32) {
    %c0_i32 = arith.constant 0 : i32
    %c0_i32_0 = arith.constant 0 : i32
    %c0_i32_1 = arith.constant 0 : i32
    return %c0_i32, %c0_i32_0, %arg0 : i32, i32, i32
  }
}

</mosaic_0001>

<llo_original>
// kernel: scemima_forward.6
$region0: #{scemima_forward.6}
  #allocation0 [shape = 'u32[]', space=smem, size = 0x4, offset = 0x4, fixed_abs, tag = 'smem constant byte address 0x4 - core index']
  #allocation1 [shape = 'u32[72,128]{1,0:T(1,128)}', space=vmem, size = 0x9000, scoped, tag = 'internal scratch']
  %s0 = inlined_call_operand.vmem [shape: f32[4,8,32], index: 0, kind: input, shape index: {}]
  %s1 = inlined_call_operand.vmem [shape: bf16[32,256], index: 1, kind: input, shape index: {}]
  %s2 = inlined_call_operand.vmem [shape: f32[1,256], index: 2, kind: input, shape index: {}]
  %s3 = inlined_call_operand.vmem [shape: f32[2,8,256], index: 3, kind: output, shape index: {}]
  %s4 = sld [smem:[#allocation0]]
  $region22: #{scemima_forward.6} parent=0
    _
  %s6 = ssub.s32 1, %s4
  %s7 = scalar_select 0, %s6, %s4
  // Predicated region
  $region2: #{scemima_forward.6} parent=0 // pred_check
    _
  $region3: #{scemima_forward.6} parent=0 // pred_check_branch
    %9 = sbr.rel (0) target = $region5
  $region4: #{scemima_forward.6} parent=0 // pred_region
    %s10 = scalar_lea.vmem %s0, 16
  $region5: #{scemima_forward.6} parent=0 // pred_fallthru
    _
  // Predicated region
  $region6: #{scemima_forward.6} parent=0 // pred_check
    _
  $region7: #{scemima_forward.6} parent=0 // pred_check_branch
    %12 = sbr.rel (0) target = $region9
  $region8: #{scemima_forward.6} parent=0 // pred_region
    _
  $region9: #{scemima_forward.6} parent=0 // pred_fallthru
    _
  // Predicated region
  $region10: #{scemima_forward.6} parent=0 // pred_check
    _
  $region11: #{scemima_forward.6} parent=0 // pred_check_branch
    %14 = sbr.rel (0) target = $region13
  $region12: #{scemima_forward.6} parent=0 // pred_region
    _
  $region13: #{scemima_forward.6} parent=0 // pred_fallthru
    _
  %s15 = scalar_lea.vmem %s0, 16
  %s16 = scalar_lea.vmem %s0, 16
  %v18 = vld [vmem:[%s16] sm:$0xff]
  %v19 = vld [vmem:[%s16 + $0x8] sm:$0xff]
  %v20 = vpack.c.bf16 %v19, %v18
  %v21 = vld [vmem:[%s1] sm:$0xff]
  %v22 = vld [vmem:[%s1 + $0x8] sm:$0xff]
  %v23 = vld [vmem:[%s1 + $0x10] sm:$0xff]
  %v24 = vld [vmem:[%s1 + $0x18] sm:$0xff]
  %v25 = vld [vmem:[%s2] sm:$0x3]
  %v27 = vperm.slane %v25, 0
  %v28 = vperm.slane %v25, 1
  %v35 = vunpack.c.l.b16 %v21
  %v36 = vunpack.c.h.b16 %v21
  %v37 = vunpack.c.l.b16 %v22
  %v38 = vunpack.c.h.b16 %v22
  %v39 = vunpack.c.l.b16 %v23
  %v40 = vunpack.c.h.b16 %v23
  %v41 = vunpack.c.l.b16 %v24
  %v42 = vunpack.c.h.b16 %v24
  %v43 = vpack.c.b16 %v37, %v35
  %v44 = vpack.c.b16 %v38, %v36
  %v45 = vpack.c.b16 %v41, %v39
  %v46 = vpack.c.b16 %v42, %v40
  %vm51 = vcmask 261120
  %v53 = vsel %vm51, %v20, 0
  %55 = vmatpush.bf16.msra.mxu0 0
  %56 = vmatpush.bf16.msra.mxu0 0
  %57 = vmatpush.bf16.msra.mxu0 0
  %58 = vmatpush.bf16.msra.mxu0 0
  %59 = vmatpush.bf16.msra.mxu0 0
  %60 = vmatpush.bf16.msra.mxu0 0
  %61 = vmatpush.bf16.msra.mxu0 %v45
  %62 = vmatpush.bf16.msra.mxu0 %v43
  %63 = vmatmul.bf16.gmra.mxu0 %v53
  %v64 = vpop.f32.mrf.mxu0
  %v65 = vadd.f32 %v27, %v64
  %v66 = vpop.f32.mrf.mxu0
  %v67 = vadd.f32 %v27, %v66
  %68 = vdwg.mxu0
  %69 = vmatpush.bf16.msra.mxu0 0
  %70 = vmatpush.bf16.msra.mxu0 0
  %71 = vmatpush.bf16.msra.mxu0 0
  %72 = vmatpush.bf16.msra.mxu0 0
  %73 = vmatpush.bf16.msra.mxu0 0
  %74 = vmatpush.bf16.msra.mxu0 0
  %75 = vmatpush.bf16.msra.mxu0 %v46
  %76 = vmatpush.bf16.msra.mxu0 %v44
  %77 = vmatmul.bf16.gmra.mxu0 %v53
  %v78 = vpop.f32.mrf.mxu0
  %v79 = vadd.f32 %v28, %v78
  %v80 = vpop.f32.mrf.mxu0
  %v81 = vadd.f32 %v28, %v80
  %82 = vdwg.mxu0
  %83 = vst [vmem:[%s3] sm:$0xff] %v65
  %84 = vst [vmem:[%s3 + $0x8] sm:$0xff] %v79
  %85 = vst [vmem:[%s3 + $0x10] sm:$0xff] %v67
  %86 = vst [vmem:[%s3 + $0x18] sm:$0xff] %v81
  // Predicated region
  $region14: #{scemima_forward.6} parent=0 // pred_check
    _
  $region15: #{scemima_forward.6} parent=0 // pred_check_branch
    %88 = sbr.rel (0) target = $region17
  $region16: #{scemima_forward.6} parent=0 // pred_region
    _
  $region17: #{scemima_forward.6} parent=0 // pred_fallthru
    _
  // Predicated region
  $region18: #{scemima_forward.6} parent=0 // pred_check
    _
  $region19: #{scemima_forward.6} parent=0 // pred_check_branch
    %90 = sbr.rel (0) target = $region21
  $region20: #{scemima_forward.6} parent=0 // pred_region
    _
  $region21: #{scemima_forward.6} parent=0 // pred_fallthru
    _

// kernel: scemima_forward.7
$region0: #{scemima_forward.7}
  #allocation0 [shape = 'u32[]', space=smem, size = 0x4, offset = 0x4, fixed_abs, tag = 'smem constant byte address 0x4 - core index']
  #allocation1 [shape = 'u32[72,128]{1,0:T(1,128)}', space=vmem, size = 0x9000, scoped, tag = 'internal scratch']
  %s0 = inlined_call_operand.vmem [shape: f32[4,8,32], index: 0, kind: input, shape index: {}]
  %s1 = inlined_call_operand.vmem [shape: bf16[32,32], index: 1, kind: input, shape index: {}]
  %s2 = inlined_call_operand.vmem [shape: f32[1,32], index: 2, kind: input, shape index: {}]
  %s3 = inlined_call_operand.vmem [shape: bf16[32,768], index: 3, kind: input, shape index: {}]
  %s4 = inlined_call_operand.vmem [shape: f32[1,32], index: 4, kind: input, shape index: {}]
  %s5 = inlined_call_operand.vmem [shape: bf16[768,256], index: 5, kind: input, shape index: {}]
  %s6 = inlined_call_operand.vmem [shape: f32[1,256], index: 6, kind: input, shape index: {}]
  %s7 = inlined_call_operand.vmem [shape: f32[2,8,256], index: 7, kind: output, shape index: {}]
  %s8 = sld [smem:[#allocation0]]
  $region38: #{scemima_forward.7} parent=0
    _
  %s10 = ssub.s32 1, %s8
  %s11 = scalar_select 0, %s10, %s8
  // Predicated region
  $region2: #{scemima_forward.7} parent=0 // pred_check
    _
  $region3: #{scemima_forward.7} parent=0 // pred_check_branch
    %13 = sbr.rel (0) target = $region5
  $region4: #{scemima_forward.7} parent=0 // pred_region
    %s14 = scalar_lea.vmem %s0, 16
  $region5: #{scemima_forward.7} parent=0 // pred_fallthru
    _
  // Predicated region
  $region6: #{scemima_forward.7} parent=0 // pred_check
    _
  $region7: #{scemima_forward.7} parent=0 // pred_check_branch
    %16 = sbr.rel (0) target = $region9
  $region8: #{scemima_forward.7} parent=0 // pred_region
    _
  $region9: #{scemima_forward.7} parent=0 // pred_fallthru
    _
  // Predicated region
  $region10: #{scemima_forward.7} parent=0 // pred_check
    _
  $region11: #{scemima_forward.7} parent=0 // pred_check_branch
    %18 = sbr.rel (0) target = $region13
  $region12: #{scemima_forward.7} parent=0 // pred_region
    _
  $region13: #{scemima_forward.7} parent=0 // pred_fallthru
    _
  // Predicated region
  $region14: #{scemima_forward.7} parent=0 // pred_check
    _
  $region15: #{scemima_forward.7} parent=0 // pred_check_branch
    %20 = sbr.rel (0) target = $region17
  $region16: #{scemima_forward.7} parent=0 // pred_region
    _
  $region17: #{scemima_forward.7} parent=0 // pred_fallthru
    _
  // Predicated region
  $region18: #{scemima_forward.7} parent=0 // pred_check
    _
  $region19: #{scemima_forward.7} parent=0 // pred_check_branch
    %22 = sbr.rel (0) target = $region21
  $region20: #{scemima_forward.7} parent=0 // pred_region
    _
  $region21: #{scemima_forward.7} parent=0 // pred_fallthru
    _
  // Predicated region
  $region22: #{scemima_forward.7} parent=0 // pred_check
    _
  $region23: #{scemima_forward.7} parent=0 // pred_check_branch
    %24 = sbr.rel (0) target = $region25
  $region24: #{scemima_forward.7} parent=0 // pred_region
    _
  $region25: #{scemima_forward.7} parent=0 // pred_fallthru
    _
  // Predicated region
  $region26: #{scemima_forward.7} parent=0 // pred_check
    _
  $region27: #{scemima_forward.7} parent=0 // pred_check_branch
    %26 = sbr.rel (0) target = $region29
  $region28: #{scemima_forward.7} parent=0 // pred_region
    _
  $region29: #{scemima_forward.7} parent=0 // pred_fallthru
    _
  %s27 = scalar_lea.vmem %s0, 16
  %s28 = scalar_lea.vmem %s0, 16
  %v30 = vld [vmem:[%s28] sm:$0xff]
  %v31 = vld [vmem:[%s28 + $0x8] sm:$0xff]
  %v32 = vpack.c.bf16 %v31, %v30
  %v33 = vld [vmem:[%s1] sm:$0xf]
  %v34 = vld [vmem:[%s1 + $0x4] sm:$0xf]
  %v35 = vld [vmem:[%s1 + $0x8] sm:$0xf]
  %v36 = vld [vmem:[%s1 + $0xc] sm:$0xf]
  %v37 = vld [vmem:[%s2] sm:$0x1]
  %v39 = vperm.slane %v37, 0
  %v45 = vunpack.c.l.b16 %v33
  %v46 = vunpack.c.l.b16 %v34
  %v47 = vunpack.c.l.b16 %v35
  %v48 = vunpack.c.l.b16 %v36
  %v49 = vpack.c.b16 %v46, %v45
  %v50 = vpack.c.b16 %v48, %v47
  %vm53 = vcmask 261120
  %v55 = vsel %vm53, %v32, 0
  %57 = vmatpush.bf16.msra.mxu0 0
  %58 = vmatpush.bf16.msra.mxu0 0
  %59 = vmatpush.bf16.msra.mxu0 0
  %60 = vmatpush.bf16.msra.mxu0 0
  %61 = vmatpush.bf16.msra.mxu0 0
  %62 = vmatpush.bf16.msra.mxu0 0
  %63 = vmatpush.bf16.msra.mxu0 %v50
  %64 = vmatpush.bf16.msra.mxu0 %v49
  %65 = vmatmul.bf16.gmra.mxu0 %v55
  %v66 = vpop.f32.mrf.mxu0
  %v67 = vadd.f32 %v39, %v66
  %v68 = vpop.f32.mrf.mxu0
  %v69 = vadd.f32 %v39, %v68
  %70 = vdwg.mxu0
  %v71 = vpack.c.bf16 %v69, %v67
  %v72 = vld [vmem:[%s3] sm:$0xff]
  %v73 = vld [vmem:[%s3 + $0x8] sm:$0xff]
  %v74 = vld [vmem:[%s3 + $0x10] sm:$0xff]
  %v75 = vld [vmem:[%s3 + $0x18] sm:$0xff]
  %v76 = vld [vmem:[%s3 + $0x20] sm:$0xff]
  %v77 = vld [vmem:[%s3 + $0x28] sm:$0xff]
  %v78 = vld [vmem:[%s3 + $0x30] sm:$0xff]
  %v79 = vld [vmem:[%s3 + $0x38] sm:$0xff]
  %v80 = vld [vmem:[%s3 + $0x40] sm:$0xff]
  %v81 = vld [vmem:[%s3 + $0x48] sm:$0xff]
  %v82 = vld [vmem:[%s3 + $0x50] sm:$0xff]
  %v83 = vld [vmem:[%s3 + $0x58] sm:$0xff]
  %v96 = vunpack.c.l.b16 %v72
  %v97 = vunpack.c.h.b16 %v72
  %v98 = vunpack.c.l.b16 %v73
  %v99 = vunpack.c.h.b16 %v73
  %v100 = vunpack.c.l.b16 %v74
  %v101 = vunpack.c.h.b16 %v74
  %v102 = vunpack.c.l.b16 %v75
  %v103 = vunpack.c.h.b16 %v75
  %v104 = vunpack.c.l.b16 %v76
  %v105 = vunpack.c.h.b16 %v76
  %v106 = vunpack.c.l.b16 %v77
  %v107 = vunpack.c.h.b16 %v77
  %v108 = vunpack.c.l.b16 %v78
  %v109 = vunpack.c.h.b16 %v78
  %v110 = vunpack.c.l.b16 %v79
  %v111 = vunpack.c.h.b16 %v79
  %v112 = vunpack.c.l.b16 %v80
  %v113 = vunpack.c.h.b16 %v80
  %v114 = vunpack.c.l.b16 %v81
  %v115 = vunpack.c.h.b16 %v81
  %v116 = vunpack.c.l.b16 %v82
  %v117 = vunpack.c.h.b16 %v82
  %v118 = vunpack.c.l.b16 %v83
  %v119 = vunpack.c.h.b16 %v83
  %v120 = vpack.c.b16 %v102, %v96
  %v121 = vpack.c.b16 %v103, %v97
  %v122 = vpack.c.b16 %v104, %v98
  %v123 = vpack.c.b16 %v105, %v99
  %v124 = vpack.c.b16 %v106, %v100
  %v125 = vpack.c.b16 %v107, %v101
  %v126 = vpack.c.b16 %v114, %v108
  %v127 = vpack.c.b16 %v115, %v109
  %v128 = vpack.c.b16 %v116, %v110
  %v129 = vpack.c.b16 %v117, %v111
  %v130 = vpack.c.b16 %v118, %v112
  %v131 = vpack.c.b16 %v119, %v113
  %v145 = vsel %vm53, %v71, 0
  %147 = vmatpush.bf16.msra.mxu0 0
  %148 = vmatpush.bf16.msra.mxu0 0
  %149 = vmatpush.bf16.msra.mxu0 0
  %150 = vmatpush.bf16.msra.mxu0 0
  %151 = vmatpush.bf16.msra.mxu0 0
  %152 = vmatpush.bf16.msra.mxu0 0
  %153 = vmatpush.bf16.msra.mxu0 %v126
  %154 = vmatpush.bf16.msra.mxu0 %v120
  %155 = vmatmul.bf16.gmra.mxu0 %v145
  %v156 = vpop.f32.mrf.mxu0
  %v157 = vadd.f32 0.0, %v156
  %v158 = vpop.f32.mrf.mxu0
  %v159 = vadd.f32 0.0, %v158
  %160 = vdwg.mxu0
  %161 = vmatpush.bf16.msra.mxu0 0
  %162 = vmatpush.bf16.msra.mxu0 0
  %163 = vmatpush.bf16.msra.mxu0 0
  %164 = vmatpush.bf16.msra.mxu0 0
  %165 = vmatpush.bf16.msra.mxu0 0
  %166 = vmatpush.bf16.msra.mxu0 0
  %167 = vmatpush.bf16.msra.mxu0 %v127
  %168 = vmatpush.bf16.msra.mxu0 %v121
  %169 = vmatmul.bf16.gmra.mxu0 %v145
  %v170 = vpop.f32.mrf.mxu0
  %v171 = vadd.f32 0.0, %v170
  %v172 = vpop.f32.mrf.mxu0
  %v173 = vadd.f32 0.0, %v172
  %174 = vdwg.mxu0
  %175 = vmatpush.bf16.msra.mxu0 0
  %176 = vmatpush.bf16.msra.mxu0 0
  %177 = vmatpush.bf16.msra.mxu0 0
  %178 = vmatpush.bf16.msra.mxu0 0
  %179 = vmatpush.bf16.msra.mxu0 0
  %180 = vmatpush.bf16.msra.mxu0 0
  %181 = vmatpush.bf16.msra.mxu0 %v128
  %182 = vmatpush.bf16.msra.mxu0 %v122
  %183 = vmatmul.bf16.gmra.mxu0 %v145
  %v184 = vpop.f32.mrf.mxu0
  %v185 = vadd.f32 0.0, %v184
  %v186 = vpop.f32.mrf.mxu0
  %v187 = vadd.f32 0.0, %v186
  %188 = vdwg.mxu0
  %189 = vmatpush.bf16.msra.mxu0 0
  %190 = vmatpush.bf16.msra.mxu0 0
  %191 = vmatpush.bf16.msra.mxu0 0
  %192 = vmatpush.bf16.msra.mxu0 0
  %193 = vmatpush.bf16.msra.mxu0 0
  %194 = vmatpush.bf16.msra.mxu0 0
  %195 = vmatpush.bf16.msra.mxu0 %v129
  %196 = vmatpush.bf16.msra.mxu0 %v123
  %197 = vmatmul.bf16.gmra.mxu0 %v145
  %v198 = vpop.f32.mrf.mxu0
  %v199 = vadd.f32 0.0, %v198
  %v200 = vpop.f32.mrf.mxu0
  %v201 = vadd.f32 0.0, %v200
  %202 = vdwg.mxu0
  %203 = vmatpush.bf16.msra.mxu0 0
  %204 = vmatpush.bf16.msra.mxu0 0
  %205 = vmatpush.bf16.msra.mxu0 0
  %206 = vmatpush.bf16.msra.mxu0 0
  %207 = vmatpush.bf16.msra.mxu0 0
  %208 = vmatpush.bf16.msra.mxu0 0
  %209 = vmatpush.bf16.msra.mxu0 %v130
  %210 = vmatpush.bf16.msra.mxu0 %v124
  %211 = vmatmul.bf16.gmra.mxu0 %v145
  %v212 = vpop.f32.mrf.mxu0
  %v213 = vadd.f32 0.0, %v212
  %v214 = vpop.f32.mrf.mxu0
  %v215 = vadd.f32 0.0, %v214
  %216 = vdwg.mxu0
  %217 = vmatpush.bf16.msra.mxu0 0
  %218 = vmatpush.bf16.msra.mxu0 0
  %219 = vmatpush.bf16.msra.mxu0 0
  %220 = vmatpush.bf16.msra.mxu0 0
  %221 = vmatpush.bf16.msra.mxu0 0
  %222 = vmatpush.bf16.msra.mxu0 0
  %223 = vmatpush.bf16.msra.mxu0 %v131
  %224 = vmatpush.bf16.msra.mxu0 %v125
  %225 = vmatmul.bf16.gmra.mxu0 %v145
  %v226 = vpop.f32.mrf.mxu0
  %v227 = vadd.f32 0.0, %v226
  %v228 = vpop.f32.mrf.mxu0
  %v229 = vadd.f32 0.0, %v228
  %230 = vdwg.mxu0
  %v231 = vld [vmem:[%s4] sm:$0x1]
  %v233 = vperm.slane %v231, 0
  %v235 = vmul.f32 %v67, %v233
  %v236 = vmul.f32 %v69, %v233
  %v237 = vsel %vm53, %v235, 0.0
  %238 = vadd.xlane.f32.xlu0 %v237
  %v239 = vpop.xlane.xlu0 %238
  %v240 = vsel %vm53, %v236, 0.0
  %241 = vadd.xlane.f32.xlu0 %v240
  %v242 = vpop.xlane.xlu0 %241
  %v243 = vpack.c.bf16 %v159, %v157
  %v244 = vpack.c.bf16 %v173, %v171
  %v245 = vpack.c.bf16 %v187, %v185
  %v246 = vpack.c.bf16 %v201, %v199
  %v247 = vpack.c.bf16 %v215, %v213
  %v248 = vpack.c.bf16 %v229, %v227
  %v249 = vld [vmem:[%s5] sm:$0xff]
  %v250 = vld [vmem:[%s5 + $0x8] sm:$0xff]
  %v251 = vld [vmem:[%s5 + $0x10] sm:$0xff]
  %v252 = vld [vmem:[%s5 + $0x18] sm:$0xff]
  %v253 = vld [vmem:[%s5 + $0x20] sm:$0xff]
  %v254 = vld [vmem:[%s5 + $0x28] sm:$0xff]
  %v255 = vld [vmem:[%s5 + $0x30] sm:$0xff]
  %v256 = vld [vmem:[%s5 + $0x38] sm:$0xff]
  %v257 = vld [vmem:[%s5 + $0x40] sm:$0xff]
  %v258 = vld [vmem:[%s5 + $0x48] sm:$0xff]
  %v259 = vld [vmem:[%s5 + $0x50] sm:$0xff]
  %v260 = vld [vmem:[%s5 + $0x58] sm:$0xff]
  %v261 = vld [vmem:[%s5 + $0x60] sm:$0xff]
  %v262 = vld [vmem:[%s5 + $0x68] sm:$0xff]
  %v263 = vld [vmem:[%s5 + $0x70] sm:$0xff]
  %v264 = vld [vmem:[%s5 + $0x78] sm:$0xff]
  %v265 = vld [vmem:[%s5 + $0x80] sm:$0xff]
  %v266 = vld [vmem:[%s5 + $0x88] sm:$0xff]
  %v267 = vld [vmem:[%s5 + $0x90] sm:$0xff]
  %v268 = vld [vmem:[%s5 + $0x98] sm:$0xff]
  %v269 = vld [vmem:[%s5 + $0xa0] sm:$0xff]
  %v270 = vld [vmem:[%s5 + $0xa8] sm:$0xff]
  %v271 = vld [vmem:[%s5 + $0xb0] sm:$0xff]
  %v272 = vld [vmem:[%s5 + $0xb8] sm:$0xff]
  %v273 = vld [vmem:[%s5 + $0xc0] sm:$0xff]
  %v274 = vld [vmem:[%s5 + $0xc8] sm:$0xff]
  %v275 = vld [vmem:[%s5 + $0xd0] sm:$0xff]
  %v276 = vld [vmem:[%s5 + $0xd8] sm:$0xff]
  %v277 = vld [vmem:[%s5 + $0xe0] sm:$0xff]
  %v278 = vld [vmem:[%s5 + $0xe8] sm:$0xff]
  %v279 = vld [vmem:[%s5 + $0xf0] sm:$0xff]
  %v280 = vld [vmem:[%s5 + $0xf8] sm:$0xff]
  %v281 = vld [vmem:[%s5 + $0x100] sm:$0xff]
  %v282 = vld [vmem:[%s5 + $0x108] sm:$0xff]
  %v283 = vld [vmem:[%s5 + $0x110] sm:$0xff]
  %v284 = vld [vmem:[%s5 + $0x118] sm:$0xff]
  %v285 = vld [vmem:[%s5 + $0x120] sm:$0xff]
  %v286 = vld [vmem:[%s5 + $0x128] sm:$0xff]
  %v287 = vld [vmem:[%s5 + $0x130] sm:$0xff]
  %v288 = vld [vmem:[%s5 + $0x138] sm:$0xff]
  %v289 = vld [vmem:[%s5 + $0x140] sm:$0xff]
  %v290 = vld [vmem:[%s5 + $0x148] sm:$0xff]
  %v291 = vld [vmem:[%s5 + $0x150] sm:$0xff]
  %v292 = vld [vmem:[%s5 + $0x158] sm:$0xff]
  %v293 = vld [vmem:[%s5 + $0x160] sm:$0xff]
  %v294 = vld [vmem:[%s5 + $0x168] sm:$0xff]
  %v295 = vld [vmem:[%s5 + $0x170] sm:$0xff]
  %v296 = vld [vmem:[%s5 + $0x178] sm:$0xff]
  %v297 = vld [vmem:[%s5 + $0x180] sm:$0xff]
  %v298 = vld [vmem:[%s5 + $0x188] sm:$0xff]
  %v299 = vld [vmem:[%s5 + $0x190] sm:$0xff]
  %v300 = vld [vmem:[%s5 + $0x198] sm:$0xff]
  %v301 = vld [vmem:[%s5 + $0x1a0] sm:$0xff]
  %v302 = vld [vmem:[%s5 + $0x1a8] sm:$0xff]
  %v303 = vld [vmem:[%s5 + $0x1b0] sm:$0xff]
  %v304 = vld [vmem:[%s5 + $0x1b8] sm:$0xff]
  %v305 = vld [vmem:[%s5 + $0x1c0] sm:$0xff]
  %v306 = vld [vmem:[%s5 + $0x1c8] sm:$0xff]
  %v307 = vld [vmem:[%s5 + $0x1d0] sm:$0xff]
  %v308 = vld [vmem:[%s5 + $0x1d8] sm:$0xff]
  %v309 = vld [vmem:[%s5 + $0x1e0] sm:$0xff]
  %v310 = vld [vmem:[%s5 + $0x1e8] sm:$0xff]
  %v311 = vld [vmem:[%s5 + $0x1f0] sm:$0xff]
  %v312 = vld [vmem:[%s5 + $0x1f8] sm:$0xff]
  %v313 = vld [vmem:[%s5 + $0x200] sm:$0xff]
  %v314 = vld [vmem:[%s5 + $0x208] sm:$0xff]
  %v315 = vld [vmem:[%s5 + $0x210] sm:$0xff]
  %v316 = vld [vmem:[%s5 + $0x218] sm:$0xff]
  %v317 = vld [vmem:[%s5 + $0x220] sm:$0xff]
  %v318 = vld [vmem:[%s5 + $0x228] sm:$0xff]
  %v319 = vld [vmem:[%s5 + $0x230] sm:$0xff]
  %v320 = vld [vmem:[%s5 + $0x238] sm:$0xff]
  %v321 = vld [vmem:[%s5 + $0x240] sm:$0xff]
  %v322 = vld [vmem:[%s5 + $0x248] sm:$0xff]
  %v323 = vld [vmem:[%s5 + $0x250] sm:$0xff]
  %v324 = vld [vmem:[%s5 + $0x258] sm:$0xff]
  %v325 = vld [vmem:[%s5 + $0x260] sm:$0xff]
  %v326 = vld [vmem:[%s5 + $0x268] sm:$0xff]
  %v327 = vld [vmem:[%s5 + $0x270] sm:$0xff]
  %v328 = vld [vmem:[%s5 + $0x278] sm:$0xff]
  %v329 = vld [vmem:[%s5 + $0x280] sm:$0xff]
  %v330 = vld [vmem:[%s5 + $0x288] sm:$0xff]
  %v331 = vld [vmem:[%s5 + $0x290] sm:$0xff]
  %v332 = vld [vmem:[%s5 + $0x298] sm:$0xff]
  %v333 = vld [vmem:[%s5 + $0x2a0] sm:$0xff]
  %v334 = vld [vmem:[%s5 + $0x2a8] sm:$0xff]
  %v335 = vld [vmem:[%s5 + $0x2b0] sm:$0xff]
  %v336 = vld [vmem:[%s5 + $0x2b8] sm:$0xff]
  %v337 = vld [vmem:[%s5 + $0x2c0] sm:$0xff]
  %v338 = vld [vmem:[%s5 + $0x2c8] sm:$0xff]
  %v339 = vld [vmem:[%s5 + $0x2d0] sm:$0xff]
  %v340 = vld [vmem:[%s5 + $0x2d8] sm:$0xff]
  %v341 = vld [vmem:[%s5 + $0x2e0] sm:$0xff]
  %v342 = vld [vmem:[%s5 + $0x2e8] sm:$0xff]
  %v343 = vld [vmem:[%s5 + $0x2f0] sm:$0xff]
  %v344 = vld [vmem:[%s5 + $0x2f8] sm:$0xff]
  %v441 = vunpack.c.l.b16 %v249
  %v442 = vunpack.c.h.b16 %v249
  %v443 = vunpack.c.l.b16 %v250
  %v444 = vunpack.c.h.b16 %v250
  %v445 = vunpack.c.l.b16 %v251
  %v446 = vunpack.c.h.b16 %v251
  %v447 = vunpack.c.l.b16 %v252
  %v448 = vunpack.c.h.b16 %v252
  %v449 = vunpack.c.l.b16 %v253
  %v450 = vunpack.c.h.b16 %v253
  %v451 = vunpack.c.l.b16 %v254
  %v452 = vunpack.c.h.b16 %v254
  %v453 = vunpack.c.l.b16 %v255
  %v454 = vunpack.c.h.b16 %v255
  %v455 = vunpack.c.l.b16 %v256
  %v456 = vunpack.c.h.b16 %v256
  %v457 = vunpack.c.l.b16 %v257
  %v458 = vunpack.c.h.b16 %v257
  %v459 = vunpack.c.l.b16 %v258
  %v460 = vunpack.c.h.b16 %v258
  %v461 = vunpack.c.l.b16 %v259
  %v462 = vunpack.c.h.b16 %v259
  %v463 = vunpack.c.l.b16 %v260
  %v464 = vunpack.c.h.b16 %v260
  %v465 = vunpack.c.l.b16 %v261
  %v466 = vunpack.c.h.b16 %v261
  %v467 = vunpack.c.l.b16 %v262
  %v468 = vunpack.c.h.b16 %v262
  %v469 = vunpack.c.l.b16 %v263
  %v470 = vunpack.c.h.b16 %v263
  %v471 = vunpack.c.l.b16 %v264
  %v472 = vunpack.c.h.b16 %v264
  %v473 = vunpack.c.l.b16 %v265
  %v474 = vunpack.c.h.b16 %v265
  %v475 = vunpack.c.l.b16 %v266
  %v476 = vunpack.c.h.b16 %v266
  %v477 = vunpack.c.l.b16 %v267
  %v478 = vunpack.c.h.b16 %v267
  %v479 = vunpack.c.l.b16 %v268
  %v480 = vunpack.c.h.b16 %v268
  %v481 = vunpack.c.l.b16 %v269
  %v482 = vunpack.c.h.b16 %v269
  %v483 = vunpack.c.l.b16 %v270
  %v484 = vunpack.c.h.b16 %v270
  %v485 = vunpack.c.l.b16 %v271
  %v486 = vunpack.c.h.b16 %v271
  %v487 = vunpack.c.l.b16 %v272
  %v488 = vunpack.c.h.b16 %v272
  %v489 = vunpack.c.l.b16 %v273
  %v490 = vunpack.c.h.b16 %v273
  %v491 = vunpack.c.l.b16 %v274
  %v492 = vunpack.c.h.b16 %v274
  %v493 = vunpack.c.l.b16 %v275
  %v494 = vunpack.c.h.b16 %v275
  %v495 = vunpack.c.l.b16 %v276
  %v496 = vunpack.c.h.b16 %v276
  %v497 = vunpack.c.l.b16 %v277
  %v498 = vunpack.c.h.b16 %v277
  %v499 = vunpack.c.l.b16 %v278
  %v500 = vunpack.c.h.b16 %v278
  %v501 = vunpack.c.l.b16 %v279
  %v502 = vunpack.c.h.b16 %v279
  %v503 = vunpack.c.l.b16 %v280
  %v504 = vunpack.c.h.b16 %v280
  %v505 = vunpack.c.l.b16 %v281
  %v506 = vunpack.c.h.b16 %v281
  %v507 = vunpack.c.l.b16 %v282
  %v508 = vunpack.c.h.b16 %v282
  %v509 = vunpack.c.l.b16 %v283
  %v510 = vunpack.c.h.b16 %v283
  %v511 = vunpack.c.l.b16 %v284
  %v512 = vunpack.c.h.b16 %v284
  %v513 = vunpack.c.l.b16 %v285
  %v514 = vunpack.c.h.b16 %v285
  %v515 = vunpack.c.l.b16 %v286
  %v516 = vunpack.c.h.b16 %v286
  %v517 = vunpack.c.l.b16 %v287
  %v518 = vunpack.c.h.b16 %v287
  %v519 = vunpack.c.l.b16 %v288
  %v520 = vunpack.c.h.b16 %v288
  %v521 = vunpack.c.l.b16 %v289
  %v522 = vunpack.c.h.b16 %v289
  %v523 = vunpack.c.l.b16 %v290
  %v524 = vunpack.c.h.b16 %v290
  %v525 = vunpack.c.l.b16 %v291
  %v526 = vunpack.c.h.b16 %v291
  %v527 = vunpack.c.l.b16 %v292
  %v528 = vunpack.c.h.b16 %v292
  %v529 = vunpack.c.l.b16 %v293
  %v530 = vunpack.c.h.b16 %v293
  %v531 = vunpack.c.l.b16 %v294
  %v532 = vunpack.c.h.b16 %v294
  %v533 = vunpack.c.l.b16 %v295
  %v534 = vunpack.c.h.b16 %v295
  %v535 = vunpack.c.l.b16 %v296
  %v536 = vunpack.c.h.b16 %v296
  %v537 = vunpack.c.l.b16 %v297
  %v538 = vunpack.c.h.b16 %v297
  %v539 = vunpack.c.l.b16 %v298
  %v540 = vunpack.c.h.b16 %v298
  %v541 = vunpack.c.l.b16 %v299
  %v542 = vunpack.c.h.b16 %v299
  %v543 = vunpack.c.l.b16 %v300
  %v544 = vunpack.c.h.b16 %v300
  %v545 = vunpack.c.l.b16 %v301
  %v546 = vunpack.c.h.b16 %v301
  %v547 = vunpack.c.l.b16 %v302
  %v548 = vunpack.c.h.b16 %v302
  %v549 = vunpack.c.l.b16 %v303
  %v550 = vunpack.c.h.b16 %v303
  %v551 = vunpack.c.l.b16 %v304
  %v552 = vunpack.c.h.b16 %v304
  %v553 = vunpack.c.l.b16 %v305
  %v554 = vunpack.c.h.b16 %v305
  %v555 = vunpack.c.l.b16 %v306
  %v556 = vunpack.c.h.b16 %v306
  %v557 = vunpack.c.l.b16 %v307
  %v558 = vunpack.c.h.b16 %v307
  %v559 = vunpack.c.l.b16 %v308
  %v560 = vunpack.c.h.b16 %v308
  %v561 = vunpack.c.l.b16 %v309
  %v562 = vunpack.c.h.b16 %v309
  %v563 = vunpack.c.l.b16 %v310
  %v564 = vunpack.c.h.b16 %v310
  %v565 = vunpack.c.l.b16 %v311
  %v566 = vunpack.c.h.b16 %v311
  %v567 = vunpack.c.l.b16 %v312
  %v568 = vunpack.c.h.b16 %v312
  %v569 = vunpack.c.l.b16 %v313
  %v570 = vunpack.c.h.b16 %v313
  %v571 = vunpack.c.l.b16 %v314
  %v572 = vunpack.c.h.b16 %v314
  %v573 = vunpack.c.l.b16 %v315
  %v574 = vunpack.c.h.b16 %v315
  %v575 = vunpack.c.l.b16 %v316
  %v576 = vunpack.c.h.b16 %v316
  %v577 = vunpack.c.l.b16 %v317
  %v578 = vunpack.c.h.b16 %v317
  %v579 = vunpack.c.l.b16 %v318
  %v580 = vunpack.c.h.b16 %v318
  %v581 = vunpack.c.l.b16 %v319
  %v582 = vunpack.c.h.b16 %v319
  %v583 = vunpack.c.l.b16 %v320
  %v584 = vunpack.c.h.b16 %v320
  %v585 = vunpack.c.l.b16 %v321
  %v586 = vunpack.c.h.b16 %v321
  %v587 = vunpack.c.l.b16 %v322
  %v588 = vunpack.c.h.b16 %v322
  %v589 = vunpack.c.l.b16 %v323
  %v590 = vunpack.c.h.b16 %v323
  %v591 = vunpack.c.l.b16 %v324
  %v592 = vunpack.c.h.b16 %v324
  %v593 = vunpack.c.l.b16 %v325
  %v594 = vunpack.c.h.b16 %v325
  %v595 = vunpack.c.l.b16 %v326
  %v596 = vunpack.c.h.b16 %v326
  %v597 = vunpack.c.l.b16 %v327
  %v598 = vunpack.c.h.b16 %v327
  %v599 = vunpack.c.l.b16 %v328
  %v600 = vunpack.c.h.b16 %v328
  %v601 = vunpack.c.l.b16 %v329
  %v602 = vunpack.c.h.b16 %v329
  %v603 = vunpack.c.l.b16 %v330
  %v604 = vunpack.c.h.b16 %v330
  %v605 = vunpack.c.l.b16 %v331
  %v606 = vunpack.c.h.b16 %v331
  %v607 = vunpack.c.l.b16 %v332
  %v608 = vunpack.c.h.b16 %v332
  %v609 = vunpack.c.l.b16 %v333
  %v610 = vunpack.c.h.b16 %v333
  %v611 = vunpack.c.l.b16 %v334
  %v612 = vunpack.c.h.b16 %v334
  %v613 = vunpack.c.l.b16 %v335
  %v614 = vunpack.c.h.b16 %v335
  %v615 = vunpack.c.l.b16 %v336
  %v616 = vunpack.c.h.b16 %v336
  %v617 = vunpack.c.l.b16 %v337
  %v618 = vunpack.c.h.b16 %v337
  %v619 = vunpack.c.l.b16 %v338
  %v620 = vunpack.c.h.b16 %v338
  %v621 = vunpack.c.l.b16 %v339
  %v622 = vunpack.c.h.b16 %v339
  %v623 = vunpack.c.l.b16 %v340
  %v624 = vunpack.c.h.b16 %v340
  %v625 = vunpack.c.l.b16 %v341
  %v626 = vunpack.c.h.b16 %v341
  %v627 = vunpack.c.l.b16 %v342
  %v628 = vunpack.c.h.b16 %v342
  %v629 = vunpack.c.l.b16 %v343
  %v630 = vunpack.c.h.b16 %v343
  %v631 = vunpack.c.l.b16 %v344
  %v632 = vunpack.c.h.b16 %v344
  %v633 = vpack.c.b16 %v443, %v441
  %v634 = vpack.c.b16 %v444, %v442
  %v635 = vpack.c.b16 %v447, %v445
  %v636 = vpack.c.b16 %v448, %v446
  %v637 = vpack.c.b16 %v451, %v449
  %v638 = vpack.c.b16 %v452, %v450
  %v639 = vpack.c.b16 %v455, %v453
  %v640 = vpack.c.b16 %v456, %v454
  %v641 = vpack.c.b16 %v459, %v457
  %v642 = vpack.c.b16 %v460, %v458
  %v643 = vpack.c.b16 %v463, %v461
  %v644 = vpack.c.b16 %v464, %v462
  %v645 = vpack.c.b16 %v467, %v465
  %v646 = vpack.c.b16 %v468, %v466
  %v647 = vpack.c.b16 %v471, %v469
  %v648 = vpack.c.b16 %v472, %v470
  %v649 = vpack.c.b16 %v475, %v473
  %v650 = vpack.c.b16 %v476, %v474
  %v651 = vpack.c.b16 %v479, %v477
  %v652 = vpack.c.b16 %v480, %v478
  %v653 = vpack.c.b16 %v483, %v481
  %v654 = vpack.c.b16 %v484, %v482
  %v655 = vpack.c.b16 %v487, %v485
  %v656 = vpack.c.b16 %v488, %v486
  %v657 = vpack.c.b16 %v491, %v489
  %v658 = vpack.c.b16 %v492, %v490
  %v659 = vpack.c.b16 %v495, %v493
  %v660 = vpack.c.b16 %v496, %v494
  %v661 = vpack.c.b16 %v499, %v497
  %v662 = vpack.c.b16 %v500, %v498
  %v663 = vpack.c.b16 %v503, %v501
  %v664 = vpack.c.b16 %v504, %v502
  %v665 = vpack.c.b16 %v507, %v505
  %v666 = vpack.c.b16 %v508, %v506
  %v667 = vpack.c.b16 %v511, %v509
  %v668 = vpack.c.b16 %v512, %v510
  %v669 = vpack.c.b16 %v515, %v513
  %v670 = vpack.c.b16 %v516, %v514
  %v671 = vpack.c.b16 %v519, %v517
  %v672 = vpack.c.b16 %v520, %v518
  %v673 = vpack.c.b16 %v523, %v521
  %v674 = vpack.c.b16 %v524, %v522
  %v675 = vpack.c.b16 %v527, %v525
  %v676 = vpack.c.b16 %v528, %v526
  %v677 = vpack.c.b16 %v531, %v529
  %v678 = vpack.c.b16 %v532, %v530
  %v679 = vpack.c.b16 %v535, %v533
  %v680 = vpack.c.b16 %v536, %v534
  %v681 = vpack.c.b16 %v539, %v537
  %v682 = vpack.c.b16 %v540, %v538
  %v683 = vpack.c.b16 %v543, %v541
  %v684 = vpack.c.b16 %v544, %v542
  %v685 = vpack.c.b16 %v547, %v545
  %v686 = vpack.c.b16 %v548, %v546
  %v687 = vpack.c.b16 %v551, %v549
  %v688 = vpack.c.b16 %v552, %v550
  %v689 = vpack.c.b16 %v555, %v553
  %v690 = vpack.c.b16 %v556, %v554
  %v691 = vpack.c.b16 %v559, %v557
  %v692 = vpack.c.b16 %v560, %v558
  %v693 = vpack.c.b16 %v563, %v561
  %v694 = vpack.c.b16 %v564, %v562
  %v695 = vpack.c.b16 %v567, %v565
  %v696 = vpack.c.b16 %v568, %v566
  %v697 = vpack.c.b16 %v571, %v569
  %v698 = vpack.c.b16 %v572, %v570
  %v699 = vpack.c.b16 %v575, %v573
  %v700 = vpack.c.b16 %v576, %v574
  %v701 = vpack.c.b16 %v579, %v577
  %v702 = vpack.c.b16 %v580, %v578
  %v703 = vpack.c.b16 %v583, %v581
  %v704 = vpack.c.b16 %v584, %v582
  %v705 = vpack.c.b16 %v587, %v585
  %v706 = vpack.c.b16 %v588, %v586
  %v707 = vpack.c.b16 %v591, %v589
  %v708 = vpack.c.b16 %v592, %v590
  %v709 = vpack.c.b16 %v595, %v593
  %v710 = vpack.c.b16 %v596, %v594
  %v711 = vpack.c.b16 %v599, %v597
  %v712 = vpack.c.b16 %v600, %v598
  %v713 = vpack.c.b16 %v603, %v601
  %v714 = vpack.c.b16 %v604, %v602
  %v715 = vpack.c.b16 %v607, %v605
  %v716 = vpack.c.b16 %v608, %v606
  %v717 = vpack.c.b16 %v611, %v609
  %v718 = vpack.c.b16 %v612, %v610
  %v719 = vpack.c.b16 %v615, %v613
  %v720 = vpack.c.b16 %v616, %v614
  %v721 = vpack.c.b16 %v619, %v617
  %v722 = vpack.c.b16 %v620, %v618
  %v723 = vpack.c.b16 %v623, %v621
  %v724 = vpack.c.b16 %v624, %v622
  %v725 = vpack.c.b16 %v627, %v625
  %v726 = vpack.c.b16 %v628, %v626
  %v727 = vpack.c.b16 %v631, %v629
  %v728 = vpack.c.b16 %v632, %v630
  %825 = vmatpush.bf16.msra.mxu0 %v647
  %826 = vmatpush.bf16.msra.mxu0 %v645
  %827 = vmatpush.bf16.msra.mxu0 %v643
  %828 = vmatpush.bf16.msra.mxu0 %v641
  %829 = vmatpush.bf16.msra.mxu0 %v639
  %830 = vmatpush.bf16.msra.mxu0 %v637
  %831 = vmatpush.bf16.msra.mxu0 %v635
  %832 = vmatpush.bf16.msra.mxu0 %v633
  %833 = vmatmul.bf16.gmra.mxu0 %v243
  %v834 = vpop.f32.mrf.mxu0
  %v835 = vadd.f32 %v239, %v834
  %v836 = vpop.f32.mrf.mxu0
  %v837 = vadd.f32 %v242, %v836
  %838 = vdwg.mxu0
  %839 = vmatpush.bf16.msra.mxu0 %v663
  %840 = vmatpush.bf16.msra.mxu0 %v661
  %841 = vmatpush.bf16.msra.mxu0 %v659
  %842 = vmatpush.bf16.msra.mxu0 %v657
  %843 = vmatpush.bf16.msra.mxu0 %v655
  %844 = vmatpush.bf16.msra.mxu0 %v653
  %845 = vmatpush.bf16.msra.mxu0 %v651
  %846 = vmatpush.bf16.msra.mxu0 %v649
  %847 = vmatmul.bf16.gmra.mxu0 %v244
  %v848 = vpop.f32.mrf.mxu0
  %v849 = vadd.f32 %v835, %v848
  %v850 = vpop.f32.mrf.mxu0
  %v851 = vadd.f32 %v837, %v850
  %852 = vdwg.mxu0
  %853 = vmatpush.bf16.msra.mxu0 %v679
  %854 = vmatpush.bf16.msra.mxu0 %v677
  %855 = vmatpush.bf16.msra.mxu0 %v675
  %856 = vmatpush.bf16.msra.mxu0 %v673
  %857 = vmatpush.bf16.msra.mxu0 %v671
  %858 = vmatpush.bf16.msra.mxu0 %v669
  %859 = vmatpush.bf16.msra.mxu0 %v667
  %860 = vmatpush.bf16.msra.mxu0 %v665
  %861 = vmatmul.bf16.gmra.mxu0 %v245
  %v862 = vpop.f32.mrf.mxu0
  %v863 = vadd.f32 %v849, %v862
  %v864 = vpop.f32.mrf.mxu0
  %v865 = vadd.f32 %v851, %v864
  %866 = vdwg.mxu0
  %867 = vmatpush.bf16.msra.mxu0 %v695
  %868 = vmatpush.bf16.msra.mxu0 %v693
  %869 = vmatpush.bf16.msra.mxu0 %v691
  %870 = vmatpush.bf16.msra.mxu0 %v689
  %871 = vmatpush.bf16.msra.mxu0 %v687
  %872 = vmatpush.bf16.msra.mxu0 %v685
  %873 = vmatpush.bf16.msra.mxu0 %v683
  %874 = vmatpush.bf16.msra.mxu0 %v681
  %875 = vmatmul.bf16.gmra.mxu0 %v246
  %v876 = vpop.f32.mrf.mxu0
  %v877 = vadd.f32 %v863, %v876
  %v878 = vpop.f32.mrf.mxu0
  %v879 = vadd.f32 %v865, %v878
  %880 = vdwg.mxu0
  %881 = vmatpush.bf16.msra.mxu0 %v711
  %882 = vmatpush.bf16.msra.mxu0 %v709
  %883 = vmatpush.bf16.msra.mxu0 %v707
  %884 = vmatpush.bf16.msra.mxu0 %v705
  %885 = vmatpush.bf16.msra.mxu0 %v703
  %886 = vmatpush.bf16.msra.mxu0 %v701
  %887 = vmatpush.bf16.msra.mxu0 %v699
  %888 = vmatpush.bf16.msra.mxu0 %v697
  %889 = vmatmul.bf16.gmra.mxu0 %v247
  %v890 = vpop.f32.mrf.mxu0
  %v891 = vadd.f32 %v877, %v890
  %v892 = vpop.f32.mrf.mxu0
  %v893 = vadd.f32 %v879, %v892
  %894 = vdwg.mxu0
  %895 = vmatpush.bf16.msra.mxu0 %v727
  %896 = vmatpush.bf16.msra.mxu0 %v725
  %897 = vmatpush.bf16.msra.mxu0 %v723
  %898 = vmatpush.bf16.msra.mxu0 %v721
  %899 = vmatpush.bf16.msra.mxu0 %v719
  %900 = vmatpush.bf16.msra.mxu0 %v717
  %901 = vmatpush.bf16.msra.mxu0 %v715
  %902 = vmatpush.bf16.msra.mxu0 %v713
  %903 = vmatmul.bf16.gmra.mxu0 %v248
  %v904 = vpop.f32.mrf.mxu0
  %v905 = vadd.f32 %v891, %v904
  %v906 = vpop.f32.mrf.mxu0
  %v907 = vadd.f32 %v893, %v906
  %908 = vdwg.mxu0
  %909 = vmatpush.bf16.msra.mxu0 %v648
  %910 = vmatpush.bf16.msra.mxu0 %v646
  %911 = vmatpush.bf16.msra.mxu0 %v644
  %912 = vmatpush.bf16.msra.mxu0 %v642
  %913 = vmatpush.bf16.msra.mxu0 %v640
  %914 = vmatpush.bf16.msra.mxu0 %v638
  %915 = vmatpush.bf16.msra.mxu0 %v636
  %916 = vmatpush.bf16.msra.mxu0 %v634
  %917 = vmatmul.bf16.gmra.mxu0 %v243
  %v918 = vpop.f32.mrf.mxu0
  %v919 = vadd.f32 %v239, %v918
  %v920 = vpop.f32.mrf.mxu0
  %v921 = vadd.f32 %v242, %v920
  %922 = vdwg.mxu0
  %923 = vmatpush.bf16.msra.mxu0 %v664
  %924 = vmatpush.bf16.msra.mxu0 %v662
  %925 = vmatpush.bf16.msra.mxu0 %v660
  %926 = vmatpush.bf16.msra.mxu0 %v658
  %927 = vmatpush.bf16.msra.mxu0 %v656
  %928 = vmatpush.bf16.msra.mxu0 %v654
  %929 = vmatpush.bf16.msra.mxu0 %v652
  %930 = vmatpush.bf16.msra.mxu0 %v650
  %931 = vmatmul.bf16.gmra.mxu0 %v244
  %v932 = vpop.f32.mrf.mxu0
  %v933 = vadd.f32 %v919, %v932
  %v934 = vpop.f32.mrf.mxu0
  %v935 = vadd.f32 %v921, %v934
  %936 = vdwg.mxu0
  %937 = vmatpush.bf16.msra.mxu0 %v680
  %938 = vmatpush.bf16.msra.mxu0 %v678
  %939 = vmatpush.bf16.msra.mxu0 %v676
  %940 = vmatpush.bf16.msra.mxu0 %v674
  %941 = vmatpush.bf16.msra.mxu0 %v672
  %942 = vmatpush.bf16.msra.mxu0 %v670
  %943 = vmatpush.bf16.msra.mxu0 %v668
  %944 = vmatpush.bf16.msra.mxu0 %v666
  %945 = vmatmul.bf16.gmra.mxu0 %v245
  %v946 = vpop.f32.mrf.mxu0
  %v947 = vadd.f32 %v933, %v946
  %v948 = vpop.f32.mrf.mxu0
  %v949 = vadd.f32 %v935, %v948
  %950 = vdwg.mxu0
  %951 = vmatpush.bf16.msra.mxu0 %v696
  %952 = vmatpush.bf16.msra.mxu0 %v694
  %953 = vmatpush.bf16.msra.mxu0 %v692
  %954 = vmatpush.bf16.msra.mxu0 %v690
  %955 = vmatpush.bf16.msra.mxu0 %v688
  %956 = vmatpush.bf16.msra.mxu0 %v686
  %957 = vmatpush.bf16.msra.mxu0 %v684
  %958 = vmatpush.bf16.msra.mxu0 %v682
  %959 = vmatmul.bf16.gmra.mxu0 %v246
  %v960 = vpop.f32.mrf.mxu0
  %v961 = vadd.f32 %v947, %v960
  %v962 = vpop.f32.mrf.mxu0
  %v963 = vadd.f32 %v949, %v962
  %964 = vdwg.mxu0
  %965 = vmatpush.bf16.msra.mxu0 %v712
  %966 = vmatpush.bf16.msra.mxu0 %v710
  %967 = vmatpush.bf16.msra.mxu0 %v708
  %968 = vmatpush.bf16.msra.mxu0 %v706
  %969 = vmatpush.bf16.msra.mxu0 %v704
  %970 = vmatpush.bf16.msra.mxu0 %v702
  %971 = vmatpush.bf16.msra.mxu0 %v700
  %972 = vmatpush.bf16.msra.mxu0 %v698
  %973 = vmatmul.bf16.gmra.mxu0 %v247
  %v974 = vpop.f32.mrf.mxu0
  %v975 = vadd.f32 %v961, %v974
  %v976 = vpop.f32.mrf.mxu0
  %v977 = vadd.f32 %v963, %v976
  %978 = vdwg.mxu0
  %979 = vmatpush.bf16.msra.mxu0 %v728
  %980 = vmatpush.bf16.msra.mxu0 %v726
  %981 = vmatpush.bf16.msra.mxu0 %v724
  %982 = vmatpush.bf16.msra.mxu0 %v722
  %983 = vmatpush.bf16.msra.mxu0 %v720
  %984 = vmatpush.bf16.msra.mxu0 %v718
  %985 = vmatpush.bf16.msra.mxu0 %v716
  %986 = vmatpush.bf16.msra.mxu0 %v714
  %987 = vmatmul.bf16.gmra.mxu0 %v248
  %v988 = vpop.f32.mrf.mxu0
  %v989 = vadd.f32 %v975, %v988
  %v990 = vpop.f32.mrf.mxu0
  %v991 = vadd.f32 %v977, %v990
  %992 = vdwg.mxu0
  %v993 = vld [vmem:[%s6] sm:$0x3]
  %v995 = vperm.slane %v993, 0
  %v996 = vperm.slane %v993, 1
  %v999 = vadd.f32 %v905, %v995
  %v1000 = vadd.f32 %v989, %v996
  %v1001 = vadd.f32 %v907, %v995
  %v1002 = vadd.f32 %v991, %v996
  %1003 = vst [vmem:[%s7] sm:$0xff] %v999
  %1004 = vst [vmem:[%s7 + $0x8] sm:$0xff] %v1000
  %1005 = vst [vmem:[%s7 + $0x10] sm:$0xff] %v1001
  %1006 = vst [vmem:[%s7 + $0x18] sm:$0xff] %v1002
  // Predicated region
  $region30: #{scemima_forward.7} parent=0 // pred_check
    _
  $region31: #{scemima_forward.7} parent=0 // pred_check_branch
    %1008 = sbr.rel (0) target = $region33
  $region32: #{scemima_forward.7} parent=0 // pred_region
    _
  $region33: #{scemima_forward.7} parent=0 // pred_fallthru
    _
  // Predicated region
  $region34: #{scemima_forward.7} parent=0 // pred_check
    _
  $region35: #{scemima_forward.7} parent=0 // pred_check_branch
    %1010 = sbr.rel (0) target = $region37
  $region36: #{scemima_forward.7} parent=0 // pred_region
    _
  $region37: #{scemima_forward.7} parent=0 // pred_fallthru
    _

// kernel: scemima_forward.5
$region0: #{scemima_forward.5}
  #allocation0 [shape = 'u32[]', space=smem, size = 0x4, offset = 0x4, fixed_abs, tag = 'smem constant byte address 0x4 - core index']
  #allocation1 [shape = 'u32[72,128]{1,0:T(1,128)}', space=vmem, size = 0x9000, scoped, tag = 'internal scratch']
  %s0 = inlined_call_operand.vmem [shape: f32[4,8,32], index: 0, kind: input, shape index: {}, may-alias: {0,1}]
  %s1 = inlined_call_operand.vmem [shape: f32[4,8,32], index: 1, kind: input, shape index: {}, may-alias: {0,1}]
  %s2 = inlined_call_operand.vmem [shape: bf16[32,32], index: 2, kind: input, shape index: {}]
  %s3 = inlined_call_operand.vmem [shape: f32[1,32], index: 3, kind: input, shape index: {}]
  %s4 = inlined_call_operand.vmem [shape: bf16[32,256], index: 4, kind: input, shape index: {}]
  %s5 = inlined_call_operand.vmem [shape: f32[1,256], index: 5, kind: input, shape index: {}]
  %s6 = inlined_call_operand.vmem [shape: f32[2,8,256], index: 6, kind: output, shape index: {0}]
  %s7 = inlined_call_operand.vmem [shape: f32[2,8,256], index: 7, kind: output, shape index: {1}]
  %8 = xla_tuple %s6, %s7
  %s9 = sld [smem:[#allocation0]]
  $region42: #{scemima_forward.5} parent=0
    _
  %s11 = ssub.s32 1, %s9
  %s12 = scalar_select 0, %s11, %s9
  // Predicated region
  $region2: #{scemima_forward.5} parent=0 // pred_check
    _
  $region3: #{scemima_forward.5} parent=0 // pred_check_branch
    %14 = sbr.rel (0) target = $region5
  $region4: #{scemima_forward.5} parent=0 // pred_region
    _
  $region5: #{scemima_forward.5} parent=0 // pred_fallthru
    _
  // Predicated region
  $region6: #{scemima_forward.5} parent=0 // pred_check
    _
  $region7: #{scemima_forward.5} parent=0 // pred_check_branch
    %16 = sbr.rel (0) target = $region9
  $region8: #{scemima_forward.5} parent=0 // pred_region
    %s17 = scalar_lea.vmem %s1, 16
  $region9: #{scemima_forward.5} parent=0 // pred_fallthru
    _
  // Predicated region
  $region10: #{scemima_forward.5} parent=0 // pred_check
    _
  $region11: #{scemima_forward.5} parent=0 // pred_check_branch
    %19 = sbr.rel (0) target = $region13
  $region12: #{scemima_forward.5} parent=0 // pred_region
    _
  $region13: #{scemima_forward.5} parent=0 // pred_fallthru
    _
  // Predicated region
  $region14: #{scemima_forward.5} parent=0 // pred_check
    _
  $region15: #{scemima_forward.5} parent=0 // pred_check_branch
    %21 = sbr.rel (0) target = $region17
  $region16: #{scemima_forward.5} parent=0 // pred_region
    _
  $region17: #{scemima_forward.5} parent=0 // pred_fallthru
    _
  // Predicated region
  $region18: #{scemima_forward.5} parent=0 // pred_check
    _
  $region19: #{scemima_forward.5} parent=0 // pred_check_branch
    %23 = sbr.rel (0) target = $region21
  $region20: #{scemima_forward.5} parent=0 // pred_region
    _
  $region21: #{scemima_forward.5} parent=0 // pred_fallthru
    _
  // Predicated region
  $region22: #{scemima_forward.5} parent=0 // pred_check
    _
  $region23: #{scemima_forward.5} parent=0 // pred_check_branch
    %25 = sbr.rel (0) target = $region25
  $region24: #{scemima_forward.5} parent=0 // pred_region
    _
  $region25: #{scemima_forward.5} parent=0 // pred_fallthru
    _
  %s26 = scalar_lea.vmem %s1, 16
  %s27 = scalar_lea.vmem %s1, 16
  %v29 = vld [vmem:[%s4] sm:$0xff]
  %v30 = vld [vmem:[%s4 + $0x8] sm:$0xff]
  %v31 = vld [vmem:[%s4 + $0x10] sm:$0xff]
  %v32 = vld [vmem:[%s4 + $0x18] sm:$0xff]
  %v33 = vld [vmem:[%s5] sm:$0x3]
  %v34 = vld [vmem:[%s0] sm:$0xff]
  %v35 = vld [vmem:[%s0 + $0x8] sm:$0xff]
  %v36 = vpack.c.bf16 %v35, %v34
  %v38 = vperm.slane %v33, 0
  %v39 = vperm.slane %v33, 1
  %v46 = vunpack.c.l.b16 %v29
  %v47 = vunpack.c.h.b16 %v29
  %v48 = vunpack.c.l.b16 %v30
  %v49 = vunpack.c.h.b16 %v30
  %v50 = vunpack.c.l.b16 %v31
  %v51 = vunpack.c.h.b16 %v31
  %v52 = vunpack.c.l.b16 %v32
  %v53 = vunpack.c.h.b16 %v32
  %v54 = vpack.c.b16 %v48, %v46
  %v55 = vpack.c.b16 %v49, %v47
  %v56 = vpack.c.b16 %v52, %v50
  %v57 = vpack.c.b16 %v53, %v51
  %vm62 = vcmask 261120
  %v64 = vsel %vm62, %v36, 0
  %66 = vmatpush.bf16.msra.mxu0 0
  %67 = vmatpush.bf16.msra.mxu0 0
  %68 = vmatpush.bf16.msra.mxu0 0
  %69 = vmatpush.bf16.msra.mxu0 0
  %70 = vmatpush.bf16.msra.mxu0 0
  %71 = vmatpush.bf16.msra.mxu0 0
  %72 = vmatpush.bf16.msra.mxu0 %v56
  %73 = vmatpush.bf16.msra.mxu0 %v54
  %74 = vmatmul.bf16.gmra.mxu0 %v64
  %v75 = vpop.f32.mrf.mxu0
  %v76 = vadd.f32 %v38, %v75
  %v77 = vpop.f32.mrf.mxu0
  %v78 = vadd.f32 %v38, %v77
  %79 = vdwg.mxu0
  %80 = vmatpush.bf16.msra.mxu0 0
  %81 = vmatpush.bf16.msra.mxu0 0
  %82 = vmatpush.bf16.msra.mxu0 0
  %83 = vmatpush.bf16.msra.mxu0 0
  %84 = vmatpush.bf16.msra.mxu0 0
  %85 = vmatpush.bf16.msra.mxu0 0
  %86 = vmatpush.bf16.msra.mxu0 %v57
  %87 = vmatpush.bf16.msra.mxu0 %v55
  %88 = vmatmul.bf16.gmra.mxu0 %v64
  %v89 = vpop.f32.mrf.mxu0
  %v90 = vadd.f32 %v39, %v89
  %v91 = vpop.f32.mrf.mxu0
  %v92 = vadd.f32 %v39, %v91
  %93 = vdwg.mxu0
  %94 = vst [vmem:[%s6] sm:$0xff] %v76
  %95 = vst [vmem:[%s6 + $0x8] sm:$0xff] %v90
  %96 = vst [vmem:[%s6 + $0x10] sm:$0xff] %v78
  %97 = vst [vmem:[%s6 + $0x18] sm:$0xff] %v92
  %v98 = vld [vmem:[%s27] sm:$0xff]
  %v99 = vld [vmem:[%s27 + $0x8] sm:$0xff]
  %v100 = vpack.c.bf16 %v99, %v98
  %v101 = vld [vmem:[%s2] sm:$0xf]
  %v102 = vld [vmem:[%s2 + $0x4] sm:$0xf]
  %v103 = vld [vmem:[%s2 + $0x8] sm:$0xf]
  %v104 = vld [vmem:[%s2 + $0xc] sm:$0xf]
  %v105 = vld [vmem:[%s3] sm:$0x1]
  %v107 = vperm.slane %v105, 0
  %v113 = vunpack.c.l.b16 %v101
  %v114 = vunpack.c.l.b16 %v102
  %v115 = vunpack.c.l.b16 %v103
  %v116 = vunpack.c.l.b16 %v104
  %v117 = vpack.c.b16 %v114, %v113
  %v118 = vpack.c.b16 %v116, %v115
  %v122 = vsel %vm62, %v100, 0
  %124 = vmatpush.bf16.msra.mxu0 0
  %125 = vmatpush.bf16.msra.mxu0 0
  %126 = vmatpush.bf16.msra.mxu0 0
  %127 = vmatpush.bf16.msra.mxu0 0
  %128 = vmatpush.bf16.msra.mxu0 0
  %129 = vmatpush.bf16.msra.mxu0 0
  %130 = vmatpush.bf16.msra.mxu0 %v118
  %131 = vmatpush.bf16.msra.mxu0 %v117
  %132 = vmatmul.bf16.gmra.mxu0 %v122
  %v133 = vpop.f32.mrf.mxu0
  %v134 = vadd.f32 %v107, %v133
  %v135 = vpop.f32.mrf.mxu0
  %v136 = vadd.f32 %v107, %v135
  %137 = vdwg.mxu0
  %v138 = vpack.c.bf16 %v136, %v134
  %v140 = vsel %vm62, %v138, 0
  %142 = vmatpush.bf16.msra.mxu0 0
  %143 = vmatpush.bf16.msra.mxu0 0
  %144 = vmatpush.bf16.msra.mxu0 0
  %145 = vmatpush.bf16.msra.mxu0 0
  %146 = vmatpush.bf16.msra.mxu0 0
  %147 = vmatpush.bf16.msra.mxu0 0
  %148 = vmatpush.bf16.msra.mxu0 %v56
  %149 = vmatpush.bf16.msra.mxu0 %v54
  %150 = vmatmul.bf16.gmra.mxu0 %v140
  %v151 = vpop.f32.mrf.mxu0
  %v152 = vadd.f32 %v38, %v151
  %v153 = vpop.f32.mrf.mxu0
  %v154 = vadd.f32 %v38, %v153
  %155 = vdwg.mxu0
  %156 = vmatpush.bf16.msra.mxu0 0
  %157 = vmatpush.bf16.msra.mxu0 0
  %158 = vmatpush.bf16.msra.mxu0 0
  %159 = vmatpush.bf16.msra.mxu0 0
  %160 = vmatpush.bf16.msra.mxu0 0
  %161 = vmatpush.bf16.msra.mxu0 0
  %162 = vmatpush.bf16.msra.mxu0 %v57
  %163 = vmatpush.bf16.msra.mxu0 %v55
  %164 = vmatmul.bf16.gmra.mxu0 %v140
  %v165 = vpop.f32.mrf.mxu0
  %v166 = vadd.f32 %v39, %v165
  %v167 = vpop.f32.mrf.mxu0
  %v168 = vadd.f32 %v39, %v167
  %169 = vdwg.mxu0
  %170 = vst [vmem:[%s7] sm:$0xff] %v152
  %171 = vst [vmem:[%s7 + $0x8] sm:$0xff] %v166
  %172 = vst [vmem:[%s7 + $0x10] sm:$0xff] %v154
  %173 = vst [vmem:[%s7 + $0x18] sm:$0xff] %v168
  // Predicated region
  $region26: #{scemima_forward.5} parent=0 // pred_check
    _
  $region27: #{scemima_forward.5} parent=0 // pred_check_branch
    %175 = sbr.rel (0) target = $region29
  $region28: #{scemima_forward.5} parent=0 // pred_region
    _
  $region29: #{scemima_forward.5} parent=0 // pred_fallthru
    _
  // Predicated region
  $region30: #{scemima_forward.5} parent=0 // pred_check
    _
  $region31: #{scemima_forward.5} parent=0 // pred_check_branch
    %177 = sbr.rel (0) target = $region33
  $region32: #{scemima_forward.5} parent=0 // pred_region
    _
  $region33: #{scemima_forward.5} parent=0 // pred_fallthru
    _
  // Predicated region
  $region34: #{scemima_forward.5} parent=0 // pred_check
    _
  $region35: #{scemima_forward.5} parent=0 // pred_check_branch
    %179 = sbr.rel (0) target = $region37
  $region36: #{scemima_forward.5} parent=0 // pred_region
    _
  $region37: #{scemima_forward.5} parent=0 // pred_fallthru
    _
  // Predicated region
  $region38: #{scemima_forward.5} parent=0 // pred_check
    _
  $region39: #{scemima_forward.5} parent=0 // pred_check_branch
    %181 = sbr.rel (0) target = $region41
  $region40: #{scemima_forward.5} parent=0 // pred_region
    _
  $region41: #{scemima_forward.5} parent=0 // pred_fallthru
    _

// kernel: scemima_forward.4
$region0: #{scemima_forward.4}
  #allocation0 [shape = 'u32[]', space=smem, size = 0x4, offset = 0x4, fixed_abs, tag = 'smem constant byte address 0x4 - core index']
  #allocation1 [shape = 'u32[72,128]{1,0:T(1,128)}', space=vmem, size = 0x9000, scoped, tag = 'internal scratch']
  %s0 = inlined_call_operand.vmem [shape: bf16[4,8,32], index: 0, kind: input, shape index: {}]
  %s1 = inlined_call_operand.vmem [shape: bf16[4,8,32], index: 1, kind: input, shape index: {}]
  %s2 = inlined_call_operand.vmem [shape: f32[8,32], index: 2, kind: input, shape index: {}]
  %s3 = inlined_call_operand.vmem [shape: f32[2,32], index: 3, kind: input, shape index: {}]
  %s4 = inlined_call_operand.vmem [shape: bf16[2,32,96], index: 4, kind: input, shape index: {}]
  %s5 = inlined_call_operand.vmem [shape: f32[2,1,96], index: 5, kind: input, shape index: {}]
  %s6 = inlined_call_operand.vmem [shape: bf16[2,32,32], index: 6, kind: input, shape index: {}]
  %s7 = inlined_call_operand.vmem [shape: f32[2,1,32], index: 7, kind: input, shape index: {}]
  %s8 = inlined_call_operand.vmem [shape: f32[2,2,32], index: 8, kind: input, shape index: {}]
  %s9 = inlined_call_operand.vmem [shape: bf16[2,32,2048], index: 9, kind: input, shape index: {}]
  %s10 = inlined_call_operand.vmem [shape: f32[2,1,2048], index: 10, kind: input, shape index: {}]
  %s11 = inlined_call_operand.vmem [shape: bf16[2,2048,32], index: 11, kind: input, shape index: {}]
  %s12 = inlined_call_operand.vmem [shape: f32[2,1,32], index: 12, kind: input, shape index: {}]
  %s13 = inlined_call_operand.vmem [shape: f32[2,2,32], index: 13, kind: input, shape index: {}]
  %s14 = inlined_call_operand.vmem [shape: f32[4,8,32], index: 14, kind: output, shape index: {}]
  %s15 = sld [smem:[#allocation0]]
  $region93: #{scemima_forward.4} parent=0
    _
  %s17 = ssub.s32 1, %s15
  %s18 = scalar_select 0, %s17, %s15
  loop: start=0, step=1, limit=4
  $region2: #{scemima_forward.4} parent=0 // loop_pre_header
    _
  $region3: #{scemima_forward.4} parent=0 // loop_header
    %s20 = sphi 0, %s24
    %p21 = scmp.ge.s32.totalorder %s20, 4
    %s27 = sphi 0, %s39
    %s28 = sphi 0, %s35
    %s29 = sphi 0, %s27
    %s30 = sphi 0, %s28
    %s31 = sphi 0, %s29
    %s32 = sphi 0, %s30
    %s42 = sphi 0, %s44
    %s45 = sphi 0, %s42
    %s46 = sphi 0, %s45
    %s62 = sphi 0, %s46
    %s68 = sphi 0, %s70
    %s71 = sphi 0, %s68
    %s72 = sphi 0, %s71
    %s88 = sphi 0, %s72
    %s92 = sphi 0, %s92
    %s94 = sphi 0, %s92
    %s95 = sphi 0, %s94
    %s109 = sphi 0, %s95
    %s113 = sphi 0, %s113
    %s115 = sphi 0, %s113
    %s116 = sphi 0, %s115
    %s130 = sphi 0, %s116
    %s134 = sphi 0, %s134
    %s136 = sphi 0, %s134
    %s137 = sphi 0, %s136
    %s151 = sphi 0, %s137
    %s155 = sphi 0, %s155
    %s157 = sphi 0, %s155
    %s158 = sphi 0, %s157
    %s172 = sphi 0, %s158
    %s176 = sphi 0, %s176
    %s178 = sphi 0, %s176
    %s179 = sphi 0, %s178
    %s193 = sphi 0, %s179
    %s197 = sphi 0, %s197
    %s199 = sphi 0, %s197
    %s200 = sphi 0, %s199
    %s214 = sphi 0, %s200
    %s218 = sphi 0, %s218
    %s220 = sphi 0, %s218
    %s221 = sphi 0, %s220
    %s235 = sphi 0, %s221
    %s239 = sphi 0, %s239
    %s241 = sphi 0, %s239
    %s242 = sphi 0, %s241
    %s256 = sphi 0, %s242
    %s260 = sphi 0, %s260
    %s262 = sphi 0, %s260
    %s263 = sphi 0, %s262
    %s277 = sphi 0, %s263
    %s281 = sphi 0, %s281
    %s283 = sphi 0, %s281
    %s284 = sphi 0, %s283
    %s298 = sphi 0, %s284
    %s302 = sphi 0, %s302
    %s304 = sphi 0, %s302
    %s305 = sphi 0, %s304
    %s319 = sphi 0, %s305
    %s323 = sphi 0, %s323
    %s325 = sphi 0, %s323
    %s326 = sphi 0, %s325
    %s340 = sphi 0, %s326
    %s346 = sphi 0, %s348
    %s349 = sphi 0, %s346
    %s350 = sphi 0, %s349
    %s366 = sphi 0, %s350
  $region4: #{scemima_forward.4} parent=0 // loop_header_branch
    %23 = sbr.rel (%p21) target = $region8
  $region5: #{scemima_forward.4} parent=0 // loop_body
    %s25 = ssub.s32 %s20, 1
    %s26 = ssub.s32 %s20, 2
    %s33 = sadd.s32 1, %s28
    %p34 = scmp.ge.s32.totalorder %s33, 2
    %s35 = scalar_select %p34, 0, %s33
    %s36 = sadd.s32 1, %s27
    %s37 = scalar_select %p34, %s36, %s27
    %p38 = scmp.ge.s32.totalorder %s37, 1
    %s39 = scalar_select %p38, 0, %s37
    %s40 = ssub.s32 %s27, %s39
    %p41 = scmp.eq.s32.totalorder %s40, 0
    %s43 = sadd.s32 %s42, 1
    %s44 = scalar_select %p41, %s42, %s43
    %p47 = pneg %p41
    %p48 = scmp.eq.s32.totalorder %s20, 1
    %p49 = por %p47, %p48
    %p50 = scmp.ne.s32.totalorder %s42, %s45
    %p51 = scmp.eq.s32.totalorder %s20, 0
    %p52 = por %p50, %p51
    %p53 = scmp.ne.s32.totalorder %s42, %s45
    %p54 = scmp.eq.s32.totalorder %s25, 1
    %p55 = por %p53, %p54
    %p56 = scmp.ne.s32.totalorder %s45, %s46
    %p57 = scmp.eq.s32.totalorder %s25, 0
    %p58 = por %p56, %p57
    %p59 = scmp.ne.s32.totalorder %s45, %s46
    %p60 = scmp.eq.s32.totalorder %s26, 1
    %p61 = por %p59, %p60
    %p63 = scmp.ne.s32.totalorder %s46, %s62
    %p64 = scmp.eq.s32.totalorder %s26, 0
    %p65 = por %p63, %p64
    %s66 = ssub.s32 %s27, %s39
    %p67 = scmp.eq.s32.totalorder %s66, 0
    %s69 = sadd.s32 %s68, 1
    %s70 = scalar_select %p67, %s68, %s69
    %p73 = pneg %p67
    %p74 = scmp.eq.s32.totalorder %s20, 1
    %p75 = por %p73, %p74
    %p76 = scmp.ne.s32.totalorder %s68, %s71
    %p77 = scmp.eq.s32.totalorder %s20, 0
    %p78 = por %p76, %p77
    %p79 = scmp.ne.s32.totalorder %s68, %s71
    %p80 = scmp.eq.s32.totalorder %s25, 1
    %p81 = por %p79, %p80
    %p82 = scmp.ne.s32.totalorder %s71, %s72
    %p83 = scmp.eq.s32.totalorder %s25, 0
    %p84 = por %p82, %p83
    %p85 = scmp.ne.s32.totalorder %s71, %s72
    %p86 = scmp.eq.s32.totalorder %s26, 1
    %p87 = por %p85, %p86
    %p89 = scmp.ne.s32.totalorder %s72, %s88
    %p90 = scmp.eq.s32.totalorder %s26, 0
    %p91 = por %p89, %p90
    %s93 = sadd.s32 %s92, 1
    %p96 = scmp.eq.s32.totalorder %s20, 1
    %p97 = scmp.ne.s32.totalorder %s92, %s94
    %p98 = scmp.eq.s32.totalorder %s20, 0
    %p99 = por %p97, %p98
    %p100 = scmp.ne.s32.totalorder %s92, %s94
    %p101 = scmp.eq.s32.totalorder %s25, 1
    %p102 = por %p100, %p101
    %p103 = scmp.ne.s32.totalorder %s94, %s95
    %p104 = scmp.eq.s32.totalorder %s25, 0
    %p105 = por %p103, %p104
    %p106 = scmp.ne.s32.totalorder %s94, %s95
    %p107 = scmp.eq.s32.totalorder %s26, 1
    %p108 = por %p106, %p107
    %p110 = scmp.ne.s32.totalorder %s95, %s109
    %p111 = scmp.eq.s32.totalorder %s26, 0
    %p112 = por %p110, %p111
    %s114 = sadd.s32 %s113, 1
    %p117 = scmp.eq.s32.totalorder %s20, 1
    %p118 = scmp.ne.s32.totalorder %s113, %s115
    %p119 = scmp.eq.s32.totalorder %s20, 0
    %p120 = por %p118, %p119
    %p121 = scmp.ne.s32.totalorder %s113, %s115
    %p122 = scmp.eq.s32.totalorder %s25, 1
    %p123 = por %p121, %p122
    %p124 = scmp.ne.s32.totalorder %s115, %s116
    %p125 = scmp.eq.s32.totalorder %s25, 0
    %p126 = por %p124, %p125
    %p127 = scmp.ne.s32.totalorder %s115, %s116
    %p128 = scmp.eq.s32.totalorder %s26, 1
    %p129 = por %p127, %p128
    %p131 = scmp.ne.s32.totalorder %s116, %s130
    %p132 = scmp.eq.s32.totalorder %s26, 0
    %p133 = por %p131, %p132
    %s135 = sadd.s32 %s134, 1
    %p138 = scmp.eq.s32.totalorder %s20, 1
    %p139 = scmp.ne.s32.totalorder %s134, %s136
    %p140 = scmp.eq.s32.totalorder %s20, 0
    %p141 = por %p139, %p140
    %p142 = scmp.ne.s32.totalorder %s134, %s136
    %p143 = scmp.eq.s32.totalorder %s25, 1
    %p144 = por %p142, %p143
    %p145 = scmp.ne.s32.totalorder %s136, %s137
    %p146 = scmp.eq.s32.totalorder %s25, 0
    %p147 = por %p145, %p146
    %p148 = scmp.ne.s32.totalorder %s136, %s137
    %p149 = scmp.eq.s32.totalorder %s26, 1
    %p150 = por %p148, %p149
    %p152 = scmp.ne.s32.totalorder %s137, %s151
    %p153 = scmp.eq.s32.totalorder %s26, 0
    %p154 = por %p152, %p153
    %s156 = sadd.s32 %s155, 1
    %p159 = scmp.eq.s32.totalorder %s20, 1
    %p160 = scmp.ne.s32.totalorder %s155, %s157
    %p161 = scmp.eq.s32.totalorder %s20, 0
    %p162 = por %p160, %p161
    %p163 = scmp.ne.s32.totalorder %s155, %s157
    %p164 = scmp.eq.s32.totalorder %s25, 1
    %p165 = por %p163, %p164
    %p166 = scmp.ne.s32.totalorder %s157, %s158
    %p167 = scmp.eq.s32.totalorder %s25, 0
    %p168 = por %p166, %p167
    %p169 = scmp.ne.s32.totalorder %s157, %s158
    %p170 = scmp.eq.s32.totalorder %s26, 1
    %p171 = por %p169, %p170
    %p173 = scmp.ne.s32.totalorder %s158, %s172
    %p174 = scmp.eq.s32.totalorder %s26, 0
    %p175 = por %p173, %p174
    %s177 = sadd.s32 %s176, 1
    %p180 = scmp.eq.s32.totalorder %s20, 1
    %p181 = scmp.ne.s32.totalorder %s176, %s178
    %p182 = scmp.eq.s32.totalorder %s20, 0
    %p183 = por %p181, %p182
    %p184 = scmp.ne.s32.totalorder %s176, %s178
    %p185 = scmp.eq.s32.totalorder %s25, 1
    %p186 = por %p184, %p185
    %p187 = scmp.ne.s32.totalorder %s178, %s179
    %p188 = scmp.eq.s32.totalorder %s25, 0
    %p189 = por %p187, %p188
    %p190 = scmp.ne.s32.totalorder %s178, %s179
    %p191 = scmp.eq.s32.totalorder %s26, 1
    %p192 = por %p190, %p191
    %p194 = scmp.ne.s32.totalorder %s179, %s193
    %p195 = scmp.eq.s32.totalorder %s26, 0
    %p196 = por %p194, %p195
    %s198 = sadd.s32 %s197, 1
    %p201 = scmp.eq.s32.totalorder %s20, 1
    %p202 = scmp.ne.s32.totalorder %s197, %s199
    %p203 = scmp.eq.s32.totalorder %s20, 0
    %p204 = por %p202, %p203
    %p205 = scmp.ne.s32.totalorder %s197, %s199
    %p206 = scmp.eq.s32.totalorder %s25, 1
    %p207 = por %p205, %p206
    %p208 = scmp.ne.s32.totalorder %s199, %s200
    %p209 = scmp.eq.s32.totalorder %s25, 0
    %p210 = por %p208, %p209
    %p211 = scmp.ne.s32.totalorder %s199, %s200
    %p212 = scmp.eq.s32.totalorder %s26, 1
    %p213 = por %p211, %p212
    %p215 = scmp.ne.s32.totalorder %s200, %s214
    %p216 = scmp.eq.s32.totalorder %s26, 0
    %p217 = por %p215, %p216
    %s219 = sadd.s32 %s218, 1
    %p222 = scmp.eq.s32.totalorder %s20, 1
    %p223 = scmp.ne.s32.totalorder %s218, %s220
    %p224 = scmp.eq.s32.totalorder %s20, 0
    %p225 = por %p223, %p224
    %p226 = scmp.ne.s32.totalorder %s218, %s220
    %p227 = scmp.eq.s32.totalorder %s25, 1
    %p228 = por %p226, %p227
    %p229 = scmp.ne.s32.totalorder %s220, %s221
    %p230 = scmp.eq.s32.totalorder %s25, 0
    %p231 = por %p229, %p230
    %p232 = scmp.ne.s32.totalorder %s220, %s221
    %p233 = scmp.eq.s32.totalorder %s26, 1
    %p234 = por %p232, %p233
    %p236 = scmp.ne.s32.totalorder %s221, %s235
    %p237 = scmp.eq.s32.totalorder %s26, 0
    %p238 = por %p236, %p237
    %s240 = sadd.s32 %s239, 1
    %p243 = scmp.eq.s32.totalorder %s20, 1
    %p244 = scmp.ne.s32.totalorder %s239, %s241
    %p245 = scmp.eq.s32.totalorder %s20, 0
    %p246 = por %p244, %p245
    %p247 = scmp.ne.s32.totalorder %s239, %s241
    %p248 = scmp.eq.s32.totalorder %s25, 1
    %p249 = por %p247, %p248
    %p250 = scmp.ne.s32.totalorder %s241, %s242
    %p251 = scmp.eq.s32.totalorder %s25, 0
    %p252 = por %p250, %p251
    %p253 = scmp.ne.s32.totalorder %s241, %s242
    %p254 = scmp.eq.s32.totalorder %s26, 1
    %p255 = por %p253, %p254
    %p257 = scmp.ne.s32.totalorder %s242, %s256
    %p258 = scmp.eq.s32.totalorder %s26, 0
    %p259 = por %p257, %p258
    %s261 = sadd.s32 %s260, 1
    %p264 = scmp.eq.s32.totalorder %s20, 1
    %p265 = scmp.ne.s32.totalorder %s260, %s262
    %p266 = scmp.eq.s32.totalorder %s20, 0
    %p267 = por %p265, %p266
    %p268 = scmp.ne.s32.totalorder %s260, %s262
    %p269 = scmp.eq.s32.totalorder %s25, 1
    %p270 = por %p268, %p269
    %p271 = scmp.ne.s32.totalorder %s262, %s263
    %p272 = scmp.eq.s32.totalorder %s25, 0
    %p273 = por %p271, %p272
    %p274 = scmp.ne.s32.totalorder %s262, %s263
    %p275 = scmp.eq.s32.totalorder %s26, 1
    %p276 = por %p274, %p275
    %p278 = scmp.ne.s32.totalorder %s263, %s277
    %p279 = scmp.eq.s32.totalorder %s26, 0
    %p280 = por %p278, %p279
    %s282 = sadd.s32 %s281, 1
    %p285 = scmp.eq.s32.totalorder %s20, 1
    %p286 = scmp.ne.s32.totalorder %s281, %s283
    %p287 = scmp.eq.s32.totalorder %s20, 0
    %p288 = por %p286, %p287
    %p289 = scmp.ne.s32.totalorder %s281, %s283
    %p290 = scmp.eq.s32.totalorder %s25, 1
    %p291 = por %p289, %p290
    %p292 = scmp.ne.s32.totalorder %s283, %s284
    %p293 = scmp.eq.s32.totalorder %s25, 0
    %p294 = por %p292, %p293
    %p295 = scmp.ne.s32.totalorder %s283, %s284
    %p296 = scmp.eq.s32.totalorder %s26, 1
    %p297 = por %p295, %p296
    %p299 = scmp.ne.s32.totalorder %s284, %s298
    %p300 = scmp.eq.s32.totalorder %s26, 0
    %p301 = por %p299, %p300
    %s303 = sadd.s32 %s302, 1
    %p306 = scmp.eq.s32.totalorder %s20, 1
    %p307 = scmp.ne.s32.totalorder %s302, %s304
    %p308 = scmp.eq.s32.totalorder %s20, 0
    %p309 = por %p307, %p308
    %p310 = scmp.ne.s32.totalorder %s302, %s304
    %p311 = scmp.eq.s32.totalorder %s25, 1
    %p312 = por %p310, %p311
    %p313 = scmp.ne.s32.totalorder %s304, %s305
    %p314 = scmp.eq.s32.totalorder %s25, 0
    %p315 = por %p313, %p314
    %p316 = scmp.ne.s32.totalorder %s304, %s305
    %p317 = scmp.eq.s32.totalorder %s26, 1
    %p318 = por %p316, %p317
    %p320 = scmp.ne.s32.totalorder %s305, %s319
    %p321 = scmp.eq.s32.totalorder %s26, 0
    %p322 = por %p320, %p321
    %s324 = sadd.s32 %s323, 1
    %p327 = scmp.eq.s32.totalorder %s20, 1
    %p328 = scmp.ne.s32.totalorder %s323, %s325
    %p329 = scmp.eq.s32.totalorder %s20, 0
    %p330 = por %p328, %p329
    %p331 = scmp.ne.s32.totalorder %s323, %s325
    %p332 = scmp.eq.s32.totalorder %s25, 1
    %p333 = por %p331, %p332
    %p334 = scmp.ne.s32.totalorder %s325, %s326
    %p335 = scmp.eq.s32.totalorder %s25, 0
    %p336 = por %p334, %p335
    %p337 = scmp.ne.s32.totalorder %s325, %s326
    %p338 = scmp.eq.s32.totalorder %s26, 1
    %p339 = por %p337, %p338
    %p341 = scmp.ne.s32.totalorder %s326, %s340
    %p342 = scmp.eq.s32.totalorder %s26, 0
    %p343 = por %p341, %p342
    %s344 = ssub.s32 %s27, %s39
    %p345 = scmp.eq.s32.totalorder %s344, 0
    %s347 = sadd.s32 %s346, 1
    %s348 = scalar_select %p345, %s346, %s347
    %p351 = pneg %p345
    %p352 = scmp.eq.s32.totalorder %s20, 1
    %p353 = por %p351, %p352
    %p354 = scmp.ne.s32.totalorder %s346, %s349
    %p355 = scmp.eq.s32.totalorder %s20, 0
    %p356 = por %p354, %p355
    %p357 = scmp.ne.s32.totalorder %s346, %s349
    %p358 = scmp.eq.s32.totalorder %s25, 1
    %p359 = por %p357, %p358
    %p360 = scmp.ne.s32.totalorder %s349, %s350
    %p361 = scmp.eq.s32.totalorder %s25, 0
    %p362 = por %p360, %p361
    %p363 = scmp.ne.s32.totalorder %s349, %s350
    %p364 = scmp.eq.s32.totalorder %s26, 1
    %p365 = por %p363, %p364
    %p367 = scmp.ne.s32.totalorder %s350, %s366
    %p368 = scmp.eq.s32.totalorder %s26, 0
    %p369 = por %p367, %p368
    %p370 = scmp.le.s32.totalorder 1, %s20
    %p371 = scmp.lt.s32.totalorder %s20, 3
    %p372 = pnand %p370, %p371
    %p373 = pneg %p372
    // Predicated region
    $region9: #{scemima_forward.4} parent=5 // pred_check
      _
    $region10: #{scemima_forward.4} parent=5 // pred_check_branch
      %375 = sbr.rel (%p372) target = $region12
    $region11: #{scemima_forward.4} parent=5 // pred_region
      %s376 = ssub.s32 %s20, 1
      // Predicated region
      $region13: #{scemima_forward.4} parent=11 // pred_check
        %p377 = pneg %p58
      $region14: #{scemima_forward.4} parent=11 // pred_check_branch
        %379 = sbr.rel (%p377) target = $region16
      $region15: #{scemima_forward.4} parent=11 // pred_region
        %s380 = smul.u32 4, %s29
        %p381 = scmp.lt.s32.totalorder %s380, 3
        %s382 = scalar_select %p381, %s380, 3
        %s383 = smul.addr %s382, 4
        %s384 = scalar_lea.vmem %s0, %s383
        %s385 = smul.u32 4, %s29
      $region16: #{scemima_forward.4} parent=11 // pred_fallthru
        _
      // Predicated region
      $region17: #{scemima_forward.4} parent=11 // pred_check
        %p386 = pneg %p84
      $region18: #{scemima_forward.4} parent=11 // pred_check_branch
        %388 = sbr.rel (%p386) target = $region20
      $region19: #{scemima_forward.4} parent=11 // pred_region
        %s389 = smul.u32 4, %s29
        %p390 = scmp.lt.s32.totalorder %s389, 3
        %s391 = scalar_select %p390, %s389, 3
        %s392 = smul.addr %s391, 4
        %s393 = scalar_lea.vmem %s1, %s392
        %s394 = smul.u32 4, %s29
      $region20: #{scemima_forward.4} parent=11 // pred_fallthru
        _
      // Predicated region
      $region21: #{scemima_forward.4} parent=11 // pred_check
        %p395 = pneg %p105
      $region22: #{scemima_forward.4} parent=11 // pred_check_branch
        %397 = sbr.rel (%p395) target = $region24
      $region23: #{scemima_forward.4} parent=11 // pred_region
        _
      $region24: #{scemima_forward.4} parent=11 // pred_fallthru
        _
      // Predicated region
      $region25: #{scemima_forward.4} parent=11 // pred_check
        %p398 = pneg %p126
      $region26: #{scemima_forward.4} parent=11 // pred_check_branch
        %400 = sbr.rel (%p398) target = $region28
      $region27: #{scemima_forward.4} parent=11 // pred_region
        _
      $region28: #{scemima_forward.4} parent=11 // pred_fallthru
        _
      // Predicated region
      $region29: #{scemima_forward.4} parent=11 // pred_check
        %p401 = pneg %p147
      $region30: #{scemima_forward.4} parent=11 // pred_check_branch
        %403 = sbr.rel (%p401) target = $region32
      $region31: #{scemima_forward.4} parent=11 // pred_region
        _
      $region32: #{scemima_forward.4} parent=11 // pred_fallthru
        _
      // Predicated region
      $region33: #{scemima_forward.4} parent=11 // pred_check
        %p404 = pneg %p168
      $region34: #{scemima_forward.4} parent=11 // pred_check_branch
        %406 = sbr.rel (%p404) target = $region36
      $region35: #{scemima_forward.4} parent=11 // pred_region
        _
      $region36: #{scemima_forward.4} parent=11 // pred_fallthru
        _
      // Predicated region
      $region37: #{scemima_forward.4} parent=11 // pred_check
        %p407 = pneg %p189
      $region38: #{scemima_forward.4} parent=11 // pred_check_branch
        %409 = sbr.rel (%p407) target = $region40
      $region39: #{scemima_forward.4} parent=11 // pred_region
        _
      $region40: #{scemima_forward.4} parent=11 // pred_fallthru
        _
      // Predicated region
      $region41: #{scemima_forward.4} parent=11 // pred_check
        %p410 = pneg %p210
      $region42: #{scemima_forward.4} parent=11 // pred_check_branch
        %412 = sbr.rel (%p410) target = $region44
      $region43: #{scemima_forward.4} parent=11 // pred_region
        _
      $region44: #{scemima_forward.4} parent=11 // pred_fallthru
        _
      // Predicated region
      $region45: #{scemima_forward.4} parent=11 // pred_check
        %p413 = pneg %p231
      $region46: #{scemima_forward.4} parent=11 // pred_check_branch
        %415 = sbr.rel (%p413) target = $region48
      $region47: #{scemima_forward.4} parent=11 // pred_region
        _
      $region48: #{scemima_forward.4} parent=11 // pred_fallthru
        _
      // Predicated region
      $region49: #{scemima_forward.4} parent=11 // pred_check
        %p416 = pneg %p252
      $region50: #{scemima_forward.4} parent=11 // pred_check_branch
        %418 = sbr.rel (%p416) target = $region52
      $region51: #{scemima_forward.4} parent=11 // pred_region
        _
      $region52: #{scemima_forward.4} parent=11 // pred_fallthru
        _
      // Predicated region
      $region53: #{scemima_forward.4} parent=11 // pred_check
        %p419 = pneg %p273
      $region54: #{scemima_forward.4} parent=11 // pred_check_branch
        %421 = sbr.rel (%p419) target = $region56
      $region55: #{scemima_forward.4} parent=11 // pred_region
        _
      $region56: #{scemima_forward.4} parent=11 // pred_fallthru
        _
      // Predicated region
      $region57: #{scemima_forward.4} parent=11 // pred_check
        %p422 = pneg %p294
      $region58: #{scemima_forward.4} parent=11 // pred_check_branch
        %424 = sbr.rel (%p422) target = $region60
      $region59: #{scemima_forward.4} parent=11 // pred_region
        _
      $region60: #{scemima_forward.4} parent=11 // pred_fallthru
        _
      // Predicated region
      $region61: #{scemima_forward.4} parent=11 // pred_check
        %p425 = pneg %p315
      $region62: #{scemima_forward.4} parent=11 // pred_check_branch
        %427 = sbr.rel (%p425) target = $region64
      $region63: #{scemima_forward.4} parent=11 // pred_region
        _
      $region64: #{scemima_forward.4} parent=11 // pred_fallthru
        _
      // Predicated region
      $region65: #{scemima_forward.4} parent=11 // pred_check
        %p428 = pneg %p336
      $region66: #{scemima_forward.4} parent=11 // pred_check_branch
        %430 = sbr.rel (%p428) target = $region68
      $region67: #{scemima_forward.4} parent=11 // pred_region
        _
      $region68: #{scemima_forward.4} parent=11 // pred_fallthru
        _
    $region12: #{scemima_forward.4} parent=5 // pred_fallthru
      _
    %p431 = scmp.lt.s32.totalorder %s20, 2
    // Predicated region
    $region69: #{scemima_forward.4} parent=5 // pred_check
      %p432 = pneg %p431
    $region70: #{scemima_forward.4} parent=5 // pred_check_branch
      %434 = sbr.rel (%p432) target = $region72
    $region71: #{scemima_forward.4} parent=5 // pred_region
      _
    $region72: #{scemima_forward.4} parent=5 // pred_fallthru
      _
    %p435 = scmp.le.s32.totalorder 1, %s20
    %p436 = scmp.lt.s32.totalorder %s20, 3
    %p437 = pnand %p435, %p436
    %p438 = pneg %p437
    // Predicated region
    $region73: #{scemima_forward.4} parent=5 // pred_check
      _
    $region74: #{scemima_forward.4} parent=5 // pred_check_branch
      %440 = sbr.rel (%p437) target = $region76
    $region75: #{scemima_forward.4} parent=5 // pred_region
      %s441 = ssub.s32 %s20, 1
      %s442 = smul.u32 4, %s29
      %p443 = scmp.lt.s32.totalorder %s442, 3
      %s444 = scalar_select %p443, %s442, 3
      %s445 = smul.addr %s444, 4
      %s446 = scalar_lea.vmem %s0, %s445
      %p447 = pneg %p58
      %p448 = pneg %p55
      %s449 = smul.u32 4, %s29
      %p450 = scmp.lt.s32.totalorder %s449, 3
      %s451 = scalar_select %p450, %s449, 3
      %s452 = smul.addr %s451, 4
      %s453 = scalar_lea.vmem %s1, %s452
      %p454 = pneg %p84
      %p455 = pneg %p81
      %p456 = pneg %p105
      %p457 = pneg %p102
      %p458 = pneg %p126
      %p459 = pneg %p123
      %p460 = pneg %p147
      %p461 = pneg %p144
      %p462 = pneg %p168
      %p463 = pneg %p165
      %p464 = pneg %p189
      %p465 = pneg %p186
      %p466 = pneg %p210
      %p467 = pneg %p207
      %p468 = pneg %p231
      %p469 = pneg %p228
      %p470 = pneg %p252
      %p471 = pneg %p249
      %p472 = pneg %p273
      %p473 = pneg %p270
      %p474 = pneg %p294
      %p475 = pneg %p291
      %p476 = pneg %p315
      %p477 = pneg %p312
      %p478 = pneg %p336
      %p479 = pneg %p333
      %p480 = pneg %p362
      %p481 = pneg %p359
      %s482 = smul.u32 4, %s29
      %p483 = scmp.lt.s32.totalorder %s482, 3
      %s484 = scalar_select %p483, %s482, 3
      %s485 = smul.addr %s484, 8
      %s486 = scalar_lea.vmem %s14, %s485
      %s487 = smul.u32 4, %s29
      %p488 = scmp.lt.s32.totalorder %s487, 3
      %s489 = scalar_select %p488, %s487, 3
      %s490 = smul.addr %s489, 4
      %s491 = scalar_lea.vmem %s0, %s490
      %s492 = smul.u32 4, %s29
      %s493 = smul.u32 4, %s29
      %p494 = scmp.lt.s32.totalorder %s493, 3
      %s495 = scalar_select %p494, %s493, 3
      %s496 = smul.addr %s495, 4
      %s497 = scalar_lea.vmem %s1, %s496
      %s498 = smul.u32 4, %s29
      %s499 = smul.u32 4, %s29
      %p500 = scmp.lt.s32.totalorder %s499, 3
      %s501 = scalar_select %p500, %s499, 3
      %s502 = smul.addr %s501, 8
      %s503 = scalar_lea.vmem %s14, %s502
      %s504 = smul.u32 4, %s29
      %p506 = scmp.eq.s32.totalorder %s30, 0
      // Predicated region
      $region77: #{scemima_forward.4} parent=75 // pred_check
        %p507 = pneg %p506
      $region78: #{scemima_forward.4} parent=75 // pred_check_branch
        %509 = sbr.rel (%p507) target = $region80
      $region79: #{scemima_forward.4} parent=75 // pred_region
        %v510 = vld [vmem:[%s491] sm:$0xf]
        %v511 = vld [vmem:[%s491 + $0x4] sm:$0xf]
        %v512 = vld [vmem:[%s491 + $0x8] sm:$0xf]
        %v513 = vld [vmem:[%s491 + $0xc] sm:$0xf]
        %v514 = vunpack.c.l.bf16 %v510
        %v515 = vunpack.c.l.bf16 %v511
        %v516 = vunpack.c.l.bf16 %v512
        %v517 = vunpack.c.l.bf16 %v513
        %v518 = vmul.f32 %v514, 0.6
        %v519 = vmul.f32 %v515, 0.6
        %v520 = vmul.f32 %v516, 0.6
        %v521 = vmul.f32 %v517, 0.6
        %v522 = vld [vmem:[%s497] sm:$0xf]
        %v523 = vld [vmem:[%s497 + $0x4] sm:$0xf]
        %v524 = vld [vmem:[%s497 + $0x8] sm:$0xf]
        %v525 = vld [vmem:[%s497 + $0xc] sm:$0xf]
        %v526 = vunpack.c.l.bf16 %v522
        %v527 = vunpack.c.l.bf16 %v523
        %v528 = vunpack.c.l.bf16 %v524
        %v529 = vunpack.c.l.bf16 %v525
        %v530 = vmul.f32 %v526, 0.4
        %v531 = vmul.f32 %v527, 0.4
        %v532 = vmul.f32 %v528, 0.4
        %v533 = vmul.f32 %v529, 0.4
        %v534 = vadd.f32 %v518, %v530
        %v535 = vadd.f32 %v519, %v531
        %v536 = vadd.f32 %v520, %v532
        %v537 = vadd.f32 %v521, %v533
        %v538 = vld [vmem:[%s2] sm:$0xff]
        %v539 = vadd.f32 %v534, %v538
        %v540 = vadd.f32 %v535, %v538
        %v541 = vadd.f32 %v536, %v538
        %v542 = vadd.f32 %v537, %v538
        %v543 = vld [vmem:[%s3] sm:$0x1]
        %v544 = vld [vmem:[%s3 + $0x1] sm:$0x1]
        %vm545 = vcmask 261120
        %v546 = vsel %vm545, %v539, 0.0
        %547 = vadd.xlane.f32.xlu0 %v546
        %v548 = vpop.xlane.xlu0 %547
        %v549 = vsel %vm545, %v540, 0.0
        %550 = vadd.xlane.f32.xlu0 %v549
        %v551 = vpop.xlane.xlu0 %550
        %v552 = vsel %vm545, %v541, 0.0
        %553 = vadd.xlane.f32.xlu0 %v552
        %v554 = vpop.xlane.xlu0 %553
        %v555 = vsel %vm545, %v542, 0.0
        %556 = vadd.xlane.f32.xlu0 %v555
        %v557 = vpop.xlane.xlu0 %556
        %v558 = vrcp.pop 32.0
        %v559 = vmul.f32 32.0, %v558
        %v560 = vsub.f32 1.0, %v559
        %v561 = vmul.f32 %v558, %v560
        %v562 = vadd.f32 %v558, %v561
        %vm563 = vweird.f32 %v558
        %v564 = vsel %vm563, %v558, %v562
        %v565 = vmul.f32 %v548, %v564
        %v566 = vmul.f32 %v551, %v564
        %v567 = vmul.f32 %v554, %v564
        %v568 = vmul.f32 %v557, %v564
        %v569 = vsub.f32 %v539, %v565
        %v570 = vsub.f32 %v540, %v566
        %v571 = vsub.f32 %v541, %v567
        %v572 = vsub.f32 %v542, %v568
        %v573 = vmul.f32 %v569, %v569
        %v574 = vmul.f32 %v570, %v570
        %v575 = vmul.f32 %v571, %v571
        %v576 = vmul.f32 %v572, %v572
        %v577 = vsel %vm545, %v573, 0.0
        %578 = vadd.xlane.f32.xlu0 %v577
        %v579 = vpop.xlane.xlu0 %578
        %v580 = vsel %vm545, %v574, 0.0
        %581 = vadd.xlane.f32.xlu0 %v580
        %v582 = vpop.xlane.xlu0 %581
        %v583 = vsel %vm545, %v575, 0.0
        %584 = vadd.xlane.f32.xlu0 %v583
        %v585 = vpop.xlane.xlu0 %584
        %v586 = vsel %vm545, %v576, 0.0
        %587 = vadd.xlane.f32.xlu0 %v586
        %v588 = vpop.xlane.xlu0 %587
        %v589 = vmul.f32 %v579, %v564
        %v590 = vmul.f32 %v582, %v564
        %v591 = vmul.f32 %v585, %v564
        %v592 = vmul.f32 %v588, %v564
        %v593 = vadd.f32 %v589, 1e-05
        %v594 = vadd.f32 %v590, 1e-05
        %v595 = vadd.f32 %v591, 1e-05
        %v596 = vadd.f32 %v592, 1e-05
        %v597 = vrsqrt.pop %v593
        %v598 = vmul.f32 %v597, %v593
        %v599 = vmul.f32 %v598, %v597
        %v600 = vmul.f32 0.5, %v599
        %v601 = vsub.f32 1.5, %v600
        %v602 = vmul.f32 %v597, %v601
        %vm603 = vweird.f32 %v593
        %vm604 = vweird.f32 %v597
        %vm605 = vmor %vm603, %vm604
        %v606 = vsel %vm605, %v597, %v602
        %v607 = vrsqrt.pop %v594
        %v608 = vmul.f32 %v607, %v594
        %v609 = vmul.f32 %v608, %v607
        %v610 = vmul.f32 0.5, %v609
        %v611 = vsub.f32 1.5, %v610
        %v612 = vmul.f32 %v607, %v611
        %vm613 = vweird.f32 %v594
        %vm614 = vweird.f32 %v607
        %vm615 = vmor %vm613, %vm614
        %v616 = vsel %vm615, %v607, %v612
        %v617 = vrsqrt.pop %v595
        %v618 = vmul.f32 %v617, %v595
        %v619 = vmul.f32 %v618, %v617
        %v620 = vmul.f32 0.5, %v619
        %v621 = vsub.f32 1.5, %v620
        %v622 = vmul.f32 %v617, %v621
        %vm623 = vweird.f32 %v595
        %vm624 = vweird.f32 %v617
        %vm625 = vmor %vm623, %vm624
        %v626 = vsel %vm625, %v617, %v622
        %v627 = vrsqrt.pop %v596
        %v628 = vmul.f32 %v627, %v596
        %v629 = vmul.f32 %v628, %v627
        %v630 = vmul.f32 0.5, %v629
        %v631 = vsub.f32 1.5, %v630
        %v632 = vmul.f32 %v627, %v631
        %vm633 = vweird.f32 %v596
        %vm634 = vweird.f32 %v627
        %vm635 = vmor %vm633, %vm634
        %v636 = vsel %vm635, %v627, %v632
        %v637 = vmul.f32 %v569, %v606
        %v638 = vmul.f32 %v570, %v616
        %v639 = vmul.f32 %v571, %v626
        %v640 = vmul.f32 %v572, %v636
        %v641 = vperm.slane %v543, 0
        %v642 = vmul.f32 %v637, %v641
        %v643 = vmul.f32 %v638, %v641
        %v644 = vmul.f32 %v639, %v641
        %v645 = vmul.f32 %v640, %v641
        %v646 = vperm.slane %v544, 0
        %v647 = vadd.f32 %v642, %v646
        %v648 = vadd.f32 %v643, %v646
        %v649 = vadd.f32 %v644, %v646
        %v650 = vadd.f32 %v645, %v646
        %651 = vst.msk [vmem:[%s503] sm:$0xff] %vm545, %v647
        %652 = vst.msk [vmem:[%s503 + $0x8] sm:$0xff] %vm545, %v648
        %653 = vst.msk [vmem:[%s503 + $0x10] sm:$0xff] %vm545, %v649
        %654 = vst.msk [vmem:[%s503 + $0x18] sm:$0xff] %vm545, %v650
      $region80: #{scemima_forward.4} parent=75 // pred_fallthru
        _
      %v655 = vld [vmem:[%s503] sm:$0xff]
      %v656 = vld [vmem:[%s503 + $0x8] sm:$0xff]
      %v657 = vld [vmem:[%s503 + $0x10] sm:$0xff]
      %v658 = vld [vmem:[%s503 + $0x18] sm:$0xff]
      %v659 = vpack.c.bf16 %v656, %v655
      %v660 = vpack.c.bf16 %v658, %v657
      %s661 = smul.u32 %s30, 4
      %s662 = smul.addr %s661, 4
      %s663 = scalar_lea.vmem %s4, %s662
      %v664 = vld [vmem:[%s663] sm:$0xf]
      %v665 = vld [vmem:[%s663 + $0x4] sm:$0xf]
      %v666 = vld [vmem:[%s663 + $0x8] sm:$0xf]
      %v667 = vld [vmem:[%s663 + $0xc] sm:$0xf]
      %s668 = scalar_lea.vmem %s5, %s30
      %v669 = vld [vmem:[%s668] sm:$0x1]
      %v671 = vperm.slane %v669, 0
      %v677 = vunpack.c.l.b16 %v664
      %v678 = vunpack.c.l.b16 %v665
      %v679 = vunpack.c.l.b16 %v666
      %v680 = vunpack.c.l.b16 %v667
      %v681 = vpack.c.b16 %v678, %v677
      %v682 = vpack.c.b16 %v680, %v679
      %vm685 = vcmask 261120
      %v687 = vsel %vm685, %v659, 0
      %v690 = vsel %vm685, %v660, 0
      %692 = vmatpush.bf16.msra.mxu0 0
      %693 = vmatpush.bf16.msra.mxu0 0
      %694 = vmatpush.bf16.msra.mxu0 0
      %695 = vmatpush.bf16.msra.mxu0 0
      %696 = vmatpush.bf16.msra.mxu0 0
      %697 = vmatpush.bf16.msra.mxu0 0
      %698 = vmatpush.bf16.msra.mxu0 %v682
      %699 = vmatpush.bf16.msra.mxu0 %v681
      %700 = vmatmul.bf16.gmra.mxu0 %v687
      %v701 = vpop.f32.mrf.mxu0
      %v702 = vadd.f32 %v671, %v701
      %v703 = vpop.f32.mrf.mxu0
      %v704 = vadd.f32 %v671, %v703
      %705 = vmatmul.bf16.gmra.mxu0 %v690
      %v706 = vpop.f32.mrf.mxu0
      %v707 = vadd.f32 %v671, %v706
      %v708 = vpop.f32.mrf.mxu0
      %v709 = vadd.f32 %v671, %v708
      %710 = vdwg.mxu0
      %v711 = vlaneseq
      %v712 = vshrl.u32 %v711, 7
      %v713 = vlaneseq
      %v714 = vand.u32 %v713, 127
      %vm715 = vcmp.ge.s32.totalorder %v712, %v714
      %717 = vrot.lane.b32.xlu0 %v702, 96
      %v718 = vpop.permute.xlu0 %717
      %vm719 = vcmask 130048
      %v720 = vsel %vm719, %v702, 0
      %v722 = vsel %vm719, %v718, 0
      %724 = vmatpush.xpose.msra.mxu0 0.0
      %725 = vmatpush.xpose.msra.mxu0 0.0
      %726 = vmatpush.xpose.msra.mxu0 0.0
      %727 = vmatpush.xpose.msra.mxu0 0.0
      %728 = vmatpush.xpose.msra.mxu0 0.0
      %729 = vmatpush.xpose.msra.mxu0 0.0
      %730 = vmatpush.xpose.msra.mxu0 0.0
      %731 = vmatpush.xpose.msra.mxu0 0.0
      %732 = vmatpush.xpose.msra.mxu0 0.0
      %733 = vmatpush.xpose.msra.mxu0 0.0
      %734 = vmatpush.xpose.msra.mxu0 0.0
      %735 = vmatpush.xpose.msra.mxu0 0.0
      %736 = vmatpush.xpose.msra.mxu0 0.0
      %737 = vmatpush.xpose.msra.mxu0 0.0
      %738 = vmatpush.xpose.msra.mxu0 0.0
      %739 = vmatpush.xpose.msra.mxu0 %v722
      %740 = vmatmul.f32.gmra.mxu0 %v720
      %v741 = vpop.f32.mrf.mxu0
      %v742 = vadd.f32 0.0, %v741
      %743 = vdwg.mxu0
      %745 = vrot.lane.b32.xlu0 %v704, 96
      %v746 = vpop.permute.xlu0 %745
      %v747 = vsel %vm719, %v704, 0
      %v749 = vsel %vm719, %v746, 0
      %751 = vmatpush.xpose.msra.mxu0 0.0
      %752 = vmatpush.xpose.msra.mxu0 0.0
      %753 = vmatpush.xpose.msra.mxu0 0.0
      %754 = vmatpush.xpose.msra.mxu0 0.0
      %755 = vmatpush.xpose.msra.mxu0 0.0
      %756 = vmatpush.xpose.msra.mxu0 0.0
      %757 = vmatpush.xpose.msra.mxu0 0.0
      %758 = vmatpush.xpose.msra.mxu0 0.0
      %759 = vmatpush.xpose.msra.mxu0 0.0
      %760 = vmatpush.xpose.msra.mxu0 0.0
      %761 = vmatpush.xpose.msra.mxu0 0.0
      %762 = vmatpush.xpose.msra.mxu0 0.0
      %763 = vmatpush.xpose.msra.mxu0 0.0
      %764 = vmatpush.xpose.msra.mxu0 0.0
      %765 = vmatpush.xpose.msra.mxu0 0.0
      %766 = vmatpush.xpose.msra.mxu0 %v749
      %767 = vmatmul.f32.gmra.mxu0 %v747
      %v768 = vpop.f32.mrf.mxu0
      %v769 = vadd.f32 0.0, %v768
      %770 = vdwg.mxu0
      %772 = vrot.lane.b32.xlu0 %v707, 96
      %v773 = vpop.permute.xlu0 %772
      %v774 = vsel %vm719, %v707, 0
      %v776 = vsel %vm719, %v773, 0
      %778 = vmatpush.xpose.msra.mxu0 0.0
      %779 = vmatpush.xpose.msra.mxu0 0.0
      %780 = vmatpush.xpose.msra.mxu0 0.0
      %781 = vmatpush.xpose.msra.mxu0 0.0
      %782 = vmatpush.xpose.msra.mxu0 0.0
      %783 = vmatpush.xpose.msra.mxu0 0.0
      %784 = vmatpush.xpose.msra.mxu0 0.0
      %785 = vmatpush.xpose.msra.mxu0 0.0
      %786 = vmatpush.xpose.msra.mxu0 0.0
      %787 = vmatpush.xpose.msra.mxu0 0.0
      %788 = vmatpush.xpose.msra.mxu0 0.0
      %789 = vmatpush.xpose.msra.mxu0 0.0
      %790 = vmatpush.xpose.msra.mxu0 0.0
      %791 = vmatpush.xpose.msra.mxu0 0.0
      %792 = vmatpush.xpose.msra.mxu0 0.0
      %793 = vmatpush.xpose.msra.mxu0 %v776
      %794 = vmatmul.f32.gmra.mxu0 %v774
      %v795 = vpop.f32.mrf.mxu0
      %v796 = vadd.f32 0.0, %v795
      %797 = vdwg.mxu0
      %799 = vrot.lane.b32.xlu0 %v709, 96
      %v800 = vpop.permute.xlu0 %799
      %v801 = vsel %vm719, %v709, 0
      %v803 = vsel %vm719, %v800, 0
      %805 = vmatpush.xpose.msra.mxu0 0.0
      %806 = vmatpush.xpose.msra.mxu0 0.0
      %807 = vmatpush.xpose.msra.mxu0 0.0
      %808 = vmatpush.xpose.msra.mxu0 0.0
      %809 = vmatpush.xpose.msra.mxu0 0.0
      %810 = vmatpush.xpose.msra.mxu0 0.0
      %811 = vmatpush.xpose.msra.mxu0 0.0
      %812 = vmatpush.xpose.msra.mxu0 0.0
      %813 = vmatpush.xpose.msra.mxu0 0.0
      %814 = vmatpush.xpose.msra.mxu0 0.0
      %815 = vmatpush.xpose.msra.mxu0 0.0
      %816 = vmatpush.xpose.msra.mxu0 0.0
      %817 = vmatpush.xpose.msra.mxu0 0.0
      %818 = vmatpush.xpose.msra.mxu0 0.0
      %819 = vmatpush.xpose.msra.mxu0 0.0
      %820 = vmatpush.xpose.msra.mxu0 %v803
      %821 = vmatmul.f32.gmra.mxu0 %v801
      %v822 = vpop.f32.mrf.mxu0
      %v823 = vadd.f32 0.0, %v822
      %824 = vdwg.mxu0
      %v825 = vmul.f32 %v742, 0.25
      %v826 = vmul.f32 %v769, 0.25
      %v827 = vmul.f32 %v796, 0.25
      %v828 = vmul.f32 %v823, 0.25
      %v829 = vsel %vm715, 1, 0
      %vm830 = vcmp.eq.s32.totalorder %v829, 1
      %v831 = vsel %vm830, %v825, -1e+30
      %v832 = vsel %vm830, %v826, -1e+30
      %v833 = vsel %vm830, %v827, -1e+30
      %v834 = vsel %vm830, %v828, -1e+30
      %vm835 = vcmask 64512
      %v836 = vsel %vm835, %v831, -inf
      %837 = vmax.xlane.f32.xlu0 %v836
      %v838 = vpop.xlane.xlu0 %837
      %v839 = vsel %vm835, %v832, -inf
      %840 = vmax.xlane.f32.xlu0 %v839
      %v841 = vpop.xlane.xlu0 %840
      %v842 = vsel %vm835, %v833, -inf
      %843 = vmax.xlane.f32.xlu0 %v842
      %v844 = vpop.xlane.xlu0 %843
      %v845 = vsel %vm835, %v834, -inf
      %846 = vmax.xlane.f32.xlu0 %v845
      %v847 = vpop.xlane.xlu0 %846
      %v848 = vsub.f32 %v831, %v838
      %v849 = vsub.f32 %v832, %v841
      %v850 = vsub.f32 %v833, %v844
      %v851 = vsub.f32 %v834, %v847
      %v852 = vmul.f32 %v848, 1.442695
      %v853 = vpow.pop %v852
      %v854 = vmul.f32 %v849, 1.442695
      %v855 = vpow.pop %v854
      %v856 = vmul.f32 %v850, 1.442695
      %v857 = vpow.pop %v856
      %v858 = vmul.f32 %v851, 1.442695
      %v859 = vpow.pop %v858
      %v860 = vsel %vm835, %v853, 0.0
      %861 = vadd.xlane.f32.xlu0 %v860
      %v862 = vpop.xlane.xlu0 %861
      %v863 = vsel %vm835, %v855, 0.0
      %864 = vadd.xlane.f32.xlu0 %v863
      %v865 = vpop.xlane.xlu0 %864
      %v866 = vsel %vm835, %v857, 0.0
      %867 = vadd.xlane.f32.xlu0 %v866
      %v868 = vpop.xlane.xlu0 %867
      %v869 = vsel %vm835, %v859, 0.0
      %870 = vadd.xlane.f32.xlu0 %v869
      %v871 = vpop.xlane.xlu0 %870
      %v872 = vrcp.pop %v862
      %v873 = vrcp.pop %v865
      %v874 = vrcp.pop %v868
      %v875 = vrcp.pop %v871
      %v876 = vmul.f32 %v853, %v872
      %v877 = vmul.f32 %v855, %v873
      %v878 = vmul.f32 %v857, %v874
      %v879 = vmul.f32 %v859, %v875
      %880 = vrot.lane.b32.xlu0 %v702, 64
      %v881 = vpop.permute.xlu0 %880
      %v884 = vsel %vm835, %v876, 0
      %886 = vmatpush.msra.mxu0 0.0
      %887 = vmatpush.msra.mxu0 0.0
      %888 = vmatpush.msra.mxu0 0.0
      %889 = vmatpush.msra.mxu0 0.0
      %890 = vmatpush.msra.mxu0 0.0
      %891 = vmatpush.msra.mxu0 0.0
      %892 = vmatpush.msra.mxu0 0.0
      %893 = vmatpush.msra.mxu0 0.0
      %894 = vmatpush.msra.mxu0 0.0
      %895 = vmatpush.msra.mxu0 0.0
      %896 = vmatpush.msra.mxu0 0.0
      %897 = vmatpush.msra.mxu0 0.0
      %898 = vmatpush.msra.mxu0 0.0
      %899 = vmatpush.msra.mxu0 0.0
      %900 = vmatpush.msra.mxu0 0.0
      %901 = vmatpush.msra.mxu0 %v881
      %902 = vmatmul.f32.gmra.mxu0 %v884
      %v903 = vpop.f32.mrf.mxu0
      %v904 = vadd.f32 0.0, %v903
      %905 = vdwg.mxu0
      %906 = vrot.lane.b32.xlu0 %v704, 64
      %v907 = vpop.permute.xlu0 %906
      %v910 = vsel %vm835, %v877, 0
      %912 = vmatpush.msra.mxu0 0.0
      %913 = vmatpush.msra.mxu0 0.0
      %914 = vmatpush.msra.mxu0 0.0
      %915 = vmatpush.msra.mxu0 0.0
      %916 = vmatpush.msra.mxu0 0.0
      %917 = vmatpush.msra.mxu0 0.0
      %918 = vmatpush.msra.mxu0 0.0
      %919 = vmatpush.msra.mxu0 0.0
      %920 = vmatpush.msra.mxu0 0.0
      %921 = vmatpush.msra.mxu0 0.0
      %922 = vmatpush.msra.mxu0 0.0
      %923 = vmatpush.msra.mxu0 0.0
      %924 = vmatpush.msra.mxu0 0.0
      %925 = vmatpush.msra.mxu0 0.0
      %926 = vmatpush.msra.mxu0 0.0
      %927 = vmatpush.msra.mxu0 %v907
      %928 = vmatmul.f32.gmra.mxu0 %v910
      %v929 = vpop.f32.mrf.mxu0
      %v930 = vadd.f32 0.0, %v929
      %931 = vdwg.mxu0
      %932 = vrot.lane.b32.xlu0 %v707, 64
      %v933 = vpop.permute.xlu0 %932
      %v936 = vsel %vm835, %v878, 0
      %938 = vmatpush.msra.mxu0 0.0
      %939 = vmatpush.msra.mxu0 0.0
      %940 = vmatpush.msra.mxu0 0.0
      %941 = vmatpush.msra.mxu0 0.0
      %942 = vmatpush.msra.mxu0 0.0
      %943 = vmatpush.msra.mxu0 0.0
      %944 = vmatpush.msra.mxu0 0.0
      %945 = vmatpush.msra.mxu0 0.0
      %946 = vmatpush.msra.mxu0 0.0
      %947 = vmatpush.msra.mxu0 0.0
      %948 = vmatpush.msra.mxu0 0.0
      %949 = vmatpush.msra.mxu0 0.0
      %950 = vmatpush.msra.mxu0 0.0
      %951 = vmatpush.msra.mxu0 0.0
      %952 = vmatpush.msra.mxu0 0.0
      %953 = vmatpush.msra.mxu0 %v933
      %954 = vmatmul.f32.gmra.mxu0 %v936
      %v955 = vpop.f32.mrf.mxu0
      %v956 = vadd.f32 0.0, %v955
      %957 = vdwg.mxu0
      %958 = vrot.lane.b32.xlu0 %v709, 64
      %v959 = vpop.permute.xlu0 %958
      %v962 = vsel %vm835, %v879, 0
      %964 = vmatpush.msra.mxu0 0.0
      %965 = vmatpush.msra.mxu0 0.0
      %966 = vmatpush.msra.mxu0 0.0
      %967 = vmatpush.msra.mxu0 0.0
      %968 = vmatpush.msra.mxu0 0.0
      %969 = vmatpush.msra.mxu0 0.0
      %970 = vmatpush.msra.mxu0 0.0
      %971 = vmatpush.msra.mxu0 0.0
      %972 = vmatpush.msra.mxu0 0.0
      %973 = vmatpush.msra.mxu0 0.0
      %974 = vmatpush.msra.mxu0 0.0
      %975 = vmatpush.msra.mxu0 0.0
      %976 = vmatpush.msra.mxu0 0.0
      %977 = vmatpush.msra.mxu0 0.0
      %978 = vmatpush.msra.mxu0 0.0
      %979 = vmatpush.msra.mxu0 %v959
      %980 = vmatmul.f32.gmra.mxu0 %v962
      %v981 = vpop.f32.mrf.mxu0
      %v982 = vadd.f32 0.0, %v981
      %983 = vdwg.mxu0
      %984 = vrot.lane.b32.xlu0 %v702, 112
      %v985 = vpop.permute.xlu0 %984
      %986 = vrot.lane.b32.xlu0 %v702, 80
      %v987 = vpop.permute.xlu0 %986
      %v988 = vsel %vm719, %v985, 0
      %v990 = vsel %vm719, %v987, 0
      %992 = vmatpush.xpose.msra.mxu0 0.0
      %993 = vmatpush.xpose.msra.mxu0 0.0
      %994 = vmatpush.xpose.msra.mxu0 0.0
      %995 = vmatpush.xpose.msra.mxu0 0.0
      %996 = vmatpush.xpose.msra.mxu0 0.0
      %997 = vmatpush.xpose.msra.mxu0 0.0
      %998 = vmatpush.xpose.msra.mxu0 0.0
      %999 = vmatpush.xpose.msra.mxu0 0.0
      %1000 = vmatpush.xpose.msra.mxu0 0.0
      %1001 = vmatpush.xpose.msra.mxu0 0.0
      %1002 = vmatpush.xpose.msra.mxu0 0.0
      %1003 = vmatpush.xpose.msra.mxu0 0.0
      %1004 = vmatpush.xpose.msra.mxu0 0.0
      %1005 = vmatpush.xpose.msra.mxu0 0.0
      %1006 = vmatpush.xpose.msra.mxu0 0.0
      %1007 = vmatpush.xpose.msra.mxu0 %v990
      %1008 = vmatmul.f32.gmra.mxu0 %v988
      %v1009 = vpop.f32.mrf.mxu0
      %v1010 = vadd.f32 0.0, %v1009
      %1011 = vdwg.mxu0
      %1012 = vrot.lane.b32.xlu0 %v704, 112
      %v1013 = vpop.permute.xlu0 %1012
      %1014 = vrot.lane.b32.xlu0 %v704, 80
      %v1015 = vpop.permute.xlu0 %1014
      %v1016 = vsel %vm719, %v1013, 0
      %v1018 = vsel %vm719, %v1015, 0
      %1020 = vmatpush.xpose.msra.mxu0 0.0
      %1021 = vmatpush.xpose.msra.mxu0 0.0
      %1022 = vmatpush.xpose.msra.mxu0 0.0
      %1023 = vmatpush.xpose.msra.mxu0 0.0
      %1024 = vmatpush.xpose.msra.mxu0 0.0
      %1025 = vmatpush.xpose.msra.mxu0 0.0
      %1026 = vmatpush.xpose.msra.mxu0 0.0
      %1027 = vmatpush.xpose.msra.mxu0 0.0
      %1028 = vmatpush.xpose.msra.mxu0 0.0
      %1029 = vmatpush.xpose.msra.mxu0 0.0
      %1030 = vmatpush.xpose.msra.mxu0 0.0
      %1031 = vmatpush.xpose.msra.mxu0 0.0
      %1032 = vmatpush.xpose.msra.mxu0 0.0
      %1033 = vmatpush.xpose.msra.mxu0 0.0
      %1034 = vmatpush.xpose.msra.mxu0 0.0
      %1035 = vmatpush.xpose.msra.mxu0 %v1018
      %1036 = vmatmul.f32.gmra.mxu0 %v1016
      %v1037 = vpop.f32.mrf.mxu0
      %v1038 = vadd.f32 0.0, %v1037
      %1039 = vdwg.mxu0
      %1040 = vrot.lane.b32.xlu0 %v707, 112
      %v1041 = vpop.permute.xlu0 %1040
      %1042 = vrot.lane.b32.xlu0 %v707, 80
      %v1043 = vpop.permute.xlu0 %1042
      %v1044 = vsel %vm719, %v1041, 0
      %v1046 = vsel %vm719, %v1043, 0
      %1048 = vmatpush.xpose.msra.mxu0 0.0
      %1049 = vmatpush.xpose.msra.mxu0 0.0
      %1050 = vmatpush.xpose.msra.mxu0 0.0
      %1051 = vmatpush.xpose.msra.mxu0 0.0
      %1052 = vmatpush.xpose.msra.mxu0 0.0
      %1053 = vmatpush.xpose.msra.mxu0 0.0
      %1054 = vmatpush.xpose.msra.mxu0 0.0
      %1055 = vmatpush.xpose.msra.mxu0 0.0
      %1056 = vmatpush.xpose.msra.mxu0 0.0
      %1057 = vmatpush.xpose.msra.mxu0 0.0
      %1058 = vmatpush.xpose.msra.mxu0 0.0
      %1059 = vmatpush.xpose.msra.mxu0 0.0
      %1060 = vmatpush.xpose.msra.mxu0 0.0
      %1061 = vmatpush.xpose.msra.mxu0 0.0
      %1062 = vmatpush.xpose.msra.mxu0 0.0
      %1063 = vmatpush.xpose.msra.mxu0 %v1046
      %1064 = vmatmul.f32.gmra.mxu0 %v1044
      %v1065 = vpop.f32.mrf.mxu0
      %v1066 = vadd.f32 0.0, %v1065
      %1067 = vdwg.mxu0
      %1068 = vrot.lane.b32.xlu0 %v709, 112
      %v1069 = vpop.permute.xlu0 %1068
      %1070 = vrot.lane.b32.xlu0 %v709, 80
      %v1071 = vpop.permute.xlu0 %1070
      %v1072 = vsel %vm719, %v1069, 0
      %v1074 = vsel %vm719, %v1071, 0
      %1076 = vmatpush.xpose.msra.mxu0 0.0
      %1077 = vmatpush.xpose.msra.mxu0 0.0
      %1078 = vmatpush.xpose.msra.mxu0 0.0
      %1079 = vmatpush.xpose.msra.mxu0 0.0
      %1080 = vmatpush.xpose.msra.mxu0 0.0
      %1081 = vmatpush.xpose.msra.mxu0 0.0
      %1082 = vmatpush.xpose.msra.mxu0 0.0
      %1083 = vmatpush.xpose.msra.mxu0 0.0
      %1084 = vmatpush.xpose.msra.mxu0 0.0
      %1085 = vmatpush.xpose.msra.mxu0 0.0
      %1086 = vmatpush.xpose.msra.mxu0 0.0
      %1087 = vmatpush.xpose.msra.mxu0 0.0
      %1088 = vmatpush.xpose.msra.mxu0 0.0
      %1089 = vmatpush.xpose.msra.mxu0 0.0
      %1090 = vmatpush.xpose.msra.mxu0 0.0
      %1091 = vmatpush.xpose.msra.mxu0 %v1074
      %1092 = vmatmul.f32.gmra.mxu0 %v1072
      %v1093 = vpop.f32.mrf.mxu0
      %v1094 = vadd.f32 0.0, %v1093
      %1095 = vdwg.mxu0
      %v1096 = vmul.f32 %v1010, 0.25
      %v1097 = vmul.f32 %v1038, 0.25
      %v1098 = vmul.f32 %v1066, 0.25
      %v1099 = vmul.f32 %v1094, 0.25
      %v1100 = vsel %vm830, %v1096, -1e+30
      %v1101 = vsel %vm830, %v1097, -1e+30
      %v1102 = vsel %vm830, %v1098, -1e+30
      %v1103 = vsel %vm830, %v1099, -1e+30
      %v1104 = vsel %vm835, %v1100, -inf
      %1105 = vmax.xlane.f32.xlu0 %v1104
      %v1106 = vpop.xlane.xlu0 %1105
      %v1107 = vsel %vm835, %v1101, -inf
      %1108 = vmax.xlane.f32.xlu0 %v1107
      %v1109 = vpop.xlane.xlu0 %1108
      %v1110 = vsel %vm835, %v1102, -inf
      %1111 = vmax.xlane.f32.xlu0 %v1110
      %v1112 = vpop.xlane.xlu0 %1111
      %v1113 = vsel %vm835, %v1103, -inf
      %1114 = vmax.xlane.f32.xlu0 %v1113
      %v1115 = vpop.xlane.xlu0 %1114
      %v1116 = vsub.f32 %v1100, %v1106
      %v1117 = vsub.f32 %v1101, %v1109
      %v1118 = vsub.f32 %v1102, %v1112
      %v1119 = vsub.f32 %v1103, %v1115
      %v1120 = vmul.f32 %v1116, 1.442695
      %v1121 = vpow.pop %v1120
      %v1122 = vmul.f32 %v1117, 1.442695
      %v1123 = vpow.pop %v1122
      %v1124 = vmul.f32 %v1118, 1.442695
      %v1125 = vpow.pop %v1124
      %v1126 = vmul.f32 %v1119, 1.442695
      %v1127 = vpow.pop %v1126
      %v1128 = vsel %vm835, %v1121, 0.0
      %1129 = vadd.xlane.f32.xlu0 %v1128
      %v1130 = vpop.xlane.xlu0 %1129
      %v1131 = vsel %vm835, %v1123, 0.0
      %1132 = vadd.xlane.f32.xlu0 %v1131
      %v1133 = vpop.xlane.xlu0 %1132
      %v1134 = vsel %vm835, %v1125, 0.0
      %1135 = vadd.xlane.f32.xlu0 %v1134
      %v1136 = vpop.xlane.xlu0 %1135
      %v1137 = vsel %vm835, %v1127, 0.0
      %1138 = vadd.xlane.f32.xlu0 %v1137
      %v1139 = vpop.xlane.xlu0 %1138
      %v1140 = vrcp.pop %v1130
      %v1141 = vrcp.pop %v1133
      %v1142 = vrcp.pop %v1136
      %v1143 = vrcp.pop %v1139
      %v1144 = vmul.f32 %v1121, %v1140
      %v1145 = vmul.f32 %v1123, %v1141
      %v1146 = vmul.f32 %v1125, %v1142
      %v1147 = vmul.f32 %v1127, %v1143
      %1148 = vrot.lane.b32.xlu0 %v702, 48
      %v1149 = vpop.permute.xlu0 %1148
      %v1152 = vsel %vm835, %v1144, 0
      %1154 = vmatpush.msra.mxu0 0.0
      %1155 = vmatpush.msra.mxu0 0.0
      %1156 = vmatpush.msra.mxu0 0.0
      %1157 = vmatpush.msra.mxu0 0.0
      %1158 = vmatpush.msra.mxu0 0.0
      %1159 = vmatpush.msra.mxu0 0.0
      %1160 = vmatpush.msra.mxu0 0.0
      %1161 = vmatpush.msra.mxu0 0.0
      %1162 = vmatpush.msra.mxu0 0.0
      %1163 = vmatpush.msra.mxu0 0.0
      %1164 = vmatpush.msra.mxu0 0.0
      %1165 = vmatpush.msra.mxu0 0.0
      %1166 = vmatpush.msra.mxu0 0.0
      %1167 = vmatpush.msra.mxu0 0.0
      %1168 = vmatpush.msra.mxu0 0.0
      %1169 = vmatpush.msra.mxu0 %v1149
      %1170 = vmatmul.f32.gmra.mxu0 %v1152
      %v1171 = vpop.f32.mrf.mxu0
      %v1172 = vadd.f32 0.0, %v1171
      %1173 = vdwg.mxu0
      %1174 = vrot.lane.b32.xlu0 %v704, 48
      %v1175 = vpop.permute.xlu0 %1174
      %v1178 = vsel %vm835, %v1145, 0
      %1180 = vmatpush.msra.mxu0 0.0
      %1181 = vmatpush.msra.mxu0 0.0
      %1182 = vmatpush.msra.mxu0 0.0
      %1183 = vmatpush.msra.mxu0 0.0
      %1184 = vmatpush.msra.mxu0 0.0
      %1185 = vmatpush.msra.mxu0 0.0
      %1186 = vmatpush.msra.mxu0 0.0
      %1187 = vmatpush.msra.mxu0 0.0
      %1188 = vmatpush.msra.mxu0 0.0
      %1189 = vmatpush.msra.mxu0 0.0
      %1190 = vmatpush.msra.mxu0 0.0
      %1191 = vmatpush.msra.mxu0 0.0
      %1192 = vmatpush.msra.mxu0 0.0
      %1193 = vmatpush.msra.mxu0 0.0
      %1194 = vmatpush.msra.mxu0 0.0
      %1195 = vmatpush.msra.mxu0 %v1175
      %1196 = vmatmul.f32.gmra.mxu0 %v1178
      %v1197 = vpop.f32.mrf.mxu0
      %v1198 = vadd.f32 0.0, %v1197
      %1199 = vdwg.mxu0
      %1200 = vrot.lane.b32.xlu0 %v707, 48
      %v1201 = vpop.permute.xlu0 %1200
      %v1204 = vsel %vm835, %v1146, 0
      %1206 = vmatpush.msra.mxu0 0.0
      %1207 = vmatpush.msra.mxu0 0.0
      %1208 = vmatpush.msra.mxu0 0.0
      %1209 = vmatpush.msra.mxu0 0.0
      %1210 = vmatpush.msra.mxu0 0.0
      %1211 = vmatpush.msra.mxu0 0.0
      %1212 = vmatpush.msra.mxu0 0.0
      %1213 = vmatpush.msra.mxu0 0.0
      %1214 = vmatpush.msra.mxu0 0.0
      %1215 = vmatpush.msra.mxu0 0.0
      %1216 = vmatpush.msra.mxu0 0.0
      %1217 = vmatpush.msra.mxu0 0.0
      %1218 = vmatpush.msra.mxu0 0.0
      %1219 = vmatpush.msra.mxu0 0.0
      %1220 = vmatpush.msra.mxu0 0.0
      %1221 = vmatpush.msra.mxu0 %v1201
      %1222 = vmatmul.f32.gmra.mxu0 %v1204
      %v1223 = vpop.f32.mrf.mxu0
      %v1224 = vadd.f32 0.0, %v1223
      %1225 = vdwg.mxu0
      %1226 = vrot.lane.b32.xlu0 %v709, 48
      %v1227 = vpop.permute.xlu0 %1226
      %v1230 = vsel %vm835, %v1147, 0
      %1232 = vmatpush.msra.mxu0 0.0
      %1233 = vmatpush.msra.mxu0 0.0
      %1234 = vmatpush.msra.mxu0 0.0
      %1235 = vmatpush.msra.mxu0 0.0
      %1236 = vmatpush.msra.mxu0 0.0
      %1237 = vmatpush.msra.mxu0 0.0
      %1238 = vmatpush.msra.mxu0 0.0
      %1239 = vmatpush.msra.mxu0 0.0
      %1240 = vmatpush.msra.mxu0 0.0
      %1241 = vmatpush.msra.mxu0 0.0
      %1242 = vmatpush.msra.mxu0 0.0
      %1243 = vmatpush.msra.mxu0 0.0
      %1244 = vmatpush.msra.mxu0 0.0
      %1245 = vmatpush.msra.mxu0 0.0
      %1246 = vmatpush.msra.mxu0 0.0
      %1247 = vmatpush.msra.mxu0 %v1227
      %1248 = vmatmul.f32.gmra.mxu0 %v1230
      %v1249 = vpop.f32.mrf.mxu0
      %v1250 = vadd.f32 0.0, %v1249
      %1251 = vdwg.mxu0
      %1256 = vrot.lane.b32.xlu0 %v1172, 16
      %v1257 = vpop.permute.xlu0 %1256
      %1258 = vrot.lane.b32.xlu0 %v1198, 16
      %v1259 = vpop.permute.xlu0 %1258
      %1260 = vrot.lane.b32.xlu0 %v1224, 16
      %v1261 = vpop.permute.xlu0 %1260
      %1262 = vrot.lane.b32.xlu0 %v1250, 16
      %v1263 = vpop.permute.xlu0 %1262
      %v1268 = vsel %vm719, %v904, %v1257
      %v1269 = vsel %vm719, %v930, %v1259
      %v1270 = vsel %vm719, %v956, %v1261
      %v1271 = vsel %vm719, %v982, %v1263
      %v1272 = vpack.c.bf16 %v1269, %v1268
      %v1273 = vpack.c.bf16 %v1271, %v1270
      %s1274 = smul.addr %s661, 4
      %s1275 = scalar_lea.vmem %s6, %s1274
      %v1276 = vld [vmem:[%s1275] sm:$0xf]
      %v1277 = vld [vmem:[%s1275 + $0x4] sm:$0xf]
      %v1278 = vld [vmem:[%s1275 + $0x8] sm:$0xf]
      %v1279 = vld [vmem:[%s1275 + $0xc] sm:$0xf]
      %s1280 = scalar_lea.vmem %s7, %s30
      %v1281 = vld [vmem:[%s1280] sm:$0x1]
      %v1283 = vperm.slane %v1281, 0
      %v1289 = vunpack.c.l.b16 %v1276
      %v1290 = vunpack.c.l.b16 %v1277
      %v1291 = vunpack.c.l.b16 %v1278
      %v1292 = vunpack.c.l.b16 %v1279
      %v1293 = vpack.c.b16 %v1290, %v1289
      %v1294 = vpack.c.b16 %v1292, %v1291
      %v1298 = vsel %vm685, %v1272, 0
      %v1301 = vsel %vm685, %v1273, 0
      %1303 = vmatpush.bf16.msra.mxu0 0
      %1304 = vmatpush.bf16.msra.mxu0 0
      %1305 = vmatpush.bf16.msra.mxu0 0
      %1306 = vmatpush.bf16.msra.mxu0 0
      %1307 = vmatpush.bf16.msra.mxu0 0
      %1308 = vmatpush.bf16.msra.mxu0 0
      %1309 = vmatpush.bf16.msra.mxu0 %v1294
      %1310 = vmatpush.bf16.msra.mxu0 %v1293
      %1311 = vmatmul.bf16.gmra.mxu0 %v1298
      %v1312 = vpop.f32.mrf.mxu0
      %v1313 = vadd.f32 %v1283, %v1312
      %v1314 = vpop.f32.mrf.mxu0
      %v1315 = vadd.f32 %v1283, %v1314
      %1316 = vmatmul.bf16.gmra.mxu0 %v1301
      %v1317 = vpop.f32.mrf.mxu0
      %v1318 = vadd.f32 %v1283, %v1317
      %v1319 = vpop.f32.mrf.mxu0
      %v1320 = vadd.f32 %v1283, %v1319
      %1321 = vdwg.mxu0
      %s1322 = smul.u32 %s30, 2
      %s1323 = scalar_lea.vmem %s8, %s1322
      %v1324 = vld [vmem:[%s1323] sm:$0x3]
      %v1325 = vadd.f32 %v655, %v1313
      %v1326 = vadd.f32 %v656, %v1315
      %v1327 = vadd.f32 %v657, %v1318
      %v1328 = vadd.f32 %v658, %v1320
      %v1329 = vsel %vm685, %v1325, 0.0
      %1330 = vadd.xlane.f32.xlu0 %v1329
      %v1331 = vpop.xlane.xlu0 %1330
      %v1332 = vsel %vm685, %v1326, 0.0
      %1333 = vadd.xlane.f32.xlu0 %v1332
      %v1334 = vpop.xlane.xlu0 %1333
      %v1335 = vsel %vm685, %v1327, 0.0
      %1336 = vadd.xlane.f32.xlu0 %v1335
      %v1337 = vpop.xlane.xlu0 %1336
      %v1338 = vsel %vm685, %v1328, 0.0
      %1339 = vadd.xlane.f32.xlu0 %v1338
      %v1340 = vpop.xlane.xlu0 %1339
      %v1341 = vrcp.pop 32.0
      %v1342 = vmul.f32 32.0, %v1341
      %v1343 = vsub.f32 1.0, %v1342
      %v1344 = vmul.f32 %v1341, %v1343
      %v1345 = vadd.f32 %v1341, %v1344
      %vm1346 = vweird.f32 %v1341
      %v1347 = vsel %vm1346, %v1341, %v1345
      %v1348 = vmul.f32 %v1331, %v1347
      %v1349 = vmul.f32 %v1334, %v1347
      %v1350 = vmul.f32 %v1337, %v1347
      %v1351 = vmul.f32 %v1340, %v1347
      %v1352 = vsub.f32 %v1325, %v1348
      %v1353 = vsub.f32 %v1326, %v1349
      %v1354 = vsub.f32 %v1327, %v1350
      %v1355 = vsub.f32 %v1328, %v1351
      %v1356 = vmul.f32 %v1352, %v1352
      %v1357 = vmul.f32 %v1353, %v1353
      %v1358 = vmul.f32 %v1354, %v1354
      %v1359 = vmul.f32 %v1355, %v1355
      %v1360 = vsel %vm685, %v1356, 0.0
      %1361 = vadd.xlane.f32.xlu0 %v1360
      %v1362 = vpop.xlane.xlu0 %1361
      %v1363 = vsel %vm685, %v1357, 0.0
      %1364 = vadd.xlane.f32.xlu0 %v1363
      %v1365 = vpop.xlane.xlu0 %1364
      %v1366 = vsel %vm685, %v1358, 0.0
      %1367 = vadd.xlane.f32.xlu0 %v1366
      %v1368 = vpop.xlane.xlu0 %1367
      %v1369 = vsel %vm685, %v1359, 0.0
      %1370 = vadd.xlane.f32.xlu0 %v1369
      %v1371 = vpop.xlane.xlu0 %1370
      %v1372 = vmul.f32 %v1362, %v1347
      %v1373 = vmul.f32 %v1365, %v1347
      %v1374 = vmul.f32 %v1368, %v1347
      %v1375 = vmul.f32 %v1371, %v1347
      %v1376 = vadd.f32 %v1372, 1e-05
      %v1377 = vadd.f32 %v1373, 1e-05
      %v1378 = vadd.f32 %v1374, 1e-05
      %v1379 = vadd.f32 %v1375, 1e-05
      %v1380 = vrsqrt.pop %v1376
      %v1381 = vmul.f32 %v1380, %v1376
      %v1382 = vmul.f32 %v1381, %v1380
      %v1383 = vmul.f32 0.5, %v1382
      %v1384 = vsub.f32 1.5, %v1383
      %v1385 = vmul.f32 %v1380, %v1384
      %vm1386 = vweird.f32 %v1376
      %vm1387 = vweird.f32 %v1380
      %vm1388 = vmor %vm1386, %vm1387
      %v1389 = vsel %vm1388, %v1380, %v1385
      %v1390 = vrsqrt.pop %v1377
      %v1391 = vmul.f32 %v1390, %v1377
      %v1392 = vmul.f32 %v1391, %v1390
      %v1393 = vmul.f32 0.5, %v1392
      %v1394 = vsub.f32 1.5, %v1393
      %v1395 = vmul.f32 %v1390, %v1394
      %vm1396 = vweird.f32 %v1377
      %vm1397 = vweird.f32 %v1390
      %vm1398 = vmor %vm1396, %vm1397
      %v1399 = vsel %vm1398, %v1390, %v1395
      %v1400 = vrsqrt.pop %v1378
      %v1401 = vmul.f32 %v1400, %v1378
      %v1402 = vmul.f32 %v1401, %v1400
      %v1403 = vmul.f32 0.5, %v1402
      %v1404 = vsub.f32 1.5, %v1403
      %v1405 = vmul.f32 %v1400, %v1404
      %vm1406 = vweird.f32 %v1378
      %vm1407 = vweird.f32 %v1400
      %vm1408 = vmor %vm1406, %vm1407
      %v1409 = vsel %vm1408, %v1400, %v1405
      %v1410 = vrsqrt.pop %v1379
      %v1411 = vmul.f32 %v1410, %v1379
      %v1412 = vmul.f32 %v1411, %v1410
      %v1413 = vmul.f32 0.5, %v1412
      %v1414 = vsub.f32 1.5, %v1413
      %v1415 = vmul.f32 %v1410, %v1414
      %vm1416 = vweird.f32 %v1379
      %vm1417 = vweird.f32 %v1410
      %vm1418 = vmor %vm1416, %vm1417
      %v1419 = vsel %vm1418, %v1410, %v1415
      %v1420 = vmul.f32 %v1352, %v1389
      %v1421 = vmul.f32 %v1353, %v1399
      %v1422 = vmul.f32 %v1354, %v1409
      %v1423 = vmul.f32 %v1355, %v1419
      %v1424 = vperm.slane %v1324, 0
      %v1425 = vmul.f32 %v1420, %v1424
      %v1426 = vmul.f32 %v1421, %v1424
      %v1427 = vmul.f32 %v1422, %v1424
      %v1428 = vmul.f32 %v1423, %v1424
      %v1429 = vperm.slane %v1324, 1
      %v1430 = vadd.f32 %v1425, %v1429
      %v1431 = vadd.f32 %v1426, %v1429
      %v1432 = vadd.f32 %v1427, %v1429
      %v1433 = vadd.f32 %v1428, %v1429
      %v1434 = vpack.c.bf16 %v1431, %v1430
      %v1435 = vpack.c.bf16 %v1433, %v1432
      %s1436 = smul.u32 %s30, 64
      %s1437 = smul.addr %s1436, 4
      %s1438 = scalar_lea.vmem %s9, %s1437
      %v1439 = vld [vmem:[%s1438] sm:$0xff]
      %v1440 = vld [vmem:[%s1438 + $0x8] sm:$0xff]
      %v1441 = vld [vmem:[%s1438 + $0x10] sm:$0xff]
      %v1442 = vld [vmem:[%s1438 + $0x18] sm:$0xff]
      %v1443 = vld [vmem:[%s1438 + $0x20] sm:$0xff]
      %v1444 = vld [vmem:[%s1438 + $0x28] sm:$0xff]
      %v1445 = vld [vmem:[%s1438 + $0x30] sm:$0xff]
      %v1446 = vld [vmem:[%s1438 + $0x38] sm:$0xff]
      %v1447 = vld [vmem:[%s1438 + $0x40] sm:$0xff]
      %v1448 = vld [vmem:[%s1438 + $0x48] sm:$0xff]
      %v1449 = vld [vmem:[%s1438 + $0x50] sm:$0xff]
      %v1450 = vld [vmem:[%s1438 + $0x58] sm:$0xff]
      %v1451 = vld [vmem:[%s1438 + $0x60] sm:$0xff]
      %v1452 = vld [vmem:[%s1438 + $0x68] sm:$0xff]
      %v1453 = vld [vmem:[%s1438 + $0x70] sm:$0xff]
      %v1454 = vld [vmem:[%s1438 + $0x78] sm:$0xff]
      %v1455 = vld [vmem:[%s1438 + $0x80] sm:$0xff]
      %v1456 = vld [vmem:[%s1438 + $0x88] sm:$0xff]
      %v1457 = vld [vmem:[%s1438 + $0x90] sm:$0xff]
      %v1458 = vld [vmem:[%s1438 + $0x98] sm:$0xff]
      %v1459 = vld [vmem:[%s1438 + $0xa0] sm:$0xff]
      %v1460 = vld [vmem:[%s1438 + $0xa8] sm:$0xff]
      %v1461 = vld [vmem:[%s1438 + $0xb0] sm:$0xff]
      %v1462 = vld [vmem:[%s1438 + $0xb8] sm:$0xff]
      %v1463 = vld [vmem:[%s1438 + $0xc0] sm:$0xff]
      %v1464 = vld [vmem:[%s1438 + $0xc8] sm:$0xff]
      %v1465 = vld [vmem:[%s1438 + $0xd0] sm:$0xff]
      %v1466 = vld [vmem:[%s1438 + $0xd8] sm:$0xff]
      %v1467 = vld [vmem:[%s1438 + $0xe0] sm:$0xff]
      %v1468 = vld [vmem:[%s1438 + $0xe8] sm:$0xff]
      %v1469 = vld [vmem:[%s1438 + $0xf0] sm:$0xff]
      %v1470 = vld [vmem:[%s1438 + $0xf8] sm:$0xff]
      %s1471 = smul.u32 %s30, 16
      %s1472 = scalar_lea.vmem %s10, %s1471
      %v1473 = vld [vmem:[%s1472] sm:$0xff]
      %v1474 = vld [vmem:[%s1472 + $0x8] sm:$0xff]
      %v1477 = vperm.slane %v1473, 0
      %v1478 = vperm.slane %v1473, 1
      %v1479 = vperm.slane %v1473, 2
      %v1480 = vperm.slane %v1473, 3
      %v1481 = vperm.slane %v1473, 4
      %v1482 = vperm.slane %v1473, 5
      %v1483 = vperm.slane %v1473, 6
      %v1484 = vperm.slane %v1473, 7
      %v1485 = vperm.slane %v1474, 0
      %v1486 = vperm.slane %v1474, 1
      %v1487 = vperm.slane %v1474, 2
      %v1488 = vperm.slane %v1474, 3
      %v1489 = vperm.slane %v1474, 4
      %v1490 = vperm.slane %v1474, 5
      %v1491 = vperm.slane %v1474, 6
      %v1492 = vperm.slane %v1474, 7
      %v1541 = vunpack.c.l.b16 %v1439
      %v1542 = vunpack.c.h.b16 %v1439
      %v1543 = vunpack.c.l.b16 %v1440
      %v1544 = vunpack.c.h.b16 %v1440
      %v1545 = vunpack.c.l.b16 %v1441
      %v1546 = vunpack.c.h.b16 %v1441
      %v1547 = vunpack.c.l.b16 %v1442
      %v1548 = vunpack.c.h.b16 %v1442
      %v1549 = vunpack.c.l.b16 %v1443
      %v1550 = vunpack.c.h.b16 %v1443
      %v1551 = vunpack.c.l.b16 %v1444
      %v1552 = vunpack.c.h.b16 %v1444
      %v1553 = vunpack.c.l.b16 %v1445
      %v1554 = vunpack.c.h.b16 %v1445
      %v1555 = vunpack.c.l.b16 %v1446
      %v1556 = vunpack.c.h.b16 %v1446
      %v1557 = vunpack.c.l.b16 %v1447
      %v1558 = vunpack.c.h.b16 %v1447
      %v1559 = vunpack.c.l.b16 %v1448
      %v1560 = vunpack.c.h.b16 %v1448
      %v1561 = vunpack.c.l.b16 %v1449
      %v1562 = vunpack.c.h.b16 %v1449
      %v1563 = vunpack.c.l.b16 %v1450
      %v1564 = vunpack.c.h.b16 %v1450
      %v1565 = vunpack.c.l.b16 %v1451
      %v1566 = vunpack.c.h.b16 %v1451
      %v1567 = vunpack.c.l.b16 %v1452
      %v1568 = vunpack.c.h.b16 %v1452
      %v1569 = vunpack.c.l.b16 %v1453
      %v1570 = vunpack.c.h.b16 %v1453
      %v1571 = vunpack.c.l.b16 %v1454
      %v1572 = vunpack.c.h.b16 %v1454
      %v1573 = vunpack.c.l.b16 %v1455
      %v1574 = vunpack.c.h.b16 %v1455
      %v1575 = vunpack.c.l.b16 %v1456
      %v1576 = vunpack.c.h.b16 %v1456
      %v1577 = vunpack.c.l.b16 %v1457
      %v1578 = vunpack.c.h.b16 %v1457
      %v1579 = vunpack.c.l.b16 %v1458
      %v1580 = vunpack.c.h.b16 %v1458
      %v1581 = vunpack.c.l.b16 %v1459
      %v1582 = vunpack.c.h.b16 %v1459
      %v1583 = vunpack.c.l.b16 %v1460
      %v1584 = vunpack.c.h.b16 %v1460
      %v1585 = vunpack.c.l.b16 %v1461
      %v1586 = vunpack.c.h.b16 %v1461
      %v1587 = vunpack.c.l.b16 %v1462
      %v1588 = vunpack.c.h.b16 %v1462
      %v1589 = vunpack.c.l.b16 %v1463
      %v1590 = vunpack.c.h.b16 %v1463
      %v1591 = vunpack.c.l.b16 %v1464
      %v1592 = vunpack.c.h.b16 %v1464
      %v1593 = vunpack.c.l.b16 %v1465
      %v1594 = vunpack.c.h.b16 %v1465
      %v1595 = vunpack.c.l.b16 %v1466
      %v1596 = vunpack.c.h.b16 %v1466
      %v1597 = vunpack.c.l.b16 %v1467
      %v1598 = vunpack.c.h.b16 %v1467
      %v1599 = vunpack.c.l.b16 %v1468
      %v1600 = vunpack.c.h.b16 %v1468
      %v1601 = vunpack.c.l.b16 %v1469
      %v1602 = vunpack.c.h.b16 %v1469
      %v1603 = vunpack.c.l.b16 %v1470
      %v1604 = vunpack.c.h.b16 %v1470
      %v1605 = vpack.c.b16 %v1557, %v1541
      %v1606 = vpack.c.b16 %v1558, %v1542
      %v1607 = vpack.c.b16 %v1559, %v1543
      %v1608 = vpack.c.b16 %v1560, %v1544
      %v1609 = vpack.c.b16 %v1561, %v1545
      %v1610 = vpack.c.b16 %v1562, %v1546
      %v1611 = vpack.c.b16 %v1563, %v1547
      %v1612 = vpack.c.b16 %v1564, %v1548
      %v1613 = vpack.c.b16 %v1565, %v1549
      %v1614 = vpack.c.b16 %v1566, %v1550
      %v1615 = vpack.c.b16 %v1567, %v1551
      %v1616 = vpack.c.b16 %v1568, %v1552
      %v1617 = vpack.c.b16 %v1569, %v1553
      %v1618 = vpack.c.b16 %v1570, %v1554
      %v1619 = vpack.c.b16 %v1571, %v1555
      %v1620 = vpack.c.b16 %v1572, %v1556
      %v1621 = vpack.c.b16 %v1589, %v1573
      %v1622 = vpack.c.b16 %v1590, %v1574
      %v1623 = vpack.c.b16 %v1591, %v1575
      %v1624 = vpack.c.b16 %v1592, %v1576
      %v1625 = vpack.c.b16 %v1593, %v1577
      %v1626 = vpack.c.b16 %v1594, %v1578
      %v1627 = vpack.c.b16 %v1595, %v1579
      %v1628 = vpack.c.b16 %v1596, %v1580
      %v1629 = vpack.c.b16 %v1597, %v1581
      %v1630 = vpack.c.b16 %v1598, %v1582
      %v1631 = vpack.c.b16 %v1599, %v1583
      %v1632 = vpack.c.b16 %v1600, %v1584
      %v1633 = vpack.c.b16 %v1601, %v1585
      %v1634 = vpack.c.b16 %v1602, %v1586
      %v1635 = vpack.c.b16 %v1603, %v1587
      %v1636 = vpack.c.b16 %v1604, %v1588
      %v1670 = vsel %vm685, %v1434, 0
      %v1673 = vsel %vm685, %v1435, 0
      %1675 = vmatpush.bf16.msra.mxu0 0
      %1676 = vmatpush.bf16.msra.mxu0 0
      %1677 = vmatpush.bf16.msra.mxu0 0
      %1678 = vmatpush.bf16.msra.mxu0 0
      %1679 = vmatpush.bf16.msra.mxu0 0
      %1680 = vmatpush.bf16.msra.mxu0 0
      %1681 = vmatpush.bf16.msra.mxu0 %v1621
      %1682 = vmatpush.bf16.msra.mxu0 %v1605
      %1683 = vmatmul.bf16.gmra.mxu0 %v1670
      %v1684 = vpop.f32.mrf.mxu0
      %v1685 = vadd.f32 %v1477, %v1684
      %v1686 = vpop.f32.mrf.mxu0
      %v1687 = vadd.f32 %v1477, %v1686
      %1688 = vmatmul.bf16.gmra.mxu0 %v1673
      %v1689 = vpop.f32.mrf.mxu0
      %v1690 = vadd.f32 %v1477, %v1689
      %v1691 = vpop.f32.mrf.mxu0
      %v1692 = vadd.f32 %v1477, %v1691
      %1693 = vdwg.mxu0
      %1694 = vmatpush.bf16.msra.mxu0 0
      %1695 = vmatpush.bf16.msra.mxu0 0
      %1696 = vmatpush.bf16.msra.mxu0 0
      %1697 = vmatpush.bf16.msra.mxu0 0
      %1698 = vmatpush.bf16.msra.mxu0 0
      %1699 = vmatpush.bf16.msra.mxu0 0
      %1700 = vmatpush.bf16.msra.mxu0 %v1622
      %1701 = vmatpush.bf16.msra.mxu0 %v1606
      %1702 = vmatmul.bf16.gmra.mxu0 %v1670
      %v1703 = vpop.f32.mrf.mxu0
      %v1704 = vadd.f32 %v1478, %v1703
      %v1705 = vpop.f32.mrf.mxu0
      %v1706 = vadd.f32 %v1478, %v1705
      %1707 = vmatmul.bf16.gmra.mxu0 %v1673
      %v1708 = vpop.f32.mrf.mxu0
      %v1709 = vadd.f32 %v1478, %v1708
      %v1710 = vpop.f32.mrf.mxu0
      %v1711 = vadd.f32 %v1478, %v1710
      %1712 = vdwg.mxu0
      %1713 = vmatpush.bf16.msra.mxu0 0
      %1714 = vmatpush.bf16.msra.mxu0 0
      %1715 = vmatpush.bf16.msra.mxu0 0
      %1716 = vmatpush.bf16.msra.mxu0 0
      %1717 = vmatpush.bf16.msra.mxu0 0
      %1718 = vmatpush.bf16.msra.mxu0 0
      %1719 = vmatpush.bf16.msra.mxu0 %v1623
      %1720 = vmatpush.bf16.msra.mxu0 %v1607
      %1721 = vmatmul.bf16.gmra.mxu0 %v1670
      %v1722 = vpop.f32.mrf.mxu0
      %v1723 = vadd.f32 %v1479, %v1722
      %v1724 = vpop.f32.mrf.mxu0
      %v1725 = vadd.f32 %v1479, %v1724
      %1726 = vmatmul.bf16.gmra.mxu0 %v1673
      %v1727 = vpop.f32.mrf.mxu0
      %v1728 = vadd.f32 %v1479, %v1727
      %v1729 = vpop.f32.mrf.mxu0
      %v1730 = vadd.f32 %v1479, %v1729
      %1731 = vdwg.mxu0
      %1732 = vmatpush.bf16.msra.mxu0 0
      %1733 = vmatpush.bf16.msra.mxu0 0
      %1734 = vmatpush.bf16.msra.mxu0 0
      %1735 = vmatpush.bf16.msra.mxu0 0
      %1736 = vmatpush.bf16.msra.mxu0 0
      %1737 = vmatpush.bf16.msra.mxu0 0
      %1738 = vmatpush.bf16.msra.mxu0 %v1624
      %1739 = vmatpush.bf16.msra.mxu0 %v1608
      %1740 = vmatmul.bf16.gmra.mxu0 %v1670
      %v1741 = vpop.f32.mrf.mxu0
      %v1742 = vadd.f32 %v1480, %v1741
      %v1743 = vpop.f32.mrf.mxu0
      %v1744 = vadd.f32 %v1480, %v1743
      %1745 = vmatmul.bf16.gmra.mxu0 %v1673
      %v1746 = vpop.f32.mrf.mxu0
      %v1747 = vadd.f32 %v1480, %v1746
      %v1748 = vpop.f32.mrf.mxu0
      %v1749 = vadd.f32 %v1480, %v1748
      %1750 = vdwg.mxu0
      %1751 = vmatpush.bf16.msra.mxu0 0
      %1752 = vmatpush.bf16.msra.mxu0 0
      %1753 = vmatpush.bf16.msra.mxu0 0
      %1754 = vmatpush.bf16.msra.mxu0 0
      %1755 = vmatpush.bf16.msra.mxu0 0
      %1756 = vmatpush.bf16.msra.mxu0 0
      %1757 = vmatpush.bf16.msra.mxu0 %v1625
      %1758 = vmatpush.bf16.msra.mxu0 %v1609
      %1759 = vmatmul.bf16.gmra.mxu0 %v1670
      %v1760 = vpop.f32.mrf.mxu0
      %v1761 = vadd.f32 %v1481, %v1760
      %v1762 = vpop.f32.mrf.mxu0
      %v1763 = vadd.f32 %v1481, %v1762
      %1764 = vmatmul.bf16.gmra.mxu0 %v1673
      %v1765 = vpop.f32.mrf.mxu0
      %v1766 = vadd.f32 %v1481, %v1765
      %v1767 = vpop.f32.mrf.mxu0
      %v1768 = vadd.f32 %v1481, %v1767
      %1769 = vdwg.mxu0
      %1770 = vmatpush.bf16.msra.mxu0 0
      %1771 = vmatpush.bf16.msra.mxu0 0
      %1772 = vmatpush.bf16.msra.mxu0 0
      %1773 = vmatpush.bf16.msra.mxu0 0
      %1774 = vmatpush.bf16.msra.mxu0 0
      %1775 = vmatpush.bf16.msra.mxu0 0
      %1776 = vmatpush.bf16.msra.mxu0 %v1626
      %1777 = vmatpush.bf16.msra.mxu0 %v1610
      %1778 = vmatmul.bf16.gmra.mxu0 %v1670
      %v1779 = vpop.f32.mrf.mxu0
      %v1780 = vadd.f32 %v1482, %v1779
      %v1781 = vpop.f32.mrf.mxu0
      %v1782 = vadd.f32 %v1482, %v1781
      %1783 = vmatmul.bf16.gmra.mxu0 %v1673
      %v1784 = vpop.f32.mrf.mxu0
      %v1785 = vadd.f32 %v1482, %v1784
      %v1786 = vpop.f32.mrf.mxu0
      %v1787 = vadd.f32 %v1482, %v1786
      %1788 = vdwg.mxu0
      %1789 = vmatpush.bf16.msra.mxu0 0
      %1790 = vmatpush.bf16.msra.mxu0 0
      %1791 = vmatpush.bf16.msra.mxu0 0
      %1792 = vmatpush.bf16.msra.mxu0 0
      %1793 = vmatpush.bf16.msra.mxu0 0
      %1794 = vmatpush.bf16.msra.mxu0 0
      %1795 = vmatpush.bf16.msra.mxu0 %v1627
      %1796 = vmatpush.bf16.msra.mxu0 %v1611
      %1797 = vmatmul.bf16.gmra.mxu0 %v1670
      %v1798 = vpop.f32.mrf.mxu0
      %v1799 = vadd.f32 %v1483, %v1798
      %v1800 = vpop.f32.mrf.mxu0
      %v1801 = vadd.f32 %v1483, %v1800
      %1802 = vmatmul.bf16.gmra.mxu0 %v1673
      %v1803 = vpop.f32.mrf.mxu0
      %v1804 = vadd.f32 %v1483, %v1803
      %v1805 = vpop.f32.mrf.mxu0
      %v1806 = vadd.f32 %v1483, %v1805
      %1807 = vdwg.mxu0
      %1808 = vmatpush.bf16.msra.mxu0 0
      %1809 = vmatpush.bf16.msra.mxu0 0
      %1810 = vmatpush.bf16.msra.mxu0 0
      %1811 = vmatpush.bf16.msra.mxu0 0
      %1812 = vmatpush.bf16.msra.mxu0 0
      %1813 = vmatpush.bf16.msra.mxu0 0
      %1814 = vmatpush.bf16.msra.mxu0 %v1628
      %1815 = vmatpush.bf16.msra.mxu0 %v1612
      %1816 = vmatmul.bf16.gmra.mxu0 %v1670
      %v1817 = vpop.f32.mrf.mxu0
      %v1818 = vadd.f32 %v1484, %v1817
      %v1819 = vpop.f32.mrf.mxu0
      %v1820 = vadd.f32 %v1484, %v1819
      %1821 = vmatmul.bf16.gmra.mxu0 %v1673
      %v1822 = vpop.f32.mrf.mxu0
      %v1823 = vadd.f32 %v1484, %v1822
      %v1824 = vpop.f32.mrf.mxu0
      %v1825 = vadd.f32 %v1484, %v1824
      %1826 = vdwg.mxu0
      %1827 = vmatpush.bf16.msra.mxu0 0
      %1828 = vmatpush.bf16.msra.mxu0 0
      %1829 = vmatpush.bf16.msra.mxu0 0
      %1830 = vmatpush.bf16.msra.mxu0 0
      %1831 = vmatpush.bf16.msra.mxu0 0
      %1832 = vmatpush.bf16.msra.mxu0 0
      %1833 = vmatpush.bf16.msra.mxu0 %v1629
      %1834 = vmatpush.bf16.msra.mxu0 %v1613
      %1835 = vmatmul.bf16.gmra.mxu0 %v1670
      %v1836 = vpop.f32.mrf.mxu0
      %v1837 = vadd.f32 %v1485, %v1836
      %v1838 = vpop.f32.mrf.mxu0
      %v1839 = vadd.f32 %v1485, %v1838
      %1840 = vmatmul.bf16.gmra.mxu0 %v1673
      %v1841 = vpop.f32.mrf.mxu0
      %v1842 = vadd.f32 %v1485, %v1841
      %v1843 = vpop.f32.mrf.mxu0
      %v1844 = vadd.f32 %v1485, %v1843
      %1845 = vdwg.mxu0
      %1846 = vmatpush.bf16.msra.mxu0 0
      %1847 = vmatpush.bf16.msra.mxu0 0
      %1848 = vmatpush.bf16.msra.mxu0 0
      %1849 = vmatpush.bf16.msra.mxu0 0
      %1850 = vmatpush.bf16.msra.mxu0 0
      %1851 = vmatpush.bf16.msra.mxu0 0
      %1852 = vmatpush.bf16.msra.mxu0 %v1630
      %1853 = vmatpush.bf16.msra.mxu0 %v1614
      %1854 = vmatmul.bf16.gmra.mxu0 %v1670
      %v1855 = vpop.f32.mrf.mxu0
      %v1856 = vadd.f32 %v1486, %v1855
      %v1857 = vpop.f32.mrf.mxu0
      %v1858 = vadd.f32 %v1486, %v1857
      %1859 = vmatmul.bf16.gmra.mxu0 %v1673
      %v1860 = vpop.f32.mrf.mxu0
      %v1861 = vadd.f32 %v1486, %v1860
      %v1862 = vpop.f32.mrf.mxu0
      %v1863 = vadd.f32 %v1486, %v1862
      %1864 = vdwg.mxu0
      %1865 = vmatpush.bf16.msra.mxu0 0
      %1866 = vmatpush.bf16.msra.mxu0 0
      %1867 = vmatpush.bf16.msra.mxu0 0
      %1868 = vmatpush.bf16.msra.mxu0 0
      %1869 = vmatpush.bf16.msra.mxu0 0
      %1870 = vmatpush.bf16.msra.mxu0 0
      %1871 = vmatpush.bf16.msra.mxu0 %v1631
      %1872 = vmatpush.bf16.msra.mxu0 %v1615
      %1873 = vmatmul.bf16.gmra.mxu0 %v1670
      %v1874 = vpop.f32.mrf.mxu0
      %v1875 = vadd.f32 %v1487, %v1874
      %v1876 = vpop.f32.mrf.mxu0
      %v1877 = vadd.f32 %v1487, %v1876
      %1878 = vmatmul.bf16.gmra.mxu0 %v1673
      %v1879 = vpop.f32.mrf.mxu0
      %v1880 = vadd.f32 %v1487, %v1879
      %v1881 = vpop.f32.mrf.mxu0
      %v1882 = vadd.f32 %v1487, %v1881
      %1883 = vdwg.mxu0
      %1884 = vmatpush.bf16.msra.mxu0 0
      %1885 = vmatpush.bf16.msra.mxu0 0
      %1886 = vmatpush.bf16.msra.mxu0 0
      %1887 = vmatpush.bf16.msra.mxu0 0
      %1888 = vmatpush.bf16.msra.mxu0 0
      %1889 = vmatpush.bf16.msra.mxu0 0
      %1890 = vmatpush.bf16.msra.mxu0 %v1632
      %1891 = vmatpush.bf16.msra.mxu0 %v1616
      %1892 = vmatmul.bf16.gmra.mxu0 %v1670
      %v1893 = vpop.f32.mrf.mxu0
      %v1894 = vadd.f32 %v1488, %v1893
      %v1895 = vpop.f32.mrf.mxu0
      %v1896 = vadd.f32 %v1488, %v1895
      %1897 = vmatmul.bf16.gmra.mxu0 %v1673
      %v1898 = vpop.f32.mrf.mxu0
      %v1899 = vadd.f32 %v1488, %v1898
      %v1900 = vpop.f32.mrf.mxu0
      %v1901 = vadd.f32 %v1488, %v1900
      %1902 = vdwg.mxu0
      %1903 = vmatpush.bf16.msra.mxu0 0
      %1904 = vmatpush.bf16.msra.mxu0 0
      %1905 = vmatpush.bf16.msra.mxu0 0
      %1906 = vmatpush.bf16.msra.mxu0 0
      %1907 = vmatpush.bf16.msra.mxu0 0
      %1908 = vmatpush.bf16.msra.mxu0 0
      %1909 = vmatpush.bf16.msra.mxu0 %v1633
      %1910 = vmatpush.bf16.msra.mxu0 %v1617
      %1911 = vmatmul.bf16.gmra.mxu0 %v1670
      %v1912 = vpop.f32.mrf.mxu0
      %v1913 = vadd.f32 %v1489, %v1912
      %v1914 = vpop.f32.mrf.mxu0
      %v1915 = vadd.f32 %v1489, %v1914
      %1916 = vmatmul.bf16.gmra.mxu0 %v1673
      %v1917 = vpop.f32.mrf.mxu0
      %v1918 = vadd.f32 %v1489, %v1917
      %v1919 = vpop.f32.mrf.mxu0
      %v1920 = vadd.f32 %v1489, %v1919
      %1921 = vdwg.mxu0
      %1922 = vmatpush.bf16.msra.mxu0 0
      %1923 = vmatpush.bf16.msra.mxu0 0
      %1924 = vmatpush.bf16.msra.mxu0 0
      %1925 = vmatpush.bf16.msra.mxu0 0
      %1926 = vmatpush.bf16.msra.mxu0 0
      %1927 = vmatpush.bf16.msra.mxu0 0
      %1928 = vmatpush.bf16.msra.mxu0 %v1634
      %1929 = vmatpush.bf16.msra.mxu0 %v1618
      %1930 = vmatmul.bf16.gmra.mxu0 %v1670
      %v1931 = vpop.f32.mrf.mxu0
      %v1932 = vadd.f32 %v1490, %v1931
      %v1933 = vpop.f32.mrf.mxu0
      %v1934 = vadd.f32 %v1490, %v1933
      %1935 = vmatmul.bf16.gmra.mxu0 %v1673
      %v1936 = vpop.f32.mrf.mxu0
      %v1937 = vadd.f32 %v1490, %v1936
      %v1938 = vpop.f32.mrf.mxu0
      %v1939 = vadd.f32 %v1490, %v1938
      %1940 = vdwg.mxu0
      %1941 = vmatpush.bf16.msra.mxu0 0
      %1942 = vmatpush.bf16.msra.mxu0 0
      %1943 = vmatpush.bf16.msra.mxu0 0
      %1944 = vmatpush.bf16.msra.mxu0 0
      %1945 = vmatpush.bf16.msra.mxu0 0
      %1946 = vmatpush.bf16.msra.mxu0 0
      %1947 = vmatpush.bf16.msra.mxu0 %v1635
      %1948 = vmatpush.bf16.msra.mxu0 %v1619
      %1949 = vmatmul.bf16.gmra.mxu0 %v1670
      %v1950 = vpop.f32.mrf.mxu0
      %v1951 = vadd.f32 %v1491, %v1950
      %v1952 = vpop.f32.mrf.mxu0
      %v1953 = vadd.f32 %v1491, %v1952
      %1954 = vmatmul.bf16.gmra.mxu0 %v1673
      %v1955 = vpop.f32.mrf.mxu0
      %v1956 = vadd.f32 %v1491, %v1955
      %v1957 = vpop.f32.mrf.mxu0
      %v1958 = vadd.f32 %v1491, %v1957
      %1959 = vdwg.mxu0
      %1960 = vmatpush.bf16.msra.mxu0 0
      %1961 = vmatpush.bf16.msra.mxu0 0
      %1962 = vmatpush.bf16.msra.mxu0 0
      %1963 = vmatpush.bf16.msra.mxu0 0
      %1964 = vmatpush.bf16.msra.mxu0 0
      %1965 = vmatpush.bf16.msra.mxu0 0
      %1966 = vmatpush.bf16.msra.mxu0 %v1636
      %1967 = vmatpush.bf16.msra.mxu0 %v1620
      %1968 = vmatmul.bf16.gmra.mxu0 %v1670
      %v1969 = vpop.f32.mrf.mxu0
      %v1970 = vadd.f32 %v1492, %v1969
      %v1971 = vpop.f32.mrf.mxu0
      %v1972 = vadd.f32 %v1492, %v1971
      %1973 = vmatmul.bf16.gmra.mxu0 %v1673
      %v1974 = vpop.f32.mrf.mxu0
      %v1975 = vadd.f32 %v1492, %v1974
      %v1976 = vpop.f32.mrf.mxu0
      %v1977 = vadd.f32 %v1492, %v1976
      %1978 = vdwg.mxu0
      %v1979 = vmax.f32 %v1685, 0.0
      %v1980 = vmax.f32 %v1704, 0.0
      %v1981 = vmax.f32 %v1723, 0.0
      %v1982 = vmax.f32 %v1742, 0.0
      %v1983 = vmax.f32 %v1761, 0.0
      %v1984 = vmax.f32 %v1780, 0.0
      %v1985 = vmax.f32 %v1799, 0.0
      %v1986 = vmax.f32 %v1818, 0.0
      %v1987 = vmax.f32 %v1837, 0.0
      %v1988 = vmax.f32 %v1856, 0.0
      %v1989 = vmax.f32 %v1875, 0.0
      %v1990 = vmax.f32 %v1894, 0.0
      %v1991 = vmax.f32 %v1913, 0.0
      %v1992 = vmax.f32 %v1932, 0.0
      %v1993 = vmax.f32 %v1951, 0.0
      %v1994 = vmax.f32 %v1970, 0.0
      %v1995 = vmax.f32 %v1687, 0.0
      %v1996 = vmax.f32 %v1706, 0.0
      %v1997 = vmax.f32 %v1725, 0.0
      %v1998 = vmax.f32 %v1744, 0.0
      %v1999 = vmax.f32 %v1763, 0.0
      %v2000 = vmax.f32 %v1782, 0.0
      %v2001 = vmax.f32 %v1801, 0.0
      %v2002 = vmax.f32 %v1820, 0.0
      %v2003 = vmax.f32 %v1839, 0.0
      %v2004 = vmax.f32 %v1858, 0.0
      %v2005 = vmax.f32 %v1877, 0.0
      %v2006 = vmax.f32 %v1896, 0.0
      %v2007 = vmax.f32 %v1915, 0.0
      %v2008 = vmax.f32 %v1934, 0.0
      %v2009 = vmax.f32 %v1953, 0.0
      %v2010 = vmax.f32 %v1972, 0.0
      %v2011 = vmax.f32 %v1690, 0.0
      %v2012 = vmax.f32 %v1709, 0.0
      %v2013 = vmax.f32 %v1728, 0.0
      %v2014 = vmax.f32 %v1747, 0.0
      %v2015 = vmax.f32 %v1766, 0.0
      %v2016 = vmax.f32 %v1785, 0.0
      %v2017 = vmax.f32 %v1804, 0.0
      %v2018 = vmax.f32 %v1823, 0.0
      %v2019 = vmax.f32 %v1842, 0.0
      %v2020 = vmax.f32 %v1861, 0.0
      %v2021 = vmax.f32 %v1880, 0.0
      %v2022 = vmax.f32 %v1899, 0.0
      %v2023 = vmax.f32 %v1918, 0.0
      %v2024 = vmax.f32 %v1937, 0.0
      %v2025 = vmax.f32 %v1956, 0.0
      %v2026 = vmax.f32 %v1975, 0.0
      %v2027 = vmax.f32 %v1692, 0.0
      %v2028 = vmax.f32 %v1711, 0.0
      %v2029 = vmax.f32 %v1730, 0.0
      %v2030 = vmax.f32 %v1749, 0.0
      %v2031 = vmax.f32 %v1768, 0.0
      %v2032 = vmax.f32 %v1787, 0.0
      %v2033 = vmax.f32 %v1806, 0.0
      %v2034 = vmax.f32 %v1825, 0.0
      %v2035 = vmax.f32 %v1844, 0.0
      %v2036 = vmax.f32 %v1863, 0.0
      %v2037 = vmax.f32 %v1882, 0.0
      %v2038 = vmax.f32 %v1901, 0.0
      %v2039 = vmax.f32 %v1920, 0.0
      %v2040 = vmax.f32 %v1939, 0.0
      %v2041 = vmax.f32 %v1958, 0.0
      %v2042 = vmax.f32 %v1977, 0.0
      %v2043 = vpack.c.bf16 %v1995, %v1979
      %v2044 = vpack.c.bf16 %v1996, %v1980
      %v2045 = vpack.c.bf16 %v1997, %v1981
      %v2046 = vpack.c.bf16 %v1998, %v1982
      %v2047 = vpack.c.bf16 %v1999, %v1983
      %v2048 = vpack.c.bf16 %v2000, %v1984
      %v2049 = vpack.c.bf16 %v2001, %v1985
      %v2050 = vpack.c.bf16 %v2002, %v1986
      %v2051 = vpack.c.bf16 %v2003, %v1987
      %v2052 = vpack.c.bf16 %v2004, %v1988
      %v2053 = vpack.c.bf16 %v2005, %v1989
      %v2054 = vpack.c.bf16 %v2006, %v1990
      %v2055 = vpack.c.bf16 %v2007, %v1991
      %v2056 = vpack.c.bf16 %v2008, %v1992
      %v2057 = vpack.c.bf16 %v2009, %v1993
      %v2058 = vpack.c.bf16 %v2010, %v1994
      %v2059 = vpack.c.bf16 %v2027, %v2011
      %v2060 = vpack.c.bf16 %v2028, %v2012
      %v2061 = vpack.c.bf16 %v2029, %v2013
      %v2062 = vpack.c.bf16 %v2030, %v2014
      %v2063 = vpack.c.bf16 %v2031, %v2015
      %v2064 = vpack.c.bf16 %v2032, %v2016
      %v2065 = vpack.c.bf16 %v2033, %v2017
      %v2066 = vpack.c.bf16 %v2034, %v2018
      %v2067 = vpack.c.bf16 %v2035, %v2019
      %v2068 = vpack.c.bf16 %v2036, %v2020
      %v2069 = vpack.c.bf16 %v2037, %v2021
      %v2070 = vpack.c.bf16 %v2038, %v2022
      %v2071 = vpack.c.bf16 %v2039, %v2023
      %v2072 = vpack.c.bf16 %v2040, %v2024
      %v2073 = vpack.c.bf16 %v2041, %v2025
      %v2074 = vpack.c.bf16 %v2042, %v2026
      %s2075 = smul.u32 %s30, 256
      %s2076 = smul.addr %s2075, 4
      %s2077 = scalar_lea.vmem %s11, %s2076
      %v2078 = vld [vmem:[%s2077] sm:$0xf]
      %v2079 = vld [vmem:[%s2077 + $0x4] sm:$0xf]
      %v2080 = vld [vmem:[%s2077 + $0x8] sm:$0xf]
      %v2081 = vld [vmem:[%s2077 + $0xc] sm:$0xf]
      %v2082 = vld [vmem:[%s2077 + $0x10] sm:$0xf]
      %v2083 = vld [vmem:[%s2077 + $0x14] sm:$0xf]
      %v2084 = vld [vmem:[%s2077 + $0x18] sm:$0xf]
      %v2085 = vld [vmem:[%s2077 + $0x1c] sm:$0xf]
      %v2086 = vld [vmem:[%s2077 + $0x20] sm:$0xf]
      %v2087 = vld [vmem:[%s2077 + $0x24] sm:$0xf]
      %v2088 = vld [vmem:[%s2077 + $0x28] sm:$0xf]
      %v2089 = vld [vmem:[%s2077 + $0x2c] sm:$0xf]
      %v2090 = vld [vmem:[%s2077 + $0x30] sm:$0xf]
      %v2091 = vld [vmem:[%s2077 + $0x34] sm:$0xf]
      %v2092 = vld [vmem:[%s2077 + $0x38] sm:$0xf]
      %v2093 = vld [vmem:[%s2077 + $0x3c] sm:$0xf]
      %v2094 = vld [vmem:[%s2077 + $0x40] sm:$0xf]
      %v2095 = vld [vmem:[%s2077 + $0x44] sm:$0xf]
      %v2096 = vld [vmem:[%s2077 + $0x48] sm:$0xf]
      %v2097 = vld [vmem:[%s2077 + $0x4c] sm:$0xf]
      %v2098 = vld [vmem:[%s2077 + $0x50] sm:$0xf]
      %v2099 = vld [vmem:[%s2077 + $0x54] sm:$0xf]
      %v2100 = vld [vmem:[%s2077 + $0x58] sm:$0xf]
      %v2101 = vld [vmem:[%s2077 + $0x5c] sm:$0xf]
      %v2102 = vld [vmem:[%s2077 + $0x60] sm:$0xf]
      %v2103 = vld [vmem:[%s2077 + $0x64] sm:$0xf]
      %v2104 = vld [vmem:[%s2077 + $0x68] sm:$0xf]
      %v2105 = vld [vmem:[%s2077 + $0x6c] sm:$0xf]
      %v2106 = vld [vmem:[%s2077 + $0x70] sm:$0xf]
      %v2107 = vld [vmem:[%s2077 + $0x74] sm:$0xf]
      %v2108 = vld [vmem:[%s2077 + $0x78] sm:$0xf]
      %v2109 = vld [vmem:[%s2077 + $0x7c] sm:$0xf]
      %v2110 = vld [vmem:[%s2077 + $0x80] sm:$0xf]
      %v2111 = vld [vmem:[%s2077 + $0x84] sm:$0xf]
      %v2112 = vld [vmem:[%s2077 + $0x88] sm:$0xf]
      %v2113 = vld [vmem:[%s2077 + $0x8c] sm:$0xf]
      %v2114 = vld [vmem:[%s2077 + $0x90] sm:$0xf]
      %v2115 = vld [vmem:[%s2077 + $0x94] sm:$0xf]
      %v2116 = vld [vmem:[%s2077 + $0x98] sm:$0xf]
      %v2117 = vld [vmem:[%s2077 + $0x9c] sm:$0xf]
      %v2118 = vld [vmem:[%s2077 + $0xa0] sm:$0xf]
      %v2119 = vld [vmem:[%s2077 + $0xa4] sm:$0xf]
      %v2120 = vld [vmem:[%s2077 + $0xa8] sm:$0xf]
      %v2121 = vld [vmem:[%s2077 + $0xac] sm:$0xf]
      %v2122 = vld [vmem:[%s2077 + $0xb0] sm:$0xf]
      %v2123 = vld [vmem:[%s2077 + $0xb4] sm:$0xf]
      %v2124 = vld [vmem:[%s2077 + $0xb8] sm:$0xf]
      %v2125 = vld [vmem:[%s2077 + $0xbc] sm:$0xf]
      %v2126 = vld [vmem:[%s2077 + $0xc0] sm:$0xf]
      %v2127 = vld [vmem:[%s2077 + $0xc4] sm:$0xf]
      %v2128 = vld [vmem:[%s2077 + $0xc8] sm:$0xf]
      %v2129 = vld [vmem:[%s2077 + $0xcc] sm:$0xf]
      %v2130 = vld [vmem:[%s2077 + $0xd0] sm:$0xf]
      %v2131 = vld [vmem:[%s2077 + $0xd4] sm:$0xf]
      %v2132 = vld [vmem:[%s2077 + $0xd8] sm:$0xf]
      %v2133 = vld [vmem:[%s2077 + $0xdc] sm:$0xf]
      %v2134 = vld [vmem:[%s2077 + $0xe0] sm:$0xf]
      %v2135 = vld [vmem:[%s2077 + $0xe4] sm:$0xf]
      %v2136 = vld [vmem:[%s2077 + $0xe8] sm:$0xf]
      %v2137 = vld [vmem:[%s2077 + $0xec] sm:$0xf]
      %v2138 = vld [vmem:[%s2077 + $0xf0] sm:$0xf]
      %v2139 = vld [vmem:[%s2077 + $0xf4] sm:$0xf]
      %v2140 = vld [vmem:[%s2077 + $0xf8] sm:$0xf]
      %v2141 = vld [vmem:[%s2077 + $0xfc] sm:$0xf]
      %v2142 = vld [vmem:[%s2077 + $0x100] sm:$0xf]
      %v2143 = vld [vmem:[%s2077 + $0x104] sm:$0xf]
      %v2144 = vld [vmem:[%s2077 + $0x108] sm:$0xf]
      %v2145 = vld [vmem:[%s2077 + $0x10c] sm:$0xf]
      %v2146 = vld [vmem:[%s2077 + $0x110] sm:$0xf]
      %v2147 = vld [vmem:[%s2077 + $0x114] sm:$0xf]
      %v2148 = vld [vmem:[%s2077 + $0x118] sm:$0xf]
      %v2149 = vld [vmem:[%s2077 + $0x11c] sm:$0xf]
      %v2150 = vld [vmem:[%s2077 + $0x120] sm:$0xf]
      %v2151 = vld [vmem:[%s2077 + $0x124] sm:$0xf]
      %v2152 = vld [vmem:[%s2077 + $0x128] sm:$0xf]
      %v2153 = vld [vmem:[%s2077 + $0x12c] sm:$0xf]
      %v2154 = vld [vmem:[%s2077 + $0x130] sm:$0xf]
      %v2155 = vld [vmem:[%s2077 + $0x134] sm:$0xf]
      %v2156 = vld [vmem:[%s2077 + $0x138] sm:$0xf]
      %v2157 = vld [vmem:[%s2077 + $0x13c] sm:$0xf]
      %v2158 = vld [vmem:[%s2077 + $0x140] sm:$0xf]
      %v2159 = vld [vmem:[%s2077 + $0x144] sm:$0xf]
      %v2160 = vld [vmem:[%s2077 + $0x148] sm:$0xf]
      %v2161 = vld [vmem:[%s2077 + $0x14c] sm:$0xf]
      %v2162 = vld [vmem:[%s2077 + $0x150] sm:$0xf]
      %v2163 = vld [vmem:[%s2077 + $0x154] sm:$0xf]
      %v2164 = vld [vmem:[%s2077 + $0x158] sm:$0xf]
      %v2165 = vld [vmem:[%s2077 + $0x15c] sm:$0xf]
      %v2166 = vld [vmem:[%s2077 + $0x160] sm:$0xf]
      %v2167 = vld [vmem:[%s2077 + $0x164] sm:$0xf]
      %v2168 = vld [vmem:[%s2077 + $0x168] sm:$0xf]
      %v2169 = vld [vmem:[%s2077 + $0x16c] sm:$0xf]
      %v2170 = vld [vmem:[%s2077 + $0x170] sm:$0xf]
      %v2171 = vld [vmem:[%s2077 + $0x174] sm:$0xf]
      %v2172 = vld [vmem:[%s2077 + $0x178] sm:$0xf]
      %v2173 = vld [vmem:[%s2077 + $0x17c] sm:$0xf]
      %v2174 = vld [vmem:[%s2077 + $0x180] sm:$0xf]
      %v2175 = vld [vmem:[%s2077 + $0x184] sm:$0xf]
      %v2176 = vld [vmem:[%s2077 + $0x188] sm:$0xf]
      %v2177 = vld [vmem:[%s2077 + $0x18c] sm:$0xf]
      %v2178 = vld [vmem:[%s2077 + $0x190] sm:$0xf]
      %v2179 = vld [vmem:[%s2077 + $0x194] sm:$0xf]
      %v2180 = vld [vmem:[%s2077 + $0x198] sm:$0xf]
      %v2181 = vld [vmem:[%s2077 + $0x19c] sm:$0xf]
      %v2182 = vld [vmem:[%s2077 + $0x1a0] sm:$0xf]
      %v2183 = vld [vmem:[%s2077 + $0x1a4] sm:$0xf]
      %v2184 = vld [vmem:[%s2077 + $0x1a8] sm:$0xf]
      %v2185 = vld [vmem:[%s2077 + $0x1ac] sm:$0xf]
      %v2186 = vld [vmem:[%s2077 + $0x1b0] sm:$0xf]
      %v2187 = vld [vmem:[%s2077 + $0x1b4] sm:$0xf]
      %v2188 = vld [vmem:[%s2077 + $0x1b8] sm:$0xf]
      %v2189 = vld [vmem:[%s2077 + $0x1bc] sm:$0xf]
      %v2190 = vld [vmem:[%s2077 + $0x1c0] sm:$0xf]
      %v2191 = vld [vmem:[%s2077 + $0x1c4] sm:$0xf]
      %v2192 = vld [vmem:[%s2077 + $0x1c8] sm:$0xf]
      %v2193 = vld [vmem:[%s2077 + $0x1cc] sm:$0xf]
      %v2194 = vld [vmem:[%s2077 + $0x1d0] sm:$0xf]
      %v2195 = vld [vmem:[%s2077 + $0x1d4] sm:$0xf]
      %v2196 = vld [vmem:[%s2077 + $0x1d8] sm:$0xf]
      %v2197 = vld [vmem:[%s2077 + $0x1dc] sm:$0xf]
      %v2198 = vld [vmem:[%s2077 + $0x1e0] sm:$0xf]
      %v2199 = vld [vmem:[%s2077 + $0x1e4] sm:$0xf]
      %v2200 = vld [vmem:[%s2077 + $0x1e8] sm:$0xf]
      %v2201 = vld [vmem:[%s2077 + $0x1ec] sm:$0xf]
      %v2202 = vld [vmem:[%s2077 + $0x1f0] sm:$0xf]
      %v2203 = vld [vmem:[%s2077 + $0x1f4] sm:$0xf]
      %v2204 = vld [vmem:[%s2077 + $0x1f8] sm:$0xf]
      %v2205 = vld [vmem:[%s2077 + $0x1fc] sm:$0xf]
      %v2206 = vld [vmem:[%s2077 + $0x200] sm:$0xf]
      %v2207 = vld [vmem:[%s2077 + $0x204] sm:$0xf]
      %v2208 = vld [vmem:[%s2077 + $0x208] sm:$0xf]
      %v2209 = vld [vmem:[%s2077 + $0x20c] sm:$0xf]
      %v2210 = vld [vmem:[%s2077 + $0x210] sm:$0xf]
      %v2211 = vld [vmem:[%s2077 + $0x214] sm:$0xf]
      %v2212 = vld [vmem:[%s2077 + $0x218] sm:$0xf]
      %v2213 = vld [vmem:[%s2077 + $0x21c] sm:$0xf]
      %v2214 = vld [vmem:[%s2077 + $0x220] sm:$0xf]
      %v2215 = vld [vmem:[%s2077 + $0x224] sm:$0xf]
      %v2216 = vld [vmem:[%s2077 + $0x228] sm:$0xf]
      %v2217 = vld [vmem:[%s2077 + $0x22c] sm:$0xf]
      %v2218 = vld [vmem:[%s2077 + $0x230] sm:$0xf]
      %v2219 = vld [vmem:[%s2077 + $0x234] sm:$0xf]
      %v2220 = vld [vmem:[%s2077 + $0x238] sm:$0xf]
      %v2221 = vld [vmem:[%s2077 + $0x23c] sm:$0xf]
      %v2222 = vld [vmem:[%s2077 + $0x240] sm:$0xf]
      %v2223 = vld [vmem:[%s2077 + $0x244] sm:$0xf]
      %v2224 = vld [vmem:[%s2077 + $0x248] sm:$0xf]
      %v2225 = vld [vmem:[%s2077 + $0x24c] sm:$0xf]
      %v2226 = vld [vmem:[%s2077 + $0x250] sm:$0xf]
      %v2227 = vld [vmem:[%s2077 + $0x254] sm:$0xf]
      %v2228 = vld [vmem:[%s2077 + $0x258] sm:$0xf]
      %v2229 = vld [vmem:[%s2077 + $0x25c] sm:$0xf]
      %v2230 = vld [vmem:[%s2077 + $0x260] sm:$0xf]
      %v2231 = vld [vmem:[%s2077 + $0x264] sm:$0xf]
      %v2232 = vld [vmem:[%s2077 + $0x268] sm:$0xf]
      %v2233 = vld [vmem:[%s2077 + $0x26c] sm:$0xf]
      %v2234 = vld [vmem:[%s2077 + $0x270] sm:$0xf]
      %v2235 = vld [vmem:[%s2077 + $0x274] sm:$0xf]
      %v2236 = vld [vmem:[%s2077 + $0x278] sm:$0xf]
      %v2237 = vld [vmem:[%s2077 + $0x27c] sm:$0xf]
      %v2238 = vld [vmem:[%s2077 + $0x280] sm:$0xf]
      %v2239 = vld [vmem:[%s2077 + $0x284] sm:$0xf]
      %v2240 = vld [vmem:[%s2077 + $0x288] sm:$0xf]
      %v2241 = vld [vmem:[%s2077 + $0x28c] sm:$0xf]
      %v2242 = vld [vmem:[%s2077 + $0x290] sm:$0xf]
      %v2243 = vld [vmem:[%s2077 + $0x294] sm:$0xf]
      %v2244 = vld [vmem:[%s2077 + $0x298] sm:$0xf]
      %v2245 = vld [vmem:[%s2077 + $0x29c] sm:$0xf]
      %v2246 = vld [vmem:[%s2077 + $0x2a0] sm:$0xf]
      %v2247 = vld [vmem:[%s2077 + $0x2a4] sm:$0xf]
      %v2248 = vld [vmem:[%s2077 + $0x2a8] sm:$0xf]
      %v2249 = vld [vmem:[%s2077 + $0x2ac] sm:$0xf]
      %v2250 = vld [vmem:[%s2077 + $0x2b0] sm:$0xf]
      %v2251 = vld [vmem:[%s2077 + $0x2b4] sm:$0xf]
      %v2252 = vld [vmem:[%s2077 + $0x2b8] sm:$0xf]
      %v2253 = vld [vmem:[%s2077 + $0x2bc] sm:$0xf]
      %v2254 = vld [vmem:[%s2077 + $0x2c0] sm:$0xf]
      %v2255 = vld [vmem:[%s2077 + $0x2c4] sm:$0xf]
      %v2256 = vld [vmem:[%s2077 + $0x2c8] sm:$0xf]
      %v2257 = vld [vmem:[%s2077 + $0x2cc] sm:$0xf]
      %v2258 = vld [vmem:[%s2077 + $0x2d0] sm:$0xf]
      %v2259 = vld [vmem:[%s2077 + $0x2d4] sm:$0xf]
      %v2260 = vld [vmem:[%s2077 + $0x2d8] sm:$0xf]
      %v2261 = vld [vmem:[%s2077 + $0x2dc] sm:$0xf]
      %v2262 = vld [vmem:[%s2077 + $0x2e0] sm:$0xf]
      %v2263 = vld [vmem:[%s2077 + $0x2e4] sm:$0xf]
      %v2264 = vld [vmem:[%s2077 + $0x2e8] sm:$0xf]
      %v2265 = vld [vmem:[%s2077 + $0x2ec] sm:$0xf]
      %v2266 = vld [vmem:[%s2077 + $0x2f0] sm:$0xf]
      %v2267 = vld [vmem:[%s2077 + $0x2f4] sm:$0xf]
      %v2268 = vld [vmem:[%s2077 + $0x2f8] sm:$0xf]
      %v2269 = vld [vmem:[%s2077 + $0x2fc] sm:$0xf]
      %v2270 = vld [vmem:[%s2077 + $0x300] sm:$0xf]
      %v2271 = vld [vmem:[%s2077 + $0x304] sm:$0xf]
      %v2272 = vld [vmem:[%s2077 + $0x308] sm:$0xf]
      %v2273 = vld [vmem:[%s2077 + $0x30c] sm:$0xf]
      %v2274 = vld [vmem:[%s2077 + $0x310] sm:$0xf]
      %v2275 = vld [vmem:[%s2077 + $0x314] sm:$0xf]
      %v2276 = vld [vmem:[%s2077 + $0x318] sm:$0xf]
      %v2277 = vld [vmem:[%s2077 + $0x31c] sm:$0xf]
      %v2278 = vld [vmem:[%s2077 + $0x320] sm:$0xf]
      %v2279 = vld [vmem:[%s2077 + $0x324] sm:$0xf]
      %v2280 = vld [vmem:[%s2077 + $0x328] sm:$0xf]
      %v2281 = vld [vmem:[%s2077 + $0x32c] sm:$0xf]
      %v2282 = vld [vmem:[%s2077 + $0x330] sm:$0xf]
      %v2283 = vld [vmem:[%s2077 + $0x334] sm:$0xf]
      %v2284 = vld [vmem:[%s2077 + $0x338] sm:$0xf]
      %v2285 = vld [vmem:[%s2077 + $0x33c] sm:$0xf]
      %v2286 = vld [vmem:[%s2077 + $0x340] sm:$0xf]
      %v2287 = vld [vmem:[%s2077 + $0x344] sm:$0xf]
      %v2288 = vld [vmem:[%s2077 + $0x348] sm:$0xf]
      %v2289 = vld [vmem:[%s2077 + $0x34c] sm:$0xf]
      %v2290 = vld [vmem:[%s2077 + $0x350] sm:$0xf]
      %v2291 = vld [vmem:[%s2077 + $0x354] sm:$0xf]
      %v2292 = vld [vmem:[%s2077 + $0x358] sm:$0xf]
      %v2293 = vld [vmem:[%s2077 + $0x35c] sm:$0xf]
      %v2294 = vld [vmem:[%s2077 + $0x360] sm:$0xf]
      %v2295 = vld [vmem:[%s2077 + $0x364] sm:$0xf]
      %v2296 = vld [vmem:[%s2077 + $0x368] sm:$0xf]
      %v2297 = vld [vmem:[%s2077 + $0x36c] sm:$0xf]
      %v2298 = vld [vmem:[%s2077 + $0x370] sm:$0xf]
      %v2299 = vld [vmem:[%s2077 + $0x374] sm:$0xf]
      %v2300 = vld [vmem:[%s2077 + $0x378] sm:$0xf]
      %v2301 = vld [vmem:[%s2077 + $0x37c] sm:$0xf]
      %v2302 = vld [vmem:[%s2077 + $0x380] sm:$0xf]
      %v2303 = vld [vmem:[%s2077 + $0x384] sm:$0xf]
      %v2304 = vld [vmem:[%s2077 + $0x388] sm:$0xf]
      %v2305 = vld [vmem:[%s2077 + $0x38c] sm:$0xf]
      %v2306 = vld [vmem:[%s2077 + $0x390] sm:$0xf]
      %v2307 = vld [vmem:[%s2077 + $0x394] sm:$0xf]
      %v2308 = vld [vmem:[%s2077 + $0x398] sm:$0xf]
      %v2309 = vld [vmem:[%s2077 + $0x39c] sm:$0xf]
      %v2310 = vld [vmem:[%s2077 + $0x3a0] sm:$0xf]
      %v2311 = vld [vmem:[%s2077 + $0x3a4] sm:$0xf]
      %v2312 = vld [vmem:[%s2077 + $0x3a8] sm:$0xf]
      %v2313 = vld [vmem:[%s2077 + $0x3ac] sm:$0xf]
      %v2314 = vld [vmem:[%s2077 + $0x3b0] sm:$0xf]
      %v2315 = vld [vmem:[%s2077 + $0x3b4] sm:$0xf]
      %v2316 = vld [vmem:[%s2077 + $0x3b8] sm:$0xf]
      %v2317 = vld [vmem:[%s2077 + $0x3bc] sm:$0xf]
      %v2318 = vld [vmem:[%s2077 + $0x3c0] sm:$0xf]
      %v2319 = vld [vmem:[%s2077 + $0x3c4] sm:$0xf]
      %v2320 = vld [vmem:[%s2077 + $0x3c8] sm:$0xf]
      %v2321 = vld [vmem:[%s2077 + $0x3cc] sm:$0xf]
      %v2322 = vld [vmem:[%s2077 + $0x3d0] sm:$0xf]
      %v2323 = vld [vmem:[%s2077 + $0x3d4] sm:$0xf]
      %v2324 = vld [vmem:[%s2077 + $0x3d8] sm:$0xf]
      %v2325 = vld [vmem:[%s2077 + $0x3dc] sm:$0xf]
      %v2326 = vld [vmem:[%s2077 + $0x3e0] sm:$0xf]
      %v2327 = vld [vmem:[%s2077 + $0x3e4] sm:$0xf]
      %v2328 = vld [vmem:[%s2077 + $0x3e8] sm:$0xf]
      %v2329 = vld [vmem:[%s2077 + $0x3ec] sm:$0xf]
      %v2330 = vld [vmem:[%s2077 + $0x3f0] sm:$0xf]
      %v2331 = vld [vmem:[%s2077 + $0x3f4] sm:$0xf]
      %v2332 = vld [vmem:[%s2077 + $0x3f8] sm:$0xf]
      %v2333 = vld [vmem:[%s2077 + $0x3fc] sm:$0xf]
      %s2334 = scalar_lea.vmem %s12, %s30
      %v2335 = vld [vmem:[%s2334] sm:$0x1]
      %v2337 = vperm.slane %v2335, 0
      %v2595 = vunpack.c.l.b16 %v2078
      %v2596 = vunpack.c.l.b16 %v2079
      %v2597 = vunpack.c.l.b16 %v2080
      %v2598 = vunpack.c.l.b16 %v2081
      %v2599 = vunpack.c.l.b16 %v2082
      %v2600 = vunpack.c.l.b16 %v2083
      %v2601 = vunpack.c.l.b16 %v2084
      %v2602 = vunpack.c.l.b16 %v2085
      %v2603 = vunpack.c.l.b16 %v2086
      %v2604 = vunpack.c.l.b16 %v2087
      %v2605 = vunpack.c.l.b16 %v2088
      %v2606 = vunpack.c.l.b16 %v2089
      %v2607 = vunpack.c.l.b16 %v2090
      %v2608 = vunpack.c.l.b16 %v2091
      %v2609 = vunpack.c.l.b16 %v2092
      %v2610 = vunpack.c.l.b16 %v2093
      %v2611 = vunpack.c.l.b16 %v2094
      %v2612 = vunpack.c.l.b16 %v2095
      %v2613 = vunpack.c.l.b16 %v2096
      %v2614 = vunpack.c.l.b16 %v2097
      %v2615 = vunpack.c.l.b16 %v2098
      %v2616 = vunpack.c.l.b16 %v2099
      %v2617 = vunpack.c.l.b16 %v2100
      %v2618 = vunpack.c.l.b16 %v2101
      %v2619 = vunpack.c.l.b16 %v2102
      %v2620 = vunpack.c.l.b16 %v2103
      %v2621 = vunpack.c.l.b16 %v2104
      %v2622 = vunpack.c.l.b16 %v2105
      %v2623 = vunpack.c.l.b16 %v2106
      %v2624 = vunpack.c.l.b16 %v2107
      %v2625 = vunpack.c.l.b16 %v2108
      %v2626 = vunpack.c.l.b16 %v2109
      %v2627 = vunpack.c.l.b16 %v2110
      %v2628 = vunpack.c.l.b16 %v2111
      %v2629 = vunpack.c.l.b16 %v2112
      %v2630 = vunpack.c.l.b16 %v2113
      %v2631 = vunpack.c.l.b16 %v2114
      %v2632 = vunpack.c.l.b16 %v2115
      %v2633 = vunpack.c.l.b16 %v2116
      %v2634 = vunpack.c.l.b16 %v2117
      %v2635 = vunpack.c.l.b16 %v2118
      %v2636 = vunpack.c.l.b16 %v2119
      %v2637 = vunpack.c.l.b16 %v2120
      %v2638 = vunpack.c.l.b16 %v2121
      %v2639 = vunpack.c.l.b16 %v2122
      %v2640 = vunpack.c.l.b16 %v2123
      %v2641 = vunpack.c.l.b16 %v2124
      %v2642 = vunpack.c.l.b16 %v2125
      %v2643 = vunpack.c.l.b16 %v2126
      %v2644 = vunpack.c.l.b16 %v2127
      %v2645 = vunpack.c.l.b16 %v2128
      %v2646 = vunpack.c.l.b16 %v2129
      %v2647 = vunpack.c.l.b16 %v2130
      %v2648 = vunpack.c.l.b16 %v2131
      %v2649 = vunpack.c.l.b16 %v2132
      %v2650 = vunpack.c.l.b16 %v2133
      %v2651 = vunpack.c.l.b16 %v2134
      %v2652 = vunpack.c.l.b16 %v2135
      %v2653 = vunpack.c.l.b16 %v2136
      %v2654 = vunpack.c.l.b16 %v2137
      %v2655 = vunpack.c.l.b16 %v2138
      %v2656 = vunpack.c.l.b16 %v2139
      %v2657 = vunpack.c.l.b16 %v2140
      %v2658 = vunpack.c.l.b16 %v2141
      %v2659 = vunpack.c.l.b16 %v2142
      %v2660 = vunpack.c.l.b16 %v2143
      %v2661 = vunpack.c.l.b16 %v2144
      %v2662 = vunpack.c.l.b16 %v2145
      %v2663 = vunpack.c.l.b16 %v2146
      %v2664 = vunpack.c.l.b16 %v2147
      %v2665 = vunpack.c.l.b16 %v2148
      %v2666 = vunpack.c.l.b16 %v2149
      %v2667 = vunpack.c.l.b16 %v2150
      %v2668 = vunpack.c.l.b16 %v2151
      %v2669 = vunpack.c.l.b16 %v2152
      %v2670 = vunpack.c.l.b16 %v2153
      %v2671 = vunpack.c.l.b16 %v2154
      %v2672 = vunpack.c.l.b16 %v2155
      %v2673 = vunpack.c.l.b16 %v2156
      %v2674 = vunpack.c.l.b16 %v2157
      %v2675 = vunpack.c.l.b16 %v2158
      %v2676 = vunpack.c.l.b16 %v2159
      %v2677 = vunpack.c.l.b16 %v2160
      %v2678 = vunpack.c.l.b16 %v2161
      %v2679 = vunpack.c.l.b16 %v2162
      %v2680 = vunpack.c.l.b16 %v2163
      %v2681 = vunpack.c.l.b16 %v2164
      %v2682 = vunpack.c.l.b16 %v2165
      %v2683 = vunpack.c.l.b16 %v2166
      %v2684 = vunpack.c.l.b16 %v2167
      %v2685 = vunpack.c.l.b16 %v2168
      %v2686 = vunpack.c.l.b16 %v2169
      %v2687 = vunpack.c.l.b16 %v2170
      %v2688 = vunpack.c.l.b16 %v2171
      %v2689 = vunpack.c.l.b16 %v2172
      %v2690 = vunpack.c.l.b16 %v2173
      %v2691 = vunpack.c.l.b16 %v2174
      %v2692 = vunpack.c.l.b16 %v2175
      %v2693 = vunpack.c.l.b16 %v2176
      %v2694 = vunpack.c.l.b16 %v2177
      %v2695 = vunpack.c.l.b16 %v2178
      %v2696 = vunpack.c.l.b16 %v2179
      %v2697 = vunpack.c.l.b16 %v2180
      %v2698 = vunpack.c.l.b16 %v2181
      %v2699 = vunpack.c.l.b16 %v2182
      %v2700 = vunpack.c.l.b16 %v2183
      %v2701 = vunpack.c.l.b16 %v2184
      %v2702 = vunpack.c.l.b16 %v2185
      %v2703 = vunpack.c.l.b16 %v2186
      %v2704 = vunpack.c.l.b16 %v2187
      %v2705 = vunpack.c.l.b16 %v2188
      %v2706 = vunpack.c.l.b16 %v2189
      %v2707 = vunpack.c.l.b16 %v2190
      %v2708 = vunpack.c.l.b16 %v2191
      %v2709 = vunpack.c.l.b16 %v2192
      %v2710 = vunpack.c.l.b16 %v2193
      %v2711 = vunpack.c.l.b16 %v2194
      %v2712 = vunpack.c.l.b16 %v2195
      %v2713 = vunpack.c.l.b16 %v2196
      %v2714 = vunpack.c.l.b16 %v2197
      %v2715 = vunpack.c.l.b16 %v2198
      %v2716 = vunpack.c.l.b16 %v2199
      %v2717 = vunpack.c.l.b16 %v2200
      %v2718 = vunpack.c.l.b16 %v2201
      %v2719 = vunpack.c.l.b16 %v2202
      %v2720 = vunpack.c.l.b16 %v2203
      %v2721 = vunpack.c.l.b16 %v2204
      %v2722 = vunpack.c.l.b16 %v2205
      %v2723 = vunpack.c.l.b16 %v2206
      %v2724 = vunpack.c.l.b16 %v2207
      %v2725 = vunpack.c.l.b16 %v2208
      %v2726 = vunpack.c.l.b16 %v2209
      %v2727 = vunpack.c.l.b16 %v2210
      %v2728 = vunpack.c.l.b16 %v2211
      %v2729 = vunpack.c.l.b16 %v2212
      %v2730 = vunpack.c.l.b16 %v2213
      %v2731 = vunpack.c.l.b16 %v2214
      %v2732 = vunpack.c.l.b16 %v2215
      %v2733 = vunpack.c.l.b16 %v2216
      %v2734 = vunpack.c.l.b16 %v2217
      %v2735 = vunpack.c.l.b16 %v2218
      %v2736 = vunpack.c.l.b16 %v2219
      %v2737 = vunpack.c.l.b16 %v2220
      %v2738 = vunpack.c.l.b16 %v2221
      %v2739 = vunpack.c.l.b16 %v2222
      %v2740 = vunpack.c.l.b16 %v2223
      %v2741 = vunpack.c.l.b16 %v2224
      %v2742 = vunpack.c.l.b16 %v2225
      %v2743 = vunpack.c.l.b16 %v2226
      %v2744 = vunpack.c.l.b16 %v2227
      %v2745 = vunpack.c.l.b16 %v2228
      %v2746 = vunpack.c.l.b16 %v2229
      %v2747 = vunpack.c.l.b16 %v2230
      %v2748 = vunpack.c.l.b16 %v2231
      %v2749 = vunpack.c.l.b16 %v2232
      %v2750 = vunpack.c.l.b16 %v2233
      %v2751 = vunpack.c.l.b16 %v2234
      %v2752 = vunpack.c.l.b16 %v2235
      %v2753 = vunpack.c.l.b16 %v2236
      %v2754 = vunpack.c.l.b16 %v2237
      %v2755 = vunpack.c.l.b16 %v2238
      %v2756 = vunpack.c.l.b16 %v2239
      %v2757 = vunpack.c.l.b16 %v2240
      %v2758 = vunpack.c.l.b16 %v2241
      %v2759 = vunpack.c.l.b16 %v2242
      %v2760 = vunpack.c.l.b16 %v2243
      %v2761 = vunpack.c.l.b16 %v2244
      %v2762 = vunpack.c.l.b16 %v2245
      %v2763 = vunpack.c.l.b16 %v2246
      %v2764 = vunpack.c.l.b16 %v2247
      %v2765 = vunpack.c.l.b16 %v2248
      %v2766 = vunpack.c.l.b16 %v2249
      %v2767 = vunpack.c.l.b16 %v2250
      %v2768 = vunpack.c.l.b16 %v2251
      %v2769 = vunpack.c.l.b16 %v2252
      %v2770 = vunpack.c.l.b16 %v2253
      %v2771 = vunpack.c.l.b16 %v2254
      %v2772 = vunpack.c.l.b16 %v2255
      %v2773 = vunpack.c.l.b16 %v2256
      %v2774 = vunpack.c.l.b16 %v2257
      %v2775 = vunpack.c.l.b16 %v2258
      %v2776 = vunpack.c.l.b16 %v2259
      %v2777 = vunpack.c.l.b16 %v2260
      %v2778 = vunpack.c.l.b16 %v2261
      %v2779 = vunpack.c.l.b16 %v2262
      %v2780 = vunpack.c.l.b16 %v2263
      %v2781 = vunpack.c.l.b16 %v2264
      %v2782 = vunpack.c.l.b16 %v2265
      %v2783 = vunpack.c.l.b16 %v2266
      %v2784 = vunpack.c.l.b16 %v2267
      %v2785 = vunpack.c.l.b16 %v2268
      %v2786 = vunpack.c.l.b16 %v2269
      %v2787 = vunpack.c.l.b16 %v2270
      %v2788 = vunpack.c.l.b16 %v2271
      %v2789 = vunpack.c.l.b16 %v2272
      %v2790 = vunpack.c.l.b16 %v2273
      %v2791 = vunpack.c.l.b16 %v2274
      %v2792 = vunpack.c.l.b16 %v2275
      %v2793 = vunpack.c.l.b16 %v2276
      %v2794 = vunpack.c.l.b16 %v2277
      %v2795 = vunpack.c.l.b16 %v2278
      %v2796 = vunpack.c.l.b16 %v2279
      %v2797 = vunpack.c.l.b16 %v2280
      %v2798 = vunpack.c.l.b16 %v2281
      %v2799 = vunpack.c.l.b16 %v2282
      %v2800 = vunpack.c.l.b16 %v2283
      %v2801 = vunpack.c.l.b16 %v2284
      %v2802 = vunpack.c.l.b16 %v2285
      %v2803 = vunpack.c.l.b16 %v2286
      %v2804 = vunpack.c.l.b16 %v2287
      %v2805 = vunpack.c.l.b16 %v2288
      %v2806 = vunpack.c.l.b16 %v2289
      %v2807 = vunpack.c.l.b16 %v2290
      %v2808 = vunpack.c.l.b16 %v2291
      %v2809 = vunpack.c.l.b16 %v2292
      %v2810 = vunpack.c.l.b16 %v2293
      %v2811 = vunpack.c.l.b16 %v2294
      %v2812 = vunpack.c.l.b16 %v2295
      %v2813 = vunpack.c.l.b16 %v2296
      %v2814 = vunpack.c.l.b16 %v2297
      %v2815 = vunpack.c.l.b16 %v2298
      %v2816 = vunpack.c.l.b16 %v2299
      %v2817 = vunpack.c.l.b16 %v2300
      %v2818 = vunpack.c.l.b16 %v2301
      %v2819 = vunpack.c.l.b16 %v2302
      %v2820 = vunpack.c.l.b16 %v2303
      %v2821 = vunpack.c.l.b16 %v2304
      %v2822 = vunpack.c.l.b16 %v2305
      %v2823 = vunpack.c.l.b16 %v2306
      %v2824 = vunpack.c.l.b16 %v2307
      %v2825 = vunpack.c.l.b16 %v2308
      %v2826 = vunpack.c.l.b16 %v2309
      %v2827 = vunpack.c.l.b16 %v2310
      %v2828 = vunpack.c.l.b16 %v2311
      %v2829 = vunpack.c.l.b16 %v2312
      %v2830 = vunpack.c.l.b16 %v2313
      %v2831 = vunpack.c.l.b16 %v2314
      %v2832 = vunpack.c.l.b16 %v2315
      %v2833 = vunpack.c.l.b16 %v2316
      %v2834 = vunpack.c.l.b16 %v2317
      %v2835 = vunpack.c.l.b16 %v2318
      %v2836 = vunpack.c.l.b16 %v2319
      %v2837 = vunpack.c.l.b16 %v2320
      %v2838 = vunpack.c.l.b16 %v2321
      %v2839 = vunpack.c.l.b16 %v2322
      %v2840 = vunpack.c.l.b16 %v2323
      %v2841 = vunpack.c.l.b16 %v2324
      %v2842 = vunpack.c.l.b16 %v2325
      %v2843 = vunpack.c.l.b16 %v2326
      %v2844 = vunpack.c.l.b16 %v2327
      %v2845 = vunpack.c.l.b16 %v2328
      %v2846 = vunpack.c.l.b16 %v2329
      %v2847 = vunpack.c.l.b16 %v2330
      %v2848 = vunpack.c.l.b16 %v2331
      %v2849 = vunpack.c.l.b16 %v2332
      %v2850 = vunpack.c.l.b16 %v2333
      %v2851 = vpack.c.b16 %v2596, %v2595
      %v2852 = vpack.c.b16 %v2598, %v2597
      %v2853 = vpack.c.b16 %v2600, %v2599
      %v2854 = vpack.c.b16 %v2602, %v2601
      %v2855 = vpack.c.b16 %v2604, %v2603
      %v2856 = vpack.c.b16 %v2606, %v2605
      %v2857 = vpack.c.b16 %v2608, %v2607
      %v2858 = vpack.c.b16 %v2610, %v2609
      %v2859 = vpack.c.b16 %v2612, %v2611
      %v2860 = vpack.c.b16 %v2614, %v2613
      %v2861 = vpack.c.b16 %v2616, %v2615
      %v2862 = vpack.c.b16 %v2618, %v2617
      %v2863 = vpack.c.b16 %v2620, %v2619
      %v2864 = vpack.c.b16 %v2622, %v2621
      %v2865 = vpack.c.b16 %v2624, %v2623
      %v2866 = vpack.c.b16 %v2626, %v2625
      %v2867 = vpack.c.b16 %v2628, %v2627
      %v2868 = vpack.c.b16 %v2630, %v2629
      %v2869 = vpack.c.b16 %v2632, %v2631
      %v2870 = vpack.c.b16 %v2634, %v2633
      %v2871 = vpack.c.b16 %v2636, %v2635
      %v2872 = vpack.c.b16 %v2638, %v2637
      %v2873 = vpack.c.b16 %v2640, %v2639
      %v2874 = vpack.c.b16 %v2642, %v2641
      %v2875 = vpack.c.b16 %v2644, %v2643
      %v2876 = vpack.c.b16 %v2646, %v2645
      %v2877 = vpack.c.b16 %v2648, %v2647
      %v2878 = vpack.c.b16 %v2650, %v2649
      %v2879 = vpack.c.b16 %v2652, %v2651
      %v2880 = vpack.c.b16 %v2654, %v2653
      %v2881 = vpack.c.b16 %v2656, %v2655
      %v2882 = vpack.c.b16 %v2658, %v2657
      %v2883 = vpack.c.b16 %v2660, %v2659
      %v2884 = vpack.c.b16 %v2662, %v2661
      %v2885 = vpack.c.b16 %v2664, %v2663
      %v2886 = vpack.c.b16 %v2666, %v2665
      %v2887 = vpack.c.b16 %v2668, %v2667
      %v2888 = vpack.c.b16 %v2670, %v2669
      %v2889 = vpack.c.b16 %v2672, %v2671
      %v2890 = vpack.c.b16 %v2674, %v2673
      %v2891 = vpack.c.b16 %v2676, %v2675
      %v2892 = vpack.c.b16 %v2678, %v2677
      %v2893 = vpack.c.b16 %v2680, %v2679
      %v2894 = vpack.c.b16 %v2682, %v2681
      %v2895 = vpack.c.b16 %v2684, %v2683
      %v2896 = vpack.c.b16 %v2686, %v2685
      %v2897 = vpack.c.b16 %v2688, %v2687
      %v2898 = vpack.c.b16 %v2690, %v2689
      %v2899 = vpack.c.b16 %v2692, %v2691
      %v2900 = vpack.c.b16 %v2694, %v2693
      %v2901 = vpack.c.b16 %v2696, %v2695
      %v2902 = vpack.c.b16 %v2698, %v2697
      %v2903 = vpack.c.b16 %v2700, %v2699
      %v2904 = vpack.c.b16 %v2702, %v2701
      %v2905 = vpack.c.b16 %v2704, %v2703
      %v2906 = vpack.c.b16 %v2706, %v2705
      %v2907 = vpack.c.b16 %v2708, %v2707
      %v2908 = vpack.c.b16 %v2710, %v2709
      %v2909 = vpack.c.b16 %v2712, %v2711
      %v2910 = vpack.c.b16 %v2714, %v2713
      %v2911 = vpack.c.b16 %v2716, %v2715
      %v2912 = vpack.c.b16 %v2718, %v2717
      %v2913 = vpack.c.b16 %v2720, %v2719
      %v2914 = vpack.c.b16 %v2722, %v2721
      %v2915 = vpack.c.b16 %v2724, %v2723
      %v2916 = vpack.c.b16 %v2726, %v2725
      %v2917 = vpack.c.b16 %v2728, %v2727
      %v2918 = vpack.c.b16 %v2730, %v2729
      %v2919 = vpack.c.b16 %v2732, %v2731
      %v2920 = vpack.c.b16 %v2734, %v2733
      %v2921 = vpack.c.b16 %v2736, %v2735
      %v2922 = vpack.c.b16 %v2738, %v2737
      %v2923 = vpack.c.b16 %v2740, %v2739
      %v2924 = vpack.c.b16 %v2742, %v2741
      %v2925 = vpack.c.b16 %v2744, %v2743
      %v2926 = vpack.c.b16 %v2746, %v2745
      %v2927 = vpack.c.b16 %v2748, %v2747
      %v2928 = vpack.c.b16 %v2750, %v2749
      %v2929 = vpack.c.b16 %v2752, %v2751
      %v2930 = vpack.c.b16 %v2754, %v2753
      %v2931 = vpack.c.b16 %v2756, %v2755
      %v2932 = vpack.c.b16 %v2758, %v2757
      %v2933 = vpack.c.b16 %v2760, %v2759
      %v2934 = vpack.c.b16 %v2762, %v2761
      %v2935 = vpack.c.b16 %v2764, %v2763
      %v2936 = vpack.c.b16 %v2766, %v2765
      %v2937 = vpack.c.b16 %v2768, %v2767
      %v2938 = vpack.c.b16 %v2770, %v2769
      %v2939 = vpack.c.b16 %v2772, %v2771
      %v2940 = vpack.c.b16 %v2774, %v2773
      %v2941 = vpack.c.b16 %v2776, %v2775
      %v2942 = vpack.c.b16 %v2778, %v2777
      %v2943 = vpack.c.b16 %v2780, %v2779
      %v2944 = vpack.c.b16 %v2782, %v2781
      %v2945 = vpack.c.b16 %v2784, %v2783
      %v2946 = vpack.c.b16 %v2786, %v2785
      %v2947 = vpack.c.b16 %v2788, %v2787
      %v2948 = vpack.c.b16 %v2790, %v2789
      %v2949 = vpack.c.b16 %v2792, %v2791
      %v2950 = vpack.c.b16 %v2794, %v2793
      %v2951 = vpack.c.b16 %v2796, %v2795
      %v2952 = vpack.c.b16 %v2798, %v2797
      %v2953 = vpack.c.b16 %v2800, %v2799
      %v2954 = vpack.c.b16 %v2802, %v2801
      %v2955 = vpack.c.b16 %v2804, %v2803
      %v2956 = vpack.c.b16 %v2806, %v2805
      %v2957 = vpack.c.b16 %v2808, %v2807
      %v2958 = vpack.c.b16 %v2810, %v2809
      %v2959 = vpack.c.b16 %v2812, %v2811
      %v2960 = vpack.c.b16 %v2814, %v2813
      %v2961 = vpack.c.b16 %v2816, %v2815
      %v2962 = vpack.c.b16 %v2818, %v2817
      %v2963 = vpack.c.b16 %v2820, %v2819
      %v2964 = vpack.c.b16 %v2822, %v2821
      %v2965 = vpack.c.b16 %v2824, %v2823
      %v2966 = vpack.c.b16 %v2826, %v2825
      %v2967 = vpack.c.b16 %v2828, %v2827
      %v2968 = vpack.c.b16 %v2830, %v2829
      %v2969 = vpack.c.b16 %v2832, %v2831
      %v2970 = vpack.c.b16 %v2834, %v2833
      %v2971 = vpack.c.b16 %v2836, %v2835
      %v2972 = vpack.c.b16 %v2838, %v2837
      %v2973 = vpack.c.b16 %v2840, %v2839
      %v2974 = vpack.c.b16 %v2842, %v2841
      %v2975 = vpack.c.b16 %v2844, %v2843
      %v2976 = vpack.c.b16 %v2846, %v2845
      %v2977 = vpack.c.b16 %v2848, %v2847
      %v2978 = vpack.c.b16 %v2850, %v2849
      %3107 = vmatpush.bf16.msra.mxu0 %v2858
      %3108 = vmatpush.bf16.msra.mxu0 %v2857
      %3109 = vmatpush.bf16.msra.mxu0 %v2856
      %3110 = vmatpush.bf16.msra.mxu0 %v2855
      %3111 = vmatpush.bf16.msra.mxu0 %v2854
      %3112 = vmatpush.bf16.msra.mxu0 %v2853
      %3113 = vmatpush.bf16.msra.mxu0 %v2852
      %3114 = vmatpush.bf16.msra.mxu0 %v2851
      %3115 = vmatmul.bf16.gmra.mxu0 %v2043
      %v3116 = vpop.f32.mrf.mxu0
      %v3117 = vadd.f32 %v2337, %v3116
      %v3118 = vpop.f32.mrf.mxu0
      %v3119 = vadd.f32 %v2337, %v3118
      %3120 = vmatmul.bf16.gmra.mxu0 %v2059
      %v3121 = vpop.f32.mrf.mxu0
      %v3122 = vadd.f32 %v2337, %v3121
      %v3123 = vpop.f32.mrf.mxu0
      %v3124 = vadd.f32 %v2337, %v3123
      %3125 = vdwg.mxu0
      %3126 = vmatpush.bf16.msra.mxu0 %v2866
      %3127 = vmatpush.bf16.msra.mxu0 %v2865
      %3128 = vmatpush.bf16.msra.mxu0 %v2864
      %3129 = vmatpush.bf16.msra.mxu0 %v2863
      %3130 = vmatpush.bf16.msra.mxu0 %v2862
      %3131 = vmatpush.bf16.msra.mxu0 %v2861
      %3132 = vmatpush.bf16.msra.mxu0 %v2860
      %3133 = vmatpush.bf16.msra.mxu0 %v2859
      %3134 = vmatmul.bf16.gmra.mxu0 %v2044
      %v3135 = vpop.f32.mrf.mxu0
      %v3136 = vadd.f32 %v3117, %v3135
      %v3137 = vpop.f32.mrf.mxu0
      %v3138 = vadd.f32 %v3119, %v3137
      %3139 = vmatmul.bf16.gmra.mxu0 %v2060
      %v3140 = vpop.f32.mrf.mxu0
      %v3141 = vadd.f32 %v3122, %v3140
      %v3142 = vpop.f32.mrf.mxu0
      %v3143 = vadd.f32 %v3124, %v3142
      %3144 = vdwg.mxu0
      %3145 = vmatpush.bf16.msra.mxu0 %v2874
      %3146 = vmatpush.bf16.msra.mxu0 %v2873
      %3147 = vmatpush.bf16.msra.mxu0 %v2872
      %3148 = vmatpush.bf16.msra.mxu0 %v2871
      %3149 = vmatpush.bf16.msra.mxu0 %v2870
      %3150 = vmatpush.bf16.msra.mxu0 %v2869
      %3151 = vmatpush.bf16.msra.mxu0 %v2868
      %3152 = vmatpush.bf16.msra.mxu0 %v2867
      %3153 = vmatmul.bf16.gmra.mxu0 %v2045
      %v3154 = vpop.f32.mrf.mxu0
      %v3155 = vadd.f32 %v3136, %v3154
      %v3156 = vpop.f32.mrf.mxu0
      %v3157 = vadd.f32 %v3138, %v3156
      %3158 = vmatmul.bf16.gmra.mxu0 %v2061
      %v3159 = vpop.f32.mrf.mxu0
      %v3160 = vadd.f32 %v3141, %v3159
      %v3161 = vpop.f32.mrf.mxu0
      %v3162 = vadd.f32 %v3143, %v3161
      %3163 = vdwg.mxu0
      %3164 = vmatpush.bf16.msra.mxu0 %v2882
      %3165 = vmatpush.bf16.msra.mxu0 %v2881
      %3166 = vmatpush.bf16.msra.mxu0 %v2880
      %3167 = vmatpush.bf16.msra.mxu0 %v2879
      %3168 = vmatpush.bf16.msra.mxu0 %v2878
      %3169 = vmatpush.bf16.msra.mxu0 %v2877
      %3170 = vmatpush.bf16.msra.mxu0 %v2876
      %3171 = vmatpush.bf16.msra.mxu0 %v2875
      %3172 = vmatmul.bf16.gmra.mxu0 %v2046
      %v3173 = vpop.f32.mrf.mxu0
      %v3174 = vadd.f32 %v3155, %v3173
      %v3175 = vpop.f32.mrf.mxu0
      %v3176 = vadd.f32 %v3157, %v3175
      %3177 = vmatmul.bf16.gmra.mxu0 %v2062
      %v3178 = vpop.f32.mrf.mxu0
      %v3179 = vadd.f32 %v3160, %v3178
      %v3180 = vpop.f32.mrf.mxu0
      %v3181 = vadd.f32 %v3162, %v3180
      %3182 = vdwg.mxu0
      %3183 = vmatpush.bf16.msra.mxu0 %v2890
      %3184 = vmatpush.bf16.msra.mxu0 %v2889
      %3185 = vmatpush.bf16.msra.mxu0 %v2888
      %3186 = vmatpush.bf16.msra.mxu0 %v2887
      %3187 = vmatpush.bf16.msra.mxu0 %v2886
      %3188 = vmatpush.bf16.msra.mxu0 %v2885
      %3189 = vmatpush.bf16.msra.mxu0 %v2884
      %3190 = vmatpush.bf16.msra.mxu0 %v2883
      %3191 = vmatmul.bf16.gmra.mxu0 %v2047
      %v3192 = vpop.f32.mrf.mxu0
      %v3193 = vadd.f32 %v3174, %v3192
      %v3194 = vpop.f32.mrf.mxu0
      %v3195 = vadd.f32 %v3176, %v3194
      %3196 = vmatmul.bf16.gmra.mxu0 %v2063
      %v3197 = vpop.f32.mrf.mxu0
      %v3198 = vadd.f32 %v3179, %v3197
      %v3199 = vpop.f32.mrf.mxu0
      %v3200 = vadd.f32 %v3181, %v3199
      %3201 = vdwg.mxu0
      %3202 = vmatpush.bf16.msra.mxu0 %v2898
      %3203 = vmatpush.bf16.msra.mxu0 %v2897
      %3204 = vmatpush.bf16.msra.mxu0 %v2896
      %3205 = vmatpush.bf16.msra.mxu0 %v2895
      %3206 = vmatpush.bf16.msra.mxu0 %v2894
      %3207 = vmatpush.bf16.msra.mxu0 %v2893
      %3208 = vmatpush.bf16.msra.mxu0 %v2892
      %3209 = vmatpush.bf16.msra.mxu0 %v2891
      %3210 = vmatmul.bf16.gmra.mxu0 %v2048
      %v3211 = vpop.f32.mrf.mxu0
      %v3212 = vadd.f32 %v3193, %v3211
      %v3213 = vpop.f32.mrf.mxu0
      %v3214 = vadd.f32 %v3195, %v3213
      %3215 = vmatmul.bf16.gmra.mxu0 %v2064
      %v3216 = vpop.f32.mrf.mxu0
      %v3217 = vadd.f32 %v3198, %v3216
      %v3218 = vpop.f32.mrf.mxu0
      %v3219 = vadd.f32 %v3200, %v3218
      %3220 = vdwg.mxu0
      %3221 = vmatpush.bf16.msra.mxu0 %v2906
      %3222 = vmatpush.bf16.msra.mxu0 %v2905
      %3223 = vmatpush.bf16.msra.mxu0 %v2904
      %3224 = vmatpush.bf16.msra.mxu0 %v2903
      %3225 = vmatpush.bf16.msra.mxu0 %v2902
      %3226 = vmatpush.bf16.msra.mxu0 %v2901
      %3227 = vmatpush.bf16.msra.mxu0 %v2900
      %3228 = vmatpush.bf16.msra.mxu0 %v2899
      %3229 = vmatmul.bf16.gmra.mxu0 %v2049
      %v3230 = vpop.f32.mrf.mxu0
      %v3231 = vadd.f32 %v3212, %v3230
      %v3232 = vpop.f32.mrf.mxu0
      %v3233 = vadd.f32 %v3214, %v3232
      %3234 = vmatmul.bf16.gmra.mxu0 %v2065
      %v3235 = vpop.f32.mrf.mxu0
      %v3236 = vadd.f32 %v3217, %v3235
      %v3237 = vpop.f32.mrf.mxu0
      %v3238 = vadd.f32 %v3219, %v3237
      %3239 = vdwg.mxu0
      %3240 = vmatpush.bf16.msra.mxu0 %v2914
      %3241 = vmatpush.bf16.msra.mxu0 %v2913
      %3242 = vmatpush.bf16.msra.mxu0 %v2912
      %3243 = vmatpush.bf16.msra.mxu0 %v2911
      %3244 = vmatpush.bf16.msra.mxu0 %v2910
      %3245 = vmatpush.bf16.msra.mxu0 %v2909
      %3246 = vmatpush.bf16.msra.mxu0 %v2908
      %3247 = vmatpush.bf16.msra.mxu0 %v2907
      %3248 = vmatmul.bf16.gmra.mxu0 %v2050
      %v3249 = vpop.f32.mrf.mxu0
      %v3250 = vadd.f32 %v3231, %v3249
      %v3251 = vpop.f32.mrf.mxu0
      %v3252 = vadd.f32 %v3233, %v3251
      %3253 = vmatmul.bf16.gmra.mxu0 %v2066
      %v3254 = vpop.f32.mrf.mxu0
      %v3255 = vadd.f32 %v3236, %v3254
      %v3256 = vpop.f32.mrf.mxu0
      %v3257 = vadd.f32 %v3238, %v3256
      %3258 = vdwg.mxu0
      %3259 = vmatpush.bf16.msra.mxu0 %v2922
      %3260 = vmatpush.bf16.msra.mxu0 %v2921
      %3261 = vmatpush.bf16.msra.mxu0 %v2920
      %3262 = vmatpush.bf16.msra.mxu0 %v2919
      %3263 = vmatpush.bf16.msra.mxu0 %v2918
      %3264 = vmatpush.bf16.msra.mxu0 %v2917
      %3265 = vmatpush.bf16.msra.mxu0 %v2916
      %3266 = vmatpush.bf16.msra.mxu0 %v2915
      %3267 = vmatmul.bf16.gmra.mxu0 %v2051
      %v3268 = vpop.f32.mrf.mxu0
      %v3269 = vadd.f32 %v3250, %v3268
      %v3270 = vpop.f32.mrf.mxu0
      %v3271 = vadd.f32 %v3252, %v3270
      %3272 = vmatmul.bf16.gmra.mxu0 %v2067
      %v3273 = vpop.f32.mrf.mxu0
      %v3274 = vadd.f32 %v3255, %v3273
      %v3275 = vpop.f32.mrf.mxu0
      %v3276 = vadd.f32 %v3257, %v3275
      %3277 = vdwg.mxu0
      %3278 = vmatpush.bf16.msra.mxu0 %v2930
      %3279 = vmatpush.bf16.msra.mxu0 %v2929
      %3280 = vmatpush.bf16.msra.mxu0 %v2928
      %3281 = vmatpush.bf16.msra.mxu0 %v2927
      %3282 = vmatpush.bf16.msra.mxu0 %v2926
      %3283 = vmatpush.bf16.msra.mxu0 %v2925
      %3284 = vmatpush.bf16.msra.mxu0 %v2924
      %3285 = vmatpush.bf16.msra.mxu0 %v2923
      %3286 = vmatmul.bf16.gmra.mxu0 %v2052
      %v3287 = vpop.f32.mrf.mxu0
      %v3288 = vadd.f32 %v3269, %v3287
      %v3289 = vpop.f32.mrf.mxu0
      %v3290 = vadd.f32 %v3271, %v3289
      %3291 = vmatmul.bf16.gmra.mxu0 %v2068
      %v3292 = vpop.f32.mrf.mxu0
      %v3293 = vadd.f32 %v3274, %v3292
      %v3294 = vpop.f32.mrf.mxu0
      %v3295 = vadd.f32 %v3276, %v3294
      %3296 = vdwg.mxu0
      %3297 = vmatpush.bf16.msra.mxu0 %v2938
      %3298 = vmatpush.bf16.msra.mxu0 %v2937
      %3299 = vmatpush.bf16.msra.mxu0 %v2936
      %3300 = vmatpush.bf16.msra.mxu0 %v2935
      %3301 = vmatpush.bf16.msra.mxu0 %v2934
      %3302 = vmatpush.bf16.msra.mxu0 %v2933
      %3303 = vmatpush.bf16.msra.mxu0 %v2932
      %3304 = vmatpush.bf16.msra.mxu0 %v2931
      %3305 = vmatmul.bf16.gmra.mxu0 %v2053
      %v3306 = vpop.f32.mrf.mxu0
      %v3307 = vadd.f32 %v3288, %v3306
      %v3308 = vpop.f32.mrf.mxu0
      %v3309 = vadd.f32 %v3290, %v3308
      %3310 = vmatmul.bf16.gmra.mxu0 %v2069
      %v3311 = vpop.f32.mrf.mxu0
      %v3312 = vadd.f32 %v3293, %v3311
      %v3313 = vpop.f32.mrf.mxu0
      %v3314 = vadd.f32 %v3295, %v3313
      %3315 = vdwg.mxu0
      %3316 = vmatpush.bf16.msra.mxu0 %v2946
      %3317 = vmatpush.bf16.msra.mxu0 %v2945
      %3318 = vmatpush.bf16.msra.mxu0 %v2944
      %3319 = vmatpush.bf16.msra.mxu0 %v2943
      %3320 = vmatpush.bf16.msra.mxu0 %v2942
      %3321 = vmatpush.bf16.msra.mxu0 %v2941
      %3322 = vmatpush.bf16.msra.mxu0 %v2940
      %3323 = vmatpush.bf16.msra.mxu0 %v2939
      %3324 = vmatmul.bf16.gmra.mxu0 %v2054
      %v3325 = vpop.f32.mrf.mxu0
      %v3326 = vadd.f32 %v3307, %v3325
      %v3327 = vpop.f32.mrf.mxu0
      %v3328 = vadd.f32 %v3309, %v3327
      %3329 = vmatmul.bf16.gmra.mxu0 %v2070
      %v3330 = vpop.f32.mrf.mxu0
      %v3331 = vadd.f32 %v3312, %v3330
      %v3332 = vpop.f32.mrf.mxu0
      %v3333 = vadd.f32 %v3314, %v3332
      %3334 = vdwg.mxu0
      %3335 = vmatpush.bf16.msra.mxu0 %v2954
      %3336 = vmatpush.bf16.msra.mxu0 %v2953
      %3337 = vmatpush.bf16.msra.mxu0 %v2952
      %3338 = vmatpush.bf16.msra.mxu0 %v2951
      %3339 = vmatpush.bf16.msra.mxu0 %v2950
      %3340 = vmatpush.bf16.msra.mxu0 %v2949
      %3341 = vmatpush.bf16.msra.mxu0 %v2948
      %3342 = vmatpush.bf16.msra.mxu0 %v2947
      %3343 = vmatmul.bf16.gmra.mxu0 %v2055
      %v3344 = vpop.f32.mrf.mxu0
      %v3345 = vadd.f32 %v3326, %v3344
      %v3346 = vpop.f32.mrf.mxu0
      %v3347 = vadd.f32 %v3328, %v3346
      %3348 = vmatmul.bf16.gmra.mxu0 %v2071
      %v3349 = vpop.f32.mrf.mxu0
      %v3350 = vadd.f32 %v3331, %v3349
      %v3351 = vpop.f32.mrf.mxu0
      %v3352 = vadd.f32 %v3333, %v3351
      %3353 = vdwg.mxu0
      %3354 = vmatpush.bf16.msra.mxu0 %v2962
      %3355 = vmatpush.bf16.msra.mxu0 %v2961
      %3356 = vmatpush.bf16.msra.mxu0 %v2960
      %3357 = vmatpush.bf16.msra.mxu0 %v2959
      %3358 = vmatpush.bf16.msra.mxu0 %v2958
      %3359 = vmatpush.bf16.msra.mxu0 %v2957
      %3360 = vmatpush.bf16.msra.mxu0 %v2956
      %3361 = vmatpush.bf16.msra.mxu0 %v2955
      %3362 = vmatmul.bf16.gmra.mxu0 %v2056
      %v3363 = vpop.f32.mrf.mxu0
      %v3364 = vadd.f32 %v3345, %v3363
      %v3365 = vpop.f32.mrf.mxu0
      %v3366 = vadd.f32 %v3347, %v3365
      %3367 = vmatmul.bf16.gmra.mxu0 %v2072
      %v3368 = vpop.f32.mrf.mxu0
      %v3369 = vadd.f32 %v3350, %v3368
      %v3370 = vpop.f32.mrf.mxu0
      %v3371 = vadd.f32 %v3352, %v3370
      %3372 = vdwg.mxu0
      %3373 = vmatpush.bf16.msra.mxu0 %v2970
      %3374 = vmatpush.bf16.msra.mxu0 %v2969
      %3375 = vmatpush.bf16.msra.mxu0 %v2968
      %3376 = vmatpush.bf16.msra.mxu0 %v2967
      %3377 = vmatpush.bf16.msra.mxu0 %v2966
      %3378 = vmatpush.bf16.msra.mxu0 %v2965
      %3379 = vmatpush.bf16.msra.mxu0 %v2964
      %3380 = vmatpush.bf16.msra.mxu0 %v2963
      %3381 = vmatmul.bf16.gmra.mxu0 %v2057
      %v3382 = vpop.f32.mrf.mxu0
      %v3383 = vadd.f32 %v3364, %v3382
      %v3384 = vpop.f32.mrf.mxu0
      %v3385 = vadd.f32 %v3366, %v3384
      %3386 = vmatmul.bf16.gmra.mxu0 %v2073
      %v3387 = vpop.f32.mrf.mxu0
      %v3388 = vadd.f32 %v3369, %v3387
      %v3389 = vpop.f32.mrf.mxu0
      %v3390 = vadd.f32 %v3371, %v3389
      %3391 = vdwg.mxu0
      %3392 = vmatpush.bf16.msra.mxu0 %v2978
      %3393 = vmatpush.bf16.msra.mxu0 %v2977
      %3394 = vmatpush.bf16.msra.mxu0 %v2976
      %3395 = vmatpush.bf16.msra.mxu0 %v2975
      %3396 = vmatpush.bf16.msra.mxu0 %v2974
      %3397 = vmatpush.bf16.msra.mxu0 %v2973
      %3398 = vmatpush.bf16.msra.mxu0 %v2972
      %3399 = vmatpush.bf16.msra.mxu0 %v2971
      %3400 = vmatmul.bf16.gmra.mxu0 %v2058
      %v3401 = vpop.f32.mrf.mxu0
      %v3402 = vadd.f32 %v3383, %v3401
      %v3403 = vpop.f32.mrf.mxu0
      %v3404 = vadd.f32 %v3385, %v3403
      %3405 = vmatmul.bf16.gmra.mxu0 %v2074
      %v3406 = vpop.f32.mrf.mxu0
      %v3407 = vadd.f32 %v3388, %v3406
      %v3408 = vpop.f32.mrf.mxu0
      %v3409 = vadd.f32 %v3390, %v3408
      %3410 = vdwg.mxu0
      %s3411 = scalar_lea.vmem %s13, %s1322
      %v3412 = vld [vmem:[%s3411] sm:$0x3]
      %v3413 = vadd.f32 %v1430, %v3402
      %v3414 = vadd.f32 %v1431, %v3404
      %v3415 = vadd.f32 %v1432, %v3407
      %v3416 = vadd.f32 %v1433, %v3409
      %v3417 = vsel %vm685, %v3413, 0.0
      %3418 = vadd.xlane.f32.xlu0 %v3417
      %v3419 = vpop.xlane.xlu0 %3418
      %v3420 = vsel %vm685, %v3414, 0.0
      %3421 = vadd.xlane.f32.xlu0 %v3420
      %v3422 = vpop.xlane.xlu0 %3421
      %v3423 = vsel %vm685, %v3415, 0.0
      %3424 = vadd.xlane.f32.xlu0 %v3423
      %v3425 = vpop.xlane.xlu0 %3424
      %v3426 = vsel %vm685, %v3416, 0.0
      %3427 = vadd.xlane.f32.xlu0 %v3426
      %v3428 = vpop.xlane.xlu0 %3427
      %v3429 = vmul.f32 %v3419, %v1347
      %v3430 = vmul.f32 %v3422, %v1347
      %v3431 = vmul.f32 %v3425, %v1347
      %v3432 = vmul.f32 %v3428, %v1347
      %v3433 = vsub.f32 %v3413, %v3429
      %v3434 = vsub.f32 %v3414, %v3430
      %v3435 = vsub.f32 %v3415, %v3431
      %v3436 = vsub.f32 %v3416, %v3432
      %v3437 = vmul.f32 %v3433, %v3433
      %v3438 = vmul.f32 %v3434, %v3434
      %v3439 = vmul.f32 %v3435, %v3435
      %v3440 = vmul.f32 %v3436, %v3436
      %v3441 = vsel %vm685, %v3437, 0.0
      %3442 = vadd.xlane.f32.xlu0 %v3441
      %v3443 = vpop.xlane.xlu0 %3442
      %v3444 = vsel %vm685, %v3438, 0.0
      %3445 = vadd.xlane.f32.xlu0 %v3444
      %v3446 = vpop.xlane.xlu0 %3445
      %v3447 = vsel %vm685, %v3439, 0.0
      %3448 = vadd.xlane.f32.xlu0 %v3447
      %v3449 = vpop.xlane.xlu0 %3448
      %v3450 = vsel %vm685, %v3440, 0.0
      %3451 = vadd.xlane.f32.xlu0 %v3450
      %v3452 = vpop.xlane.xlu0 %3451
      %v3453 = vmul.f32 %v3443, %v1347
      %v3454 = vmul.f32 %v3446, %v1347
      %v3455 = vmul.f32 %v3449, %v1347
      %v3456 = vmul.f32 %v3452, %v1347
      %v3457 = vadd.f32 %v3453, 1e-05
      %v3458 = vadd.f32 %v3454, 1e-05
      %v3459 = vadd.f32 %v3455, 1e-05
      %v3460 = vadd.f32 %v3456, 1e-05
      %v3461 = vrsqrt.pop %v3457
      %v3462 = vmul.f32 %v3461, %v3457
      %v3463 = vmul.f32 %v3462, %v3461
      %v3464 = vmul.f32 0.5, %v3463
      %v3465 = vsub.f32 1.5, %v3464
      %v3466 = vmul.f32 %v3461, %v3465
      %vm3467 = vweird.f32 %v3457
      %vm3468 = vweird.f32 %v3461
      %vm3469 = vmor %vm3467, %vm3468
      %v3470 = vsel %vm3469, %v3461, %v3466
      %v3471 = vrsqrt.pop %v3458
      %v3472 = vmul.f32 %v3471, %v3458
      %v3473 = vmul.f32 %v3472, %v3471
      %v3474 = vmul.f32 0.5, %v3473
      %v3475 = vsub.f32 1.5, %v3474
      %v3476 = vmul.f32 %v3471, %v3475
      %vm3477 = vweird.f32 %v3458
      %vm3478 = vweird.f32 %v3471
      %vm3479 = vmor %vm3477, %vm3478
      %v3480 = vsel %vm3479, %v3471, %v3476
      %v3481 = vrsqrt.pop %v3459
      %v3482 = vmul.f32 %v3481, %v3459
      %v3483 = vmul.f32 %v3482, %v3481
      %v3484 = vmul.f32 0.5, %v3483
      %v3485 = vsub.f32 1.5, %v3484
      %v3486 = vmul.f32 %v3481, %v3485
      %vm3487 = vweird.f32 %v3459
      %vm3488 = vweird.f32 %v3481
      %vm3489 = vmor %vm3487, %vm3488
      %v3490 = vsel %vm3489, %v3481, %v3486
      %v3491 = vrsqrt.pop %v3460
      %v3492 = vmul.f32 %v3491, %v3460
      %v3493 = vmul.f32 %v3492, %v3491
      %v3494 = vmul.f32 0.5, %v3493
      %v3495 = vsub.f32 1.5, %v3494
      %v3496 = vmul.f32 %v3491, %v3495
      %vm3497 = vweird.f32 %v3460
      %vm3498 = vweird.f32 %v3491
      %vm3499 = vmor %vm3497, %vm3498
      %v3500 = vsel %vm3499, %v3491, %v3496
      %v3501 = vmul.f32 %v3433, %v3470
      %v3502 = vmul.f32 %v3434, %v3480
      %v3503 = vmul.f32 %v3435, %v3490
      %v3504 = vmul.f32 %v3436, %v3500
      %v3505 = vperm.slane %v3412, 0
      %v3506 = vmul.f32 %v3501, %v3505
      %v3507 = vmul.f32 %v3502, %v3505
      %v3508 = vmul.f32 %v3503, %v3505
      %v3509 = vmul.f32 %v3504, %v3505
      %v3510 = vperm.slane %v3412, 1
      %v3511 = vadd.f32 %v3506, %v3510
      %v3512 = vadd.f32 %v3507, %v3510
      %v3513 = vadd.f32 %v3508, %v3510
      %v3514 = vadd.f32 %v3509, %v3510
      %3515 = vst.msk [vmem:[%s503] sm:$0xff] %vm685, %v3511
      %3516 = vst.msk [vmem:[%s503 + $0x8] sm:$0xff] %vm685, %v3512
      %3517 = vst.msk [vmem:[%s503 + $0x10] sm:$0xff] %vm685, %v3513
      %3518 = vst.msk [vmem:[%s503 + $0x18] sm:$0xff] %vm685, %v3514
      %s3519 = smul.u32 4, %s29
      %p3520 = scmp.lt.s32.totalorder %s3519, 3
      %s3521 = scalar_select %p3520, %s3519, 3
      %s3522 = smul.addr %s3521, 8
      %s3523 = scalar_lea.vmem %s14, %s3522
      // Predicated region
      $region81: #{scemima_forward.4} parent=75 // pred_check
        %p3524 = pneg %p359
      $region82: #{scemima_forward.4} parent=75 // pred_check_branch
        %3526 = sbr.rel (%p3524) target = $region84
      $region83: #{scemima_forward.4} parent=75 // pred_region
        %s3527 = smul.u32 4, %s29
      $region84: #{scemima_forward.4} parent=75 // pred_fallthru
        _
      // Predicated region
      $region85: #{scemima_forward.4} parent=75 // pred_check
        %p3528 = pneg %p359
      $region86: #{scemima_forward.4} parent=75 // pred_check_branch
        %3530 = sbr.rel (%p3528) target = $region88
      $region87: #{scemima_forward.4} parent=75 // pred_region
        %s3531 = smul.u32 4, %s29
        %p3532 = scmp.lt.s32.totalorder %s3531, 3
        %s3533 = scalar_select %p3532, %s3531, 3
        %s3534 = smul.addr %s3533, 8
        %s3535 = scalar_lea.vmem %s14, %s3534
      $region88: #{scemima_forward.4} parent=75 // pred_fallthru
        _
    $region76: #{scemima_forward.4} parent=5 // pred_fallthru
      _
    %p3536 = scmp.le.s32.totalorder 2, %s20
    // Predicated region
    $region89: #{scemima_forward.4} parent=5 // pred_check
      %p3537 = pneg %p3536
    $region90: #{scemima_forward.4} parent=5 // pred_check_branch
      %3539 = sbr.rel (%p3537) target = $region92
    $region91: #{scemima_forward.4} parent=5 // pred_region
      %s3540 = ssub.s32 %s20, 2
    $region92: #{scemima_forward.4} parent=5 // pred_fallthru
      _
  $region6: #{scemima_forward.4} parent=0 // loop_footer
    %s24 = sadd.s32 1, %s20
  $region7: #{scemima_forward.4} parent=0 // loop_footer_branch
    %19 = sbr.rel target = $region3
  $region8: #{scemima_forward.4} parent=0 // loop_exit
    _

</llo_original>
